<compile_context>
chip_gen: v5e
topology: v5e:2x2
jax: 0.10.0
libtpu: 0.0.40
codegen_flags: <defaults>
</compile_context>

<pallas_src>
import functools

import jax
import jax.numpy as jnp
from jax.experimental import pallas as pl
from jax.experimental.pallas import tpu as pltpu


def _ru8(n):
    return ((n + 7) // 8) * 8


def _row_sel(rows, cols, offset):
    # M[m, j] = 1.0 where j == 2*m + offset   (left-multiply: picks strided rows)
    m = jax.lax.broadcasted_iota(jnp.int32, (rows, cols), 0)
    j = jax.lax.broadcasted_iota(jnp.int32, (rows, cols), 1)
    return (j == 2 * m + offset).astype(jnp.float32)


def _col_sel(rows, cols, offset):
    # M[j, m] = 1.0 where j == 2*m + offset   (right-multiply: picks strided cols)
    j = jax.lax.broadcasted_iota(jnp.int32, (rows, cols), 0)
    m = jax.lax.broadcasted_iota(jnp.int32, (rows, cols), 1)
    return (j == 2 * m + offset).astype(jnp.float32)


# ----------------------------------------------------------------------------
# Fused ddnet kernel: conv2(s=2) -> GN(3,3)+ReLU -> ftr conv -> conv3
# ----------------------------------------------------------------------------
def _ddnet_kernel(H, W, inch, ncat, eps,
                  w2_ref, wf_ref, w3_ref, g_ref, b_ref,   # SMEM (flat weights)
                  x_ref, o_ref,                            # VMEM in / out
                  xpad_ref, x1p_ref, f1p_ref):             # VMEM scratch
    f32 = jnp.float32
    Ho, Wo = H // 2, W // 2
    HP, WP = xpad_ref.shape[1], xpad_ref.shape[2]
    RS = _ru8(Ho + 1)   # rows of decimated planes
    CS = _ru8(Wo + 1)   # cols of decimated planes

    # ---- in-kernel zero padding (borders stay 0, interiors overwritten) ----
    xpad_ref[...] = jnp.zeros_like(xpad_ref)
    x1p_ref[...] = jnp.zeros_like(x1p_ref)
    f1p_ref[...] = jnp.zeros_like(f1p_ref)
    for ci in range(inch):
        xpad_ref[ci, 1:H + 1, 1:W + 1] = x_ref[0, ci, :, :].astype(f32)

    # ---- conv2: 3x3, stride 2, pad 1, computed directly at (Ho, Wo) ----
    # out[y,x] = sum_{kh,kw} w * P[2y+kh, 2x+kw];  even/odd decimated planes of
    # the padded image P are built with selection matmuls (MXU), then every tap
    # is a unit-offset static slice of a decimated plane.
    row_e = _row_sel(RS, HP, 0)
    row_o = _row_sel(RS, HP, 1)
    col_e = _col_sel(WP, CS, 0)
    col_o = _col_sel(WP, CS, 1)

    taps2 = []
    for ci in range(inch):
        p = xpad_ref[ci, :, :]
        pe = jnp.dot(row_e, p, preferred_element_type=f32)    # rows 0,2,4,...
        po = jnp.dot(row_o, p, preferred_element_type=f32)    # rows 1,3,5,...
        pee = jnp.dot(pe, col_e, preferred_element_type=f32)  # P[2m, 2n]
        peo = jnp.dot(pe, col_o, preferred_element_type=f32)  # P[2m, 2n+1]
        poe = jnp.dot(po, col_e, preferred_element_type=f32)  # P[2m+1, 2n]
        poo = jnp.dot(po, col_o, preferred_element_type=f32)  # P[2m+1, 2n+1]
        taps2.append({
            (0, 0): pee[0:Ho, 0:Wo],
            (0, 1): peo[0:Ho, 0:Wo],
            (0, 2): pee[0:Ho, 1:Wo + 1],
            (1, 0): poe[0:Ho, 0:Wo],
            (1, 1): poo[0:Ho, 0:Wo],
            (1, 2): poe[0:Ho, 1:Wo + 1],
            (2, 0): pee[1:Ho + 1, 0:Wo],
            (2, 1): peo[1:Ho + 1, 0:Wo],
            (2, 2): pee[1:Ho + 1, 1:Wo + 1],
        })

    # conv2 accumulation fused with GroupNorm(3,3) (groups == channels, biased
    # variance like PyTorch) and ReLU; result written into padded x1 scratch.
    for co in range(inch):
        acc = jnp.zeros((Ho, Wo), f32)
        for ci in range(inch):
            for kh in range(3):
                for kw in range(3):
                    wv = w2_ref[((co * inch + ci) * 3 + kh) * 3 + kw]
                    acc = acc + wv * taps2[ci][(kh, kw)]
        mean = jnp.mean(acc)
        var = jnp.mean(jnp.square(acc - mean))
        y = (acc - mean) * jax.lax.rsqrt(var + eps) * g_ref[co] + b_ref[co]
        x1p_ref[co, 1:Ho + 1, 1:Wo + 1] = jnp.maximum(y, 0.0)

    # ---- fea1 = f_transformer(x, x1) ----
    # TODO(synk): PyramidVision_Conv_Transformer is not defined in the reference
    # source; stand-in is a single 3x3 stride-1 conv projecting x1 -> ncat channels.
    taps1 = []
    for ci in range(inch):
        t = {}
        for kh in range(3):
            for kw in range(3):
                t[(kh, kw)] = x1p_ref[ci, kh:kh + Ho, kw:kw + Wo]
        taps1.append(t)
    for co in range(ncat):
        acc = jnp.zeros((Ho, Wo), f32)
        for ci in range(inch):
            for kh in range(3):
                for kw in range(3):
                    wv = wf_ref[((co * inch + ci) * 3 + kh) * 3 + kw]
                    acc = acc + wv * taps1[ci][(kh, kw)]
        f1p_ref[co, 1:Ho + 1, 1:Wo + 1] = acc

    # ---- out_1 = conv3(fea1): 3x3, stride 1, pad 1, ncat -> ncat ----
    taps3 = []
    for ci in range(ncat):
        t = {}
        for kh in range(3):
            for kw in range(3):
                t[(kh, kw)] = f1p_ref[ci, kh:kh + Ho, kw:kw + Wo]
        taps3.append(t)
    for co in range(ncat):
        acc = jnp.zeros((Ho, Wo), f32)
        for ci in range(ncat):
            for kh in range(3):
                for kw in range(3):
                    wv = w3_ref[((co * ncat + ci) * 3 + kh) * 3 + kw]
                    acc = acc + wv * taps3[ci][(kh, kw)]
        o_ref[0, co, :, :] = acc.astype(o_ref.dtype)


# ----------------------------------------------------------------------------
# Wrapper / params / reference
# ----------------------------------------------------------------------------
def init_ddnet_params(key, inchannel=3, num_category=4):
    k = jax.random.split(key, 5)
    s = 0.1
    return {
        "conv2_w": s * jax.random.normal(k[0], (inchannel, inchannel, 3, 3), jnp.float32),
        "gn1_gamma": 1.0 + s * jax.random.normal(k[1], (inchannel,), jnp.float32),
        "gn1_beta": s * jax.random.normal(k[2], (inchannel,), jnp.float32),
        # TODO(synk): placeholder for PyramidVision_Conv_Transformer (see kernel).
        "ftr_w": s * jax.random.normal(k[3], (num_category, inchannel, 3, 3), jnp.float32),
        "conv3_w": s * jax.random.normal(k[4], (num_category, num_category, 3, 3), jnp.float32),
    }


def ddnet_forward(params, x, num_category=4, eps=1e-5):
    B, C, H, W = x.shape
    assert C == 3, "gn1 = GroupNorm(3, 3) implies inchannel == 3"
    assert H % 2 == 0 and W % 2 == 0
    Ho, Wo = H // 2, W // 2
    kernel = functools.partial(_ddnet_kernel, H, W, C, num_category, eps)
    return pl.pallas_call(
        kernel,
        out_shape=jax.ShapeDtypeStruct((B, num_category, Ho, Wo), x.dtype),
        grid=(B,),
        in_specs=[
            pl.BlockSpec(memory_space=pltpu.MemorySpace.SMEM),   # conv2 weights (flat)
            pl.BlockSpec(memory_space=pltpu.MemorySpace.SMEM),   # ftr weights (flat)
            pl.BlockSpec(memory_space=pltpu.MemorySpace.SMEM),   # conv3 weights (flat)
            pl.BlockSpec(memory_space=pltpu.MemorySpace.SMEM),   # gn gamma
            pl.BlockSpec(memory_space=pltpu.MemorySpace.SMEM),   # gn beta
            pl.BlockSpec((1, C, H, W), lambda b: (b, 0, 0, 0)),  # x
        ],
        out_specs=pl.BlockSpec((1, num_category, Ho, Wo), lambda b: (b, 0, 0, 0)),
        scratch_shapes=[
            pltpu.VMEM((C, _ru8(H + 2), _ru8(W + 2)), jnp.float32),             # padded x
            pltpu.VMEM((C, _ru8(Ho + 2), _ru8(Wo + 2)), jnp.float32),           # padded x1
            pltpu.VMEM((num_category, _ru8(Ho + 2), _ru8(Wo + 2)), jnp.float32),  # padded fea1
        ],
        compiler_params=pltpu.CompilerParams(dimension_semantics=("parallel",)),
    )(params["conv2_w"].reshape(-1), params["ftr_w"].reshape(-1),
      params["conv3_w"].reshape(-1), params["gn1_gamma"], params["gn1_beta"], x)


# pure-JAX reference (sanity check)
def _ref_conv3x3(x, w, stride=1):
    return jax.lax.conv_general_dilated(
        x, w, (stride, stride), ((1, 1), (1, 1)),
        dimension_numbers=("NCHW", "OIHW", "NCHW"))


def _ref_gn_relu(x, gamma, beta, ng, eps=1e-5):
    B, C, H, W = x.shape
    xg = x.reshape(B, ng, (C // ng) * H * W)
    mean = xg.mean(-1, keepdims=True)
    var = ((xg - mean) ** 2).mean(-1, keepdims=True)
    y = ((xg - mean) / jnp.sqrt(var + eps)).reshape(B, C, H, W)
    y = y * gamma[None, :, None, None] + beta[None, :, None, None]
    return jnp.maximum(y, 0.0)


if __name__ == "__main__":
    key = jax.random.PRNGKey(0)
    kx, kp = jax.random.split(key)

    B, C, H, W = 2, 3, 16, 16          # gn1 = GroupNorm(3, 3) => inchannel must be 3
    x = jax.random.normal(kx, (B, C, H, W), jnp.float32)
    params = init_ddnet_params(kp, inchannel=C, num_category=4)

    fwd = jax.jit(ddnet_forward)
    out = jax.block_until_ready(fwd(params, x))

    # sanity check against plain-JAX reference of the same graph
    x1_ref = _ref_gn_relu(_ref_conv3x3(x, params["conv2_w"], 2),
                          params["gn1_gamma"], params["gn1_beta"], 3)
    fea1_ref = _ref_conv3x3(x1_ref, params["ftr_w"], 1)
    out_ref = _ref_conv3x3(fea1_ref, params["conv3_w"], 1)

    assert out.shape == (B, 4, H // 2, W // 2), out.shape
    assert jnp.allclose(out, out_ref, atol=1e-4, rtol=1e-4)

    print("KERNEL_OK")
</pallas_src>

<mosaic_0001>
module attributes {stable_mosaic.version = 11 : i64} {
  func.func @_ddnet_kernel(%arg0: i32, %arg1: memref<81xf32, #tpu.memory_space<smem>>, %arg2: memref<108xf32, #tpu.memory_space<smem>>, %arg3: memref<144xf32, #tpu.memory_space<smem>>, %arg4: memref<3xf32, #tpu.memory_space<smem>>, %arg5: memref<3xf32, #tpu.memory_space<smem>>, %arg6: memref<1x3x16x16xf32, #tpu.memory_space<vmem>>, %arg7: memref<1x4x8x8xf32, #tpu.memory_space<vmem>>, %arg8: memref<3x24x24xf32, #tpu.memory_space<vmem>>, %arg9: memref<3x16x16xf32, #tpu.memory_space<vmem>>, %arg10: memref<4x16x16xf32, #tpu.memory_space<vmem>>) attributes {dimension_semantics = [#tpu.dimension_semantics<parallel>], iteration_bounds = array<i64: 2>, scalar_prefetch = 0 : i64, scratch_operands = 3 : i64, tpu.core_type = #tpu.core_type<tc>, window_params = [{transform_indices = @transform_0, window_bounds = array<i64: 81>}, {transform_indices = @transform_1, window_bounds = array<i64: 108>}, {transform_indices = @transform_2, window_bounds = array<i64: 144>}, {transform_indices = @transform_3, window_bounds = array<i64: 3>}, {transform_indices = @transform_4, window_bounds = array<i64: 3>}, {transform_indices = @transform_5, window_bounds = array<i64: 1, 3, 16, 16>}, {transform_indices = @transform_6, window_bounds = array<i64: 1, 4, 8, 8>}]} {
    %cst = arith.constant 0.000000e+00 : f32
    %0 = vector.broadcast %cst : f32 to vector<3x24x24xf32>
    %c0 = arith.constant 0 : index
    %c0_0 = arith.constant 0 : index
    %c0_1 = arith.constant 0 : index
    %1 = vector.load %arg8[%c0, %c0_0, %c0_1] : memref<3x24x24xf32, #tpu.memory_space<vmem>>, vector<3x24x24xf32>
    tpu.vector_store %arg8[%c0, %c0_0, %c0_1], %0 {strides = array<i32>} : memref<3x24x24xf32, #tpu.memory_space<vmem>>, vector<3x24x24xf32>,
    %cst_2 = arith.constant 0.000000e+00 : f32
    %2 = vector.broadcast %cst_2 : f32 to vector<3x16x16xf32>
    %c0_3 = arith.constant 0 : index
    %c0_4 = arith.constant 0 : index
    %c0_5 = arith.constant 0 : index
    %3 = vector.load %arg9[%c0_3, %c0_4, %c0_5] : memref<3x16x16xf32, #tpu.memory_space<vmem>>, vector<3x16x16xf32>
    tpu.vector_store %arg9[%c0_3, %c0_4, %c0_5], %2 {strides = array<i32>} : memref<3x16x16xf32, #tpu.memory_space<vmem>>, vector<3x16x16xf32>,
    %cst_6 = arith.constant 0.000000e+00 : f32
    %4 = vector.broadcast %cst_6 : f32 to vector<4x16x16xf32>
    %c0_7 = arith.constant 0 : index
    %c0_8 = arith.constant 0 : index
    %c0_9 = arith.constant 0 : index
    %5 = vector.load %arg10[%c0_7, %c0_8, %c0_9] : memref<4x16x16xf32, #tpu.memory_space<vmem>>, vector<4x16x16xf32>
    tpu.vector_store %arg10[%c0_7, %c0_8, %c0_9], %4 {strides = array<i32>} : memref<4x16x16xf32, #tpu.memory_space<vmem>>, vector<4x16x16xf32>,
    %c0_10 = arith.constant 0 : index
    %c0_11 = arith.constant 0 : index
    %c0_12 = arith.constant 0 : index
    %c0_13 = arith.constant 0 : index
    %6 = vector.load %arg6[%c0_10, %c0_11, %c0_12, %c0_13] : memref<1x3x16x16xf32, #tpu.memory_space<vmem>>, vector<1x1x16x16xf32>
    %7 = vector.shape_cast %6 : vector<1x1x16x16xf32> to vector<16x16xf32>
    %c0_14 = arith.constant 0 : index
    %c1 = arith.constant 1 : index
    %c1_15 = arith.constant 1 : index
    %8 = vector.load %arg8[%c0_14, %c1, %c1_15] : memref<3x24x24xf32, #tpu.memory_space<vmem>>, vector<1x16x16xf32>
    %9 = vector.shape_cast %8 : vector<1x16x16xf32> to vector<16x16xf32>
    %10 = vector.shape_cast %7 : vector<16x16xf32> to vector<1x16x16xf32>
    tpu.vector_store %arg8[%c0_14, %c1, %c1_15], %10 {strides = array<i32>} : memref<3x24x24xf32, #tpu.memory_space<vmem>>, vector<1x16x16xf32>,
    %c0_16 = arith.constant 0 : index
    %c1_17 = arith.constant 1 : index
    %c0_18 = arith.constant 0 : index
    %c0_19 = arith.constant 0 : index
    %11 = vector.load %arg6[%c0_16, %c1_17, %c0_18, %c0_19] : memref<1x3x16x16xf32, #tpu.memory_space<vmem>>, vector<1x1x16x16xf32>
    %12 = vector.shape_cast %11 : vector<1x1x16x16xf32> to vector<16x16xf32>
    %c1_20 = arith.constant 1 : index
    %c1_21 = arith.constant 1 : index
    %c1_22 = arith.constant 1 : index
    %13 = vector.load %arg8[%c1_20, %c1_21, %c1_22] : memref<3x24x24xf32, #tpu.memory_space<vmem>>, vector<1x16x16xf32>
    %14 = vector.shape_cast %13 : vector<1x16x16xf32> to vector<16x16xf32>
    %15 = vector.shape_cast %12 : vector<16x16xf32> to vector<1x16x16xf32>
    tpu.vector_store %arg8[%c1_20, %c1_21, %c1_22], %15 {strides = array<i32>} : memref<3x24x24xf32, #tpu.memory_space<vmem>>, vector<1x16x16xf32>,
    %c0_23 = arith.constant 0 : index
    %c2 = arith.constant 2 : index
    %c0_24 = arith.constant 0 : index
    %c0_25 = arith.constant 0 : index
    %16 = vector.load %arg6[%c0_23, %c2, %c0_24, %c0_25] : memref<1x3x16x16xf32, #tpu.memory_space<vmem>>, vector<1x1x16x16xf32>
    %17 = vector.shape_cast %16 : vector<1x1x16x16xf32> to vector<16x16xf32>
    %c2_26 = arith.constant 2 : index
    %c1_27 = arith.constant 1 : index
    %c1_28 = arith.constant 1 : index
    %18 = vector.load %arg8[%c2_26, %c1_27, %c1_28] : memref<3x24x24xf32, #tpu.memory_space<vmem>>, vector<1x16x16xf32>
    %19 = vector.shape_cast %18 : vector<1x16x16xf32> to vector<16x16xf32>
    %20 = vector.shape_cast %17 : vector<16x16xf32> to vector<1x16x16xf32>
    tpu.vector_store %arg8[%c2_26, %c1_27, %c1_28], %20 {strides = array<i32>} : memref<3x24x24xf32, #tpu.memory_space<vmem>>, vector<1x16x16xf32>,
    %21 = tpu.iota {dimensions = array<i32: 0>} : vector<16x24xi32>
    %22 = tpu.iota {dimensions = array<i32: 1>} : vector<16x24xi32>
    %c2_i32 = arith.constant 2 : i32
    %23 = vector.broadcast %c2_i32 : i32 to vector<16x24xi32>
    %24 = arith.muli %23, %21 : vector<16x24xi32>
    %c0_i32 = arith.constant 0 : i32
    %25 = vector.broadcast %c0_i32 : i32 to vector<16x24xi32>
    %26 = arith.addi %24, %25 : vector<16x24xi32>
    %27 = arith.cmpi eq, %22, %26 : vector<16x24xi32>
    %28 = arith.extui %27 : vector<16x24xi1> to vector<16x24xi32>
    %29 = arith.sitofp %28 : vector<16x24xi32> to vector<16x24xf32>
    %30 = tpu.iota {dimensions = array<i32: 0>} : vector<16x24xi32>
    %31 = tpu.iota {dimensions = array<i32: 1>} : vector<16x24xi32>
    %c2_i32_29 = arith.constant 2 : i32
    %32 = vector.broadcast %c2_i32_29 : i32 to vector<16x24xi32>
    %33 = arith.muli %32, %30 : vector<16x24xi32>
    %c1_i32 = arith.constant 1 : i32
    %34 = vector.broadcast %c1_i32 : i32 to vector<16x24xi32>
    %35 = arith.addi %33, %34 : vector<16x24xi32>
    %36 = arith.cmpi eq, %31, %35 : vector<16x24xi32>
    %37 = arith.extui %36 : vector<16x24xi1> to vector<16x24xi32>
    %38 = arith.sitofp %37 : vector<16x24xi32> to vector<16x24xf32>
    %39 = tpu.iota {dimensions = array<i32: 0>} : vector<24x16xi32>
    %40 = tpu.iota {dimensions = array<i32: 1>} : vector<24x16xi32>
    %c2_i32_30 = arith.constant 2 : i32
    %41 = vector.broadcast %c2_i32_30 : i32 to vector<24x16xi32>
    %42 = arith.muli %41, %40 : vector<24x16xi32>
    %c0_i32_31 = arith.constant 0 : i32
    %43 = vector.broadcast %c0_i32_31 : i32 to vector<24x16xi32>
    %44 = arith.addi %42, %43 : vector<24x16xi32>
    %45 = arith.cmpi eq, %39, %44 : vector<24x16xi32>
    %46 = arith.extui %45 : vector<24x16xi1> to vector<24x16xi32>
    %47 = arith.sitofp %46 : vector<24x16xi32> to vector<24x16xf32>
    %48 = tpu.iota {dimensions = array<i32: 0>} : vector<24x16xi32>
    %49 = tpu.iota {dimensions = array<i32: 1>} : vector<24x16xi32>
    %c2_i32_32 = arith.constant 2 : i32
    %50 = vector.broadcast %c2_i32_32 : i32 to vector<24x16xi32>
    %51 = arith.muli %50, %49 : vector<24x16xi32>
    %c1_i32_33 = arith.constant 1 : i32
    %52 = vector.broadcast %c1_i32_33 : i32 to vector<24x16xi32>
    %53 = arith.addi %51, %52 : vector<24x16xi32>
    %54 = arith.cmpi eq, %48, %53 : vector<24x16xi32>
    %55 = arith.extui %54 : vector<24x16xi1> to vector<24x16xi32>
    %56 = arith.sitofp %55 : vector<24x16xi32> to vector<24x16xf32>
    %c0_34 = arith.constant 0 : index
    %c0_35 = arith.constant 0 : index
    %c0_36 = arith.constant 0 : index
    %57 = vector.load %arg8[%c0_34, %c0_35, %c0_36] : memref<3x24x24xf32, #tpu.memory_space<vmem>>, vector<1x24x24xf32>
    %58 = vector.shape_cast %57 : vector<1x24x24xf32> to vector<24x24xf32>
    %cst_37 = arith.constant dense<0.000000e+00> : vector<16x24xf32>
    %59 = tpu.matmul %29, %58, %cst_37 {dimension_numbers = #tpu.dot_dimension_numbers<[1], [0], [0], [1], [0, 0, 1, 1], [], []>} : vector<16x24xf32>, vector<24x24xf32>, vector<16x24xf32> -> vector<16x24xf32>
    %cst_38 = arith.constant dense<0.000000e+00> : vector<16x24xf32>
    %60 = tpu.matmul %38, %58, %cst_38 {dimension_numbers = #tpu.dot_dimension_numbers<[1], [0], [0], [1], [0, 0, 1, 1], [], []>} : vector<16x24xf32>, vector<24x24xf32>, vector<16x24xf32> -> vector<16x24xf32>
    %cst_39 = arith.constant dense<0.000000e+00> : vector<16x16xf32>
    %61 = tpu.matmul %59, %47, %cst_39 {dimension_numbers = #tpu.dot_dimension_numbers<[1], [0], [0], [1], [0, 0, 1, 1], [], []>} : vector<16x24xf32>, vector<24x16xf32>, vector<16x16xf32> -> vector<16x16xf32>
    %cst_40 = arith.constant dense<0.000000e+00> : vector<16x16xf32>
    %62 = tpu.matmul %59, %56, %cst_40 {dimension_numbers = #tpu.dot_dimension_numbers<[1], [0], [0], [1], [0, 0, 1, 1], [], []>} : vector<16x24xf32>, vector<24x16xf32>, vector<16x16xf32> -> vector<16x16xf32>
    %cst_41 = arith.constant dense<0.000000e+00> : vector<16x16xf32>
    %63 = tpu.matmul %60, %47, %cst_41 {dimension_numbers = #tpu.dot_dimension_numbers<[1], [0], [0], [1], [0, 0, 1, 1], [], []>} : vector<16x24xf32>, vector<24x16xf32>, vector<16x16xf32> -> vector<16x16xf32>
    %cst_42 = arith.constant dense<0.000000e+00> : vector<16x16xf32>
    %64 = tpu.matmul %60, %56, %cst_42 {dimension_numbers = #tpu.dot_dimension_numbers<[1], [0], [0], [1], [0, 0, 1, 1], [], []>} : vector<16x24xf32>, vector<24x16xf32>, vector<16x16xf32> -> vector<16x16xf32>
    %65 = vector.extract_strided_slice %61 {offsets = [0, 0], sizes = [8, 8], strides = [1, 1]} : vector<16x16xf32> to vector<8x8xf32>
    %66 = vector.extract_strided_slice %62 {offsets = [0, 0], sizes = [8, 8], strides = [1, 1]} : vector<16x16xf32> to vector<8x8xf32>
    %67 = vector.extract_strided_slice %61 {offsets = [0, 1], sizes = [8, 8], strides = [1, 1]} : vector<16x16xf32> to vector<8x8xf32>
    %68 = vector.extract_strided_slice %63 {offsets = [0, 0], sizes = [8, 8], strides = [1, 1]} : vector<16x16xf32> to vector<8x8xf32>
    %69 = vector.extract_strided_slice %64 {offsets = [0, 0], sizes = [8, 8], strides = [1, 1]} : vector<16x16xf32> to vector<8x8xf32>
    %70 = vector.extract_strided_slice %63 {offsets = [0, 1], sizes = [8, 8], strides = [1, 1]} : vector<16x16xf32> to vector<8x8xf32>
    %71 = vector.extract_strided_slice %61 {offsets = [1, 0], sizes = [8, 8], strides = [1, 1]} : vector<16x16xf32> to vector<8x8xf32>
    %72 = vector.extract_strided_slice %62 {offsets = [1, 0], sizes = [8, 8], strides = [1, 1]} : vector<16x16xf32> to vector<8x8xf32>
    %73 = vector.extract_strided_slice %61 {offsets = [1, 1], sizes = [8, 8], strides = [1, 1]} : vector<16x16xf32> to vector<8x8xf32>
    %c1_43 = arith.constant 1 : index
    %c0_44 = arith.constant 0 : index
    %c0_45 = arith.constant 0 : index
    %74 = vector.load %arg8[%c1_43, %c0_44, %c0_45] : memref<3x24x24xf32, #tpu.memory_space<vmem>>, vector<1x24x24xf32>
    %75 = vector.shape_cast %74 : vector<1x24x24xf32> to vector<24x24xf32>
    %cst_46 = arith.constant dense<0.000000e+00> : vector<16x24xf32>
    %76 = tpu.matmul %29, %75, %cst_46 {dimension_numbers = #tpu.dot_dimension_numbers<[1], [0], [0], [1], [0, 0, 1, 1], [], []>} : vector<16x24xf32>, vector<24x24xf32>, vector<16x24xf32> -> vector<16x24xf32>
    %cst_47 = arith.constant dense<0.000000e+00> : vector<16x24xf32>
    %77 = tpu.matmul %38, %75, %cst_47 {dimension_numbers = #tpu.dot_dimension_numbers<[1], [0], [0], [1], [0, 0, 1, 1], [], []>} : vector<16x24xf32>, vector<24x24xf32>, vector<16x24xf32> -> vector<16x24xf32>
    %cst_48 = arith.constant dense<0.000000e+00> : vector<16x16xf32>
    %78 = tpu.matmul %76, %47, %cst_48 {dimension_numbers = #tpu.dot_dimension_numbers<[1], [0], [0], [1], [0, 0, 1, 1], [], []>} : vector<16x24xf32>, vector<24x16xf32>, vector<16x16xf32> -> vector<16x16xf32>
    %cst_49 = arith.constant dense<0.000000e+00> : vector<16x16xf32>
    %79 = tpu.matmul %76, %56, %cst_49 {dimension_numbers = #tpu.dot_dimension_numbers<[1], [0], [0], [1], [0, 0, 1, 1], [], []>} : vector<16x24xf32>, vector<24x16xf32>, vector<16x16xf32> -> vector<16x16xf32>
    %cst_50 = arith.constant dense<0.000000e+00> : vector<16x16xf32>
    %80 = tpu.matmul %77, %47, %cst_50 {dimension_numbers = #tpu.dot_dimension_numbers<[1], [0], [0], [1], [0, 0, 1, 1], [], []>} : vector<16x24xf32>, vector<24x16xf32>, vector<16x16xf32> -> vector<16x16xf32>
    %cst_51 = arith.constant dense<0.000000e+00> : vector<16x16xf32>
    %81 = tpu.matmul %77, %56, %cst_51 {dimension_numbers = #tpu.dot_dimension_numbers<[1], [0], [0], [1], [0, 0, 1, 1], [], []>} : vector<16x24xf32>, vector<24x16xf32>, vector<16x16xf32> -> vector<16x16xf32>
    %82 = vector.extract_strided_slice %78 {offsets = [0, 0], sizes = [8, 8], strides = [1, 1]} : vector<16x16xf32> to vector<8x8xf32>
    %83 = vector.extract_strided_slice %79 {offsets = [0, 0], sizes = [8, 8], strides = [1, 1]} : vector<16x16xf32> to vector<8x8xf32>
    %84 = vector.extract_strided_slice %78 {offsets = [0, 1], sizes = [8, 8], strides = [1, 1]} : vector<16x16xf32> to vector<8x8xf32>
    %85 = vector.extract_strided_slice %80 {offsets = [0, 0], sizes = [8, 8], strides = [1, 1]} : vector<16x16xf32> to vector<8x8xf32>
    %86 = vector.extract_strided_slice %81 {offsets = [0, 0], sizes = [8, 8], strides = [1, 1]} : vector<16x16xf32> to vector<8x8xf32>
    %87 = vector.extract_strided_slice %80 {offsets = [0, 1], sizes = [8, 8], strides = [1, 1]} : vector<16x16xf32> to vector<8x8xf32>
    %88 = vector.extract_strided_slice %78 {offsets = [1, 0], sizes = [8, 8], strides = [1, 1]} : vector<16x16xf32> to vector<8x8xf32>
    %89 = vector.extract_strided_slice %79 {offsets = [1, 0], sizes = [8, 8], strides = [1, 1]} : vector<16x16xf32> to vector<8x8xf32>
    %90 = vector.extract_strided_slice %78 {offsets = [1, 1], sizes = [8, 8], strides = [1, 1]} : vector<16x16xf32> to vector<8x8xf32>
    %c2_52 = arith.constant 2 : index
    %c0_53 = arith.constant 0 : index
    %c0_54 = arith.constant 0 : index
    %91 = vector.load %arg8[%c2_52, %c0_53, %c0_54] : memref<3x24x24xf32, #tpu.memory_space<vmem>>, vector<1x24x24xf32>
    %92 = vector.shape_cast %91 : vector<1x24x24xf32> to vector<24x24xf32>
    %cst_55 = arith.constant dense<0.000000e+00> : vector<16x24xf32>
    %93 = tpu.matmul %29, %92, %cst_55 {dimension_numbers = #tpu.dot_dimension_numbers<[1], [0], [0], [1], [0, 0, 1, 1], [], []>} : vector<16x24xf32>, vector<24x24xf32>, vector<16x24xf32> -> vector<16x24xf32>
    %cst_56 = arith.constant dense<0.000000e+00> : vector<16x24xf32>
    %94 = tpu.matmul %38, %92, %cst_56 {dimension_numbers = #tpu.dot_dimension_numbers<[1], [0], [0], [1], [0, 0, 1, 1], [], []>} : vector<16x24xf32>, vector<24x24xf32>, vector<16x24xf32> -> vector<16x24xf32>
    %cst_57 = arith.constant dense<0.000000e+00> : vector<16x16xf32>
    %95 = tpu.matmul %93, %47, %cst_57 {dimension_numbers = #tpu.dot_dimension_numbers<[1], [0], [0], [1], [0, 0, 1, 1], [], []>} : vector<16x24xf32>, vector<24x16xf32>, vector<16x16xf32> -> vector<16x16xf32>
    %cst_58 = arith.constant dense<0.000000e+00> : vector<16x16xf32>
    %96 = tpu.matmul %93, %56, %cst_58 {dimension_numbers = #tpu.dot_dimension_numbers<[1], [0], [0], [1], [0, 0, 1, 1], [], []>} : vector<16x24xf32>, vector<24x16xf32>, vector<16x16xf32> -> vector<16x16xf32>
    %cst_59 = arith.constant dense<0.000000e+00> : vector<16x16xf32>
    %97 = tpu.matmul %94, %47, %cst_59 {dimension_numbers = #tpu.dot_dimension_numbers<[1], [0], [0], [1], [0, 0, 1, 1], [], []>} : vector<16x24xf32>, vector<24x16xf32>, vector<16x16xf32> -> vector<16x16xf32>
    %cst_60 = arith.constant dense<0.000000e+00> : vector<16x16xf32>
    %98 = tpu.matmul %94, %56, %cst_60 {dimension_numbers = #tpu.dot_dimension_numbers<[1], [0], [0], [1], [0, 0, 1, 1], [], []>} : vector<16x24xf32>, vector<24x16xf32>, vector<16x16xf32> -> vector<16x16xf32>
    %99 = vector.extract_strided_slice %95 {offsets = [0, 0], sizes = [8, 8], strides = [1, 1]} : vector<16x16xf32> to vector<8x8xf32>
    %100 = vector.extract_strided_slice %96 {offsets = [0, 0], sizes = [8, 8], strides = [1, 1]} : vector<16x16xf32> to vector<8x8xf32>
    %101 = vector.extract_strided_slice %95 {offsets = [0, 1], sizes = [8, 8], strides = [1, 1]} : vector<16x16xf32> to vector<8x8xf32>
    %102 = vector.extract_strided_slice %97 {offsets = [0, 0], sizes = [8, 8], strides = [1, 1]} : vector<16x16xf32> to vector<8x8xf32>
    %103 = vector.extract_strided_slice %98 {offsets = [0, 0], sizes = [8, 8], strides = [1, 1]} : vector<16x16xf32> to vector<8x8xf32>
    %104 = vector.extract_strided_slice %97 {offsets = [0, 1], sizes = [8, 8], strides = [1, 1]} : vector<16x16xf32> to vector<8x8xf32>
    %105 = vector.extract_strided_slice %95 {offsets = [1, 0], sizes = [8, 8], strides = [1, 1]} : vector<16x16xf32> to vector<8x8xf32>
    %106 = vector.extract_strided_slice %96 {offsets = [1, 0], sizes = [8, 8], strides = [1, 1]} : vector<16x16xf32> to vector<8x8xf32>
    %107 = vector.extract_strided_slice %95 {offsets = [1, 1], sizes = [8, 8], strides = [1, 1]} : vector<16x16xf32> to vector<8x8xf32>
    %cst_61 = arith.constant 0.000000e+00 : f32
    %108 = vector.broadcast %cst_61 : f32 to vector<8x8xf32>
    %c0_62 = arith.constant 0 : index
    %109 = memref.load %arg1[%c0_62] : memref<81xf32, #tpu.memory_space<smem>>
    %110 = vector.broadcast %109 : f32 to vector<8x8xf32>
    %111 = arith.mulf %110, %65 : vector<8x8xf32>
    %112 = arith.addf %108, %111 : vector<8x8xf32>
    %c1_63 = arith.constant 1 : index
    %113 = memref.load %arg1[%c1_63] : memref<81xf32, #tpu.memory_space<smem>>
    %114 = vector.broadcast %113 : f32 to vector<8x8xf32>
    %115 = arith.mulf %114, %66 : vector<8x8xf32>
    %116 = arith.addf %112, %115 : vector<8x8xf32>
    %c2_64 = arith.constant 2 : index
    %117 = memref.load %arg1[%c2_64] : memref<81xf32, #tpu.memory_space<smem>>
    %118 = vector.broadcast %117 : f32 to vector<8x8xf32>
    %119 = arith.mulf %118, %67 : vector<8x8xf32>
    %120 = arith.addf %116, %119 : vector<8x8xf32>
    %c3 = arith.constant 3 : index
    %121 = memref.load %arg1[%c3] : memref<81xf32, #tpu.memory_space<smem>>
    %122 = vector.broadcast %121 : f32 to vector<8x8xf32>
    %123 = arith.mulf %122, %68 : vector<8x8xf32>
    %124 = arith.addf %120, %123 : vector<8x8xf32>
    %c4 = arith.constant 4 : index
    %125 = memref.load %arg1[%c4] : memref<81xf32, #tpu.memory_space<smem>>
    %126 = vector.broadcast %125 : f32 to vector<8x8xf32>
    %127 = arith.mulf %126, %69 : vector<8x8xf32>
    %128 = arith.addf %124, %127 : vector<8x8xf32>
    %c5 = arith.constant 5 : index
    %129 = memref.load %arg1[%c5] : memref<81xf32, #tpu.memory_space<smem>>
    %130 = vector.broadcast %129 : f32 to vector<8x8xf32>
    %131 = arith.mulf %130, %70 : vector<8x8xf32>
    %132 = arith.addf %128, %131 : vector<8x8xf32>
    %c6 = arith.constant 6 : index
    %133 = memref.load %arg1[%c6] : memref<81xf32, #tpu.memory_space<smem>>
    %134 = vector.broadcast %133 : f32 to vector<8x8xf32>
    %135 = arith.mulf %134, %71 : vector<8x8xf32>
    %136 = arith.addf %132, %135 : vector<8x8xf32>
    %c7 = arith.constant 7 : index
    %137 = memref.load %arg1[%c7] : memref<81xf32, #tpu.memory_space<smem>>
    %138 = vector.broadcast %137 : f32 to vector<8x8xf32>
    %139 = arith.mulf %138, %72 : vector<8x8xf32>
    %140 = arith.addf %136, %139 : vector<8x8xf32>
    %c8 = arith.constant 8 : index
    %141 = memref.load %arg1[%c8] : memref<81xf32, #tpu.memory_space<smem>>
    %142 = vector.broadcast %141 : f32 to vector<8x8xf32>
    %143 = arith.mulf %142, %73 : vector<8x8xf32>
    %144 = arith.addf %140, %143 : vector<8x8xf32>
    %c9 = arith.constant 9 : index
    %145 = memref.load %arg1[%c9] : memref<81xf32, #tpu.memory_space<smem>>
    %146 = vector.broadcast %145 : f32 to vector<8x8xf32>
    %147 = arith.mulf %146, %82 : vector<8x8xf32>
    %148 = arith.addf %144, %147 : vector<8x8xf32>
    %c10 = arith.constant 10 : index
    %149 = memref.load %arg1[%c10] : memref<81xf32, #tpu.memory_space<smem>>
    %150 = vector.broadcast %149 : f32 to vector<8x8xf32>
    %151 = arith.mulf %150, %83 : vector<8x8xf32>
    %152 = arith.addf %148, %151 : vector<8x8xf32>
    %c11 = arith.constant 11 : index
    %153 = memref.load %arg1[%c11] : memref<81xf32, #tpu.memory_space<smem>>
    %154 = vector.broadcast %153 : f32 to vector<8x8xf32>
    %155 = arith.mulf %154, %84 : vector<8x8xf32>
    %156 = arith.addf %152, %155 : vector<8x8xf32>
    %c12 = arith.constant 12 : index
    %157 = memref.load %arg1[%c12] : memref<81xf32, #tpu.memory_space<smem>>
    %158 = vector.broadcast %157 : f32 to vector<8x8xf32>
    %159 = arith.mulf %158, %85 : vector<8x8xf32>
    %160 = arith.addf %156, %159 : vector<8x8xf32>
    %c13 = arith.constant 13 : index
    %161 = memref.load %arg1[%c13] : memref<81xf32, #tpu.memory_space<smem>>
    %162 = vector.broadcast %161 : f32 to vector<8x8xf32>
    %163 = arith.mulf %162, %86 : vector<8x8xf32>
    %164 = arith.addf %160, %163 : vector<8x8xf32>
    %c14 = arith.constant 14 : index
    %165 = memref.load %arg1[%c14] : memref<81xf32, #tpu.memory_space<smem>>
    %166 = vector.broadcast %165 : f32 to vector<8x8xf32>
    %167 = arith.mulf %166, %87 : vector<8x8xf32>
    %168 = arith.addf %164, %167 : vector<8x8xf32>
    %c15 = arith.constant 15 : index
    %169 = memref.load %arg1[%c15] : memref<81xf32, #tpu.memory_space<smem>>
    %170 = vector.broadcast %169 : f32 to vector<8x8xf32>
    %171 = arith.mulf %170, %88 : vector<8x8xf32>
    %172 = arith.addf %168, %171 : vector<8x8xf32>
    %c16 = arith.constant 16 : index
    %173 = memref.load %arg1[%c16] : memref<81xf32, #tpu.memory_space<smem>>
    %174 = vector.broadcast %173 : f32 to vector<8x8xf32>
    %175 = arith.mulf %174, %89 : vector<8x8xf32>
    %176 = arith.addf %172, %175 : vector<8x8xf32>
    %c17 = arith.constant 17 : index
    %177 = memref.load %arg1[%c17] : memref<81xf32, #tpu.memory_space<smem>>
    %178 = vector.broadcast %177 : f32 to vector<8x8xf32>
    %179 = arith.mulf %178, %90 : vector<8x8xf32>
    %180 = arith.addf %176, %179 : vector<8x8xf32>
    %c18 = arith.constant 18 : index
    %181 = memref.load %arg1[%c18] : memref<81xf32, #tpu.memory_space<smem>>
    %182 = vector.broadcast %181 : f32 to vector<8x8xf32>
    %183 = arith.mulf %182, %99 : vector<8x8xf32>
    %184 = arith.addf %180, %183 : vector<8x8xf32>
    %c19 = arith.constant 19 : index
    %185 = memref.load %arg1[%c19] : memref<81xf32, #tpu.memory_space<smem>>
    %186 = vector.broadcast %185 : f32 to vector<8x8xf32>
    %187 = arith.mulf %186, %100 : vector<8x8xf32>
    %188 = arith.addf %184, %187 : vector<8x8xf32>
    %c20 = arith.constant 20 : index
    %189 = memref.load %arg1[%c20] : memref<81xf32, #tpu.memory_space<smem>>
    %190 = vector.broadcast %189 : f32 to vector<8x8xf32>
    %191 = arith.mulf %190, %101 : vector<8x8xf32>
    %192 = arith.addf %188, %191 : vector<8x8xf32>
    %c21 = arith.constant 21 : index
    %193 = memref.load %arg1[%c21] : memref<81xf32, #tpu.memory_space<smem>>
    %194 = vector.broadcast %193 : f32 to vector<8x8xf32>
    %195 = arith.mulf %194, %102 : vector<8x8xf32>
    %196 = arith.addf %192, %195 : vector<8x8xf32>
    %c22 = arith.constant 22 : index
    %197 = memref.load %arg1[%c22] : memref<81xf32, #tpu.memory_space<smem>>
    %198 = vector.broadcast %197 : f32 to vector<8x8xf32>
    %199 = arith.mulf %198, %103 : vector<8x8xf32>
    %200 = arith.addf %196, %199 : vector<8x8xf32>
    %c23 = arith.constant 23 : index
    %201 = memref.load %arg1[%c23] : memref<81xf32, #tpu.memory_space<smem>>
    %202 = vector.broadcast %201 : f32 to vector<8x8xf32>
    %203 = arith.mulf %202, %104 : vector<8x8xf32>
    %204 = arith.addf %200, %203 : vector<8x8xf32>
    %c24 = arith.constant 24 : index
    %205 = memref.load %arg1[%c24] : memref<81xf32, #tpu.memory_space<smem>>
    %206 = vector.broadcast %205 : f32 to vector<8x8xf32>
    %207 = arith.mulf %206, %105 : vector<8x8xf32>
    %208 = arith.addf %204, %207 : vector<8x8xf32>
    %c25 = arith.constant 25 : index
    %209 = memref.load %arg1[%c25] : memref<81xf32, #tpu.memory_space<smem>>
    %210 = vector.broadcast %209 : f32 to vector<8x8xf32>
    %211 = arith.mulf %210, %106 : vector<8x8xf32>
    %212 = arith.addf %208, %211 : vector<8x8xf32>
    %c26 = arith.constant 26 : index
    %213 = memref.load %arg1[%c26] : memref<81xf32, #tpu.memory_space<smem>>
    %214 = vector.broadcast %213 : f32 to vector<8x8xf32>
    %215 = arith.mulf %214, %107 : vector<8x8xf32>
    %216 = arith.addf %212, %215 : vector<8x8xf32>
    %217 = vector.shape_cast %216 : vector<8x8xf32> to vector<1x8x8xf32>
    %cst_65 = arith.constant dense<0.000000e+00> : vector<1xf32>
    %218 = vector.multi_reduction <add>, %217, %cst_65 [1, 2] : vector<1x8x8xf32> to vector<1xf32>
    %219 = vector.shape_cast %218 : vector<1xf32> to vector<1x1x1xf32>
    %220 = vector.extract %219[0, 0, 0] : f32 from vector<1x1x1xf32>
    %cst_66 = arith.constant 6.400000e+01 : f32
    %221 = arith.divf %220, %cst_66 : f32
    %222 = vector.broadcast %221 : f32 to vector<8x8xf32>
    %223 = arith.subf %216, %222 : vector<8x8xf32>
    %224 = arith.mulf %223, %223 : vector<8x8xf32>
    %225 = vector.shape_cast %224 : vector<8x8xf32> to vector<1x8x8xf32>
    %cst_67 = arith.constant dense<0.000000e+00> : vector<1xf32>
    %226 = vector.multi_reduction <add>, %225, %cst_67 [1, 2] : vector<1x8x8xf32> to vector<1xf32>
    %227 = vector.shape_cast %226 : vector<1xf32> to vector<1x1x1xf32>
    %228 = vector.extract %227[0, 0, 0] : f32 from vector<1x1x1xf32>
    %cst_68 = arith.constant 6.400000e+01 : f32
    %229 = arith.divf %228, %cst_68 : f32
    %230 = vector.broadcast %221 : f32 to vector<8x8xf32>
    %231 = arith.subf %216, %230 : vector<8x8xf32>
    %cst_69 = arith.constant 9.99999974E-6 : f32
    %232 = arith.addf %229, %cst_69 : f32
    %233 = math.rsqrt %232 : f32
    %234 = vector.broadcast %233 : f32 to vector<8x8xf32>
    %235 = arith.mulf %231, %234 : vector<8x8xf32>
    %c0_70 = arith.constant 0 : index
    %236 = memref.load %arg4[%c0_70] : memref<3xf32, #tpu.memory_space<smem>>
    %237 = vector.broadcast %236 : f32 to vector<8x8xf32>
    %238 = arith.mulf %235, %237 : vector<8x8xf32>
    %c0_71 = arith.constant 0 : index
    %239 = memref.load %arg5[%c0_71] : memref<3xf32, #tpu.memory_space<smem>>
    %240 = vector.broadcast %239 : f32 to vector<8x8xf32>
    %241 = arith.addf %238, %240 : vector<8x8xf32>
    %cst_72 = arith.constant 0.000000e+00 : f32
    %242 = vector.broadcast %cst_72 : f32 to vector<8x8xf32>
    %243 = arith.maximumf %241, %242 : vector<8x8xf32>
    %c0_73 = arith.constant 0 : index
    %c1_74 = arith.constant 1 : index
    %c1_75 = arith.constant 1 : index
    %244 = vector.load %arg9[%c0_73, %c1_74, %c1_75] : memref<3x16x16xf32, #tpu.memory_space<vmem>>, vector<1x8x8xf32>
    %245 = vector.shape_cast %244 : vector<1x8x8xf32> to vector<8x8xf32>
    %246 = vector.shape_cast %243 : vector<8x8xf32> to vector<1x8x8xf32>
    tpu.vector_store %arg9[%c0_73, %c1_74, %c1_75], %246 {strides = array<i32>} : memref<3x16x16xf32, #tpu.memory_space<vmem>>, vector<1x8x8xf32>,
    %cst_76 = arith.constant 0.000000e+00 : f32
    %247 = vector.broadcast %cst_76 : f32 to vector<8x8xf32>
    %c27 = arith.constant 27 : index
    %248 = memref.load %arg1[%c27] : memref<81xf32, #tpu.memory_space<smem>>
    %249 = vector.broadcast %248 : f32 to vector<8x8xf32>
    %250 = arith.mulf %249, %65 : vector<8x8xf32>
    %251 = arith.addf %247, %250 : vector<8x8xf32>
    %c28 = arith.constant 28 : index
    %252 = memref.load %arg1[%c28] : memref<81xf32, #tpu.memory_space<smem>>
    %253 = vector.broadcast %252 : f32 to vector<8x8xf32>
    %254 = arith.mulf %253, %66 : vector<8x8xf32>
    %255 = arith.addf %251, %254 : vector<8x8xf32>
    %c29 = arith.constant 29 : index
    %256 = memref.load %arg1[%c29] : memref<81xf32, #tpu.memory_space<smem>>
    %257 = vector.broadcast %256 : f32 to vector<8x8xf32>
    %258 = arith.mulf %257, %67 : vector<8x8xf32>
    %259 = arith.addf %255, %258 : vector<8x8xf32>
    %c30 = arith.constant 30 : index
    %260 = memref.load %arg1[%c30] : memref<81xf32, #tpu.memory_space<smem>>
    %261 = vector.broadcast %260 : f32 to vector<8x8xf32>
    %262 = arith.mulf %261, %68 : vector<8x8xf32>
    %263 = arith.addf %259, %262 : vector<8x8xf32>
    %c31 = arith.constant 31 : index
    %264 = memref.load %arg1[%c31] : memref<81xf32, #tpu.memory_space<smem>>
    %265 = vector.broadcast %264 : f32 to vector<8x8xf32>
    %266 = arith.mulf %265, %69 : vector<8x8xf32>
    %267 = arith.addf %263, %266 : vector<8x8xf32>
    %c32 = arith.constant 32 : index
    %268 = memref.load %arg1[%c32] : memref<81xf32, #tpu.memory_space<smem>>
    %269 = vector.broadcast %268 : f32 to vector<8x8xf32>
    %270 = arith.mulf %269, %70 : vector<8x8xf32>
    %271 = arith.addf %267, %270 : vector<8x8xf32>
    %c33 = arith.constant 33 : index
    %272 = memref.load %arg1[%c33] : memref<81xf32, #tpu.memory_space<smem>>
    %273 = vector.broadcast %272 : f32 to vector<8x8xf32>
    %274 = arith.mulf %273, %71 : vector<8x8xf32>
    %275 = arith.addf %271, %274 : vector<8x8xf32>
    %c34 = arith.constant 34 : index
    %276 = memref.load %arg1[%c34] : memref<81xf32, #tpu.memory_space<smem>>
    %277 = vector.broadcast %276 : f32 to vector<8x8xf32>
    %278 = arith.mulf %277, %72 : vector<8x8xf32>
    %279 = arith.addf %275, %278 : vector<8x8xf32>
    %c35 = arith.constant 35 : index
    %280 = memref.load %arg1[%c35] : memref<81xf32, #tpu.memory_space<smem>>
    %281 = vector.broadcast %280 : f32 to vector<8x8xf32>
    %282 = arith.mulf %281, %73 : vector<8x8xf32>
    %283 = arith.addf %279, %282 : vector<8x8xf32>
    %c36 = arith.constant 36 : index
    %284 = memref.load %arg1[%c36] : memref<81xf32, #tpu.memory_space<smem>>
    %285 = vector.broadcast %284 : f32 to vector<8x8xf32>
    %286 = arith.mulf %285, %82 : vector<8x8xf32>
    %287 = arith.addf %283, %286 : vector<8x8xf32>
    %c37 = arith.constant 37 : index
    %288 = memref.load %arg1[%c37] : memref<81xf32, #tpu.memory_space<smem>>
    %289 = vector.broadcast %288 : f32 to vector<8x8xf32>
    %290 = arith.mulf %289, %83 : vector<8x8xf32>
    %291 = arith.addf %287, %290 : vector<8x8xf32>
    %c38 = arith.constant 38 : index
    %292 = memref.load %arg1[%c38] : memref<81xf32, #tpu.memory_space<smem>>
    %293 = vector.broadcast %292 : f32 to vector<8x8xf32>
    %294 = arith.mulf %293, %84 : vector<8x8xf32>
    %295 = arith.addf %291, %294 : vector<8x8xf32>
    %c39 = arith.constant 39 : index
    %296 = memref.load %arg1[%c39] : memref<81xf32, #tpu.memory_space<smem>>
    %297 = vector.broadcast %296 : f32 to vector<8x8xf32>
    %298 = arith.mulf %297, %85 : vector<8x8xf32>
    %299 = arith.addf %295, %298 : vector<8x8xf32>
    %c40 = arith.constant 40 : index
    %300 = memref.load %arg1[%c40] : memref<81xf32, #tpu.memory_space<smem>>
    %301 = vector.broadcast %300 : f32 to vector<8x8xf32>
    %302 = arith.mulf %301, %86 : vector<8x8xf32>
    %303 = arith.addf %299, %302 : vector<8x8xf32>
    %c41 = arith.constant 41 : index
    %304 = memref.load %arg1[%c41] : memref<81xf32, #tpu.memory_space<smem>>
    %305 = vector.broadcast %304 : f32 to vector<8x8xf32>
    %306 = arith.mulf %305, %87 : vector<8x8xf32>
    %307 = arith.addf %303, %306 : vector<8x8xf32>
    %c42 = arith.constant 42 : index
    %308 = memref.load %arg1[%c42] : memref<81xf32, #tpu.memory_space<smem>>
    %309 = vector.broadcast %308 : f32 to vector<8x8xf32>
    %310 = arith.mulf %309, %88 : vector<8x8xf32>
    %311 = arith.addf %307, %310 : vector<8x8xf32>
    %c43 = arith.constant 43 : index
    %312 = memref.load %arg1[%c43] : memref<81xf32, #tpu.memory_space<smem>>
    %313 = vector.broadcast %312 : f32 to vector<8x8xf32>
    %314 = arith.mulf %313, %89 : vector<8x8xf32>
    %315 = arith.addf %311, %314 : vector<8x8xf32>
    %c44 = arith.constant 44 : index
    %316 = memref.load %arg1[%c44] : memref<81xf32, #tpu.memory_space<smem>>
    %317 = vector.broadcast %316 : f32 to vector<8x8xf32>
    %318 = arith.mulf %317, %90 : vector<8x8xf32>
    %319 = arith.addf %315, %318 : vector<8x8xf32>
    %c45 = arith.constant 45 : index
    %320 = memref.load %arg1[%c45] : memref<81xf32, #tpu.memory_space<smem>>
    %321 = vector.broadcast %320 : f32 to vector<8x8xf32>
    %322 = arith.mulf %321, %99 : vector<8x8xf32>
    %323 = arith.addf %319, %322 : vector<8x8xf32>
    %c46 = arith.constant 46 : index
    %324 = memref.load %arg1[%c46] : memref<81xf32, #tpu.memory_space<smem>>
    %325 = vector.broadcast %324 : f32 to vector<8x8xf32>
    %326 = arith.mulf %325, %100 : vector<8x8xf32>
    %327 = arith.addf %323, %326 : vector<8x8xf32>
    %c47 = arith.constant 47 : index
    %328 = memref.load %arg1[%c47] : memref<81xf32, #tpu.memory_space<smem>>
    %329 = vector.broadcast %328 : f32 to vector<8x8xf32>
    %330 = arith.mulf %329, %101 : vector<8x8xf32>
    %331 = arith.addf %327, %330 : vector<8x8xf32>
    %c48 = arith.constant 48 : index
    %332 = memref.load %arg1[%c48] : memref<81xf32, #tpu.memory_space<smem>>
    %333 = vector.broadcast %332 : f32 to vector<8x8xf32>
    %334 = arith.mulf %333, %102 : vector<8x8xf32>
    %335 = arith.addf %331, %334 : vector<8x8xf32>
    %c49 = arith.constant 49 : index
    %336 = memref.load %arg1[%c49] : memref<81xf32, #tpu.memory_space<smem>>
    %337 = vector.broadcast %336 : f32 to vector<8x8xf32>
    %338 = arith.mulf %337, %103 : vector<8x8xf32>
    %339 = arith.addf %335, %338 : vector<8x8xf32>
    %c50 = arith.constant 50 : index
    %340 = memref.load %arg1[%c50] : memref<81xf32, #tpu.memory_space<smem>>
    %341 = vector.broadcast %340 : f32 to vector<8x8xf32>
    %342 = arith.mulf %341, %104 : vector<8x8xf32>
    %343 = arith.addf %339, %342 : vector<8x8xf32>
    %c51 = arith.constant 51 : index
    %344 = memref.load %arg1[%c51] : memref<81xf32, #tpu.memory_space<smem>>
    %345 = vector.broadcast %344 : f32 to vector<8x8xf32>
    %346 = arith.mulf %345, %105 : vector<8x8xf32>
    %347 = arith.addf %343, %346 : vector<8x8xf32>
    %c52 = arith.constant 52 : index
    %348 = memref.load %arg1[%c52] : memref<81xf32, #tpu.memory_space<smem>>
    %349 = vector.broadcast %348 : f32 to vector<8x8xf32>
    %350 = arith.mulf %349, %106 : vector<8x8xf32>
    %351 = arith.addf %347, %350 : vector<8x8xf32>
    %c53 = arith.constant 53 : index
    %352 = memref.load %arg1[%c53] : memref<81xf32, #tpu.memory_space<smem>>
    %353 = vector.broadcast %352 : f32 to vector<8x8xf32>
    %354 = arith.mulf %353, %107 : vector<8x8xf32>
    %355 = arith.addf %351, %354 : vector<8x8xf32>
    %356 = vector.shape_cast %355 : vector<8x8xf32> to vector<1x8x8xf32>
    %cst_77 = arith.constant dense<0.000000e+00> : vector<1xf32>
    %357 = vector.multi_reduction <add>, %356, %cst_77 [1, 2] : vector<1x8x8xf32> to vector<1xf32>
    %358 = vector.shape_cast %357 : vector<1xf32> to vector<1x1x1xf32>
    %359 = vector.extract %358[0, 0, 0] : f32 from vector<1x1x1xf32>
    %cst_78 = arith.constant 6.400000e+01 : f32
    %360 = arith.divf %359, %cst_78 : f32
    %361 = vector.broadcast %360 : f32 to vector<8x8xf32>
    %362 = arith.subf %355, %361 : vector<8x8xf32>
    %363 = arith.mulf %362, %362 : vector<8x8xf32>
    %364 = vector.shape_cast %363 : vector<8x8xf32> to vector<1x8x8xf32>
    %cst_79 = arith.constant dense<0.000000e+00> : vector<1xf32>
    %365 = vector.multi_reduction <add>, %364, %cst_79 [1, 2] : vector<1x8x8xf32> to vector<1xf32>
    %366 = vector.shape_cast %365 : vector<1xf32> to vector<1x1x1xf32>
    %367 = vector.extract %366[0, 0, 0] : f32 from vector<1x1x1xf32>
    %cst_80 = arith.constant 6.400000e+01 : f32
    %368 = arith.divf %367, %cst_80 : f32
    %369 = vector.broadcast %360 : f32 to vector<8x8xf32>
    %370 = arith.subf %355, %369 : vector<8x8xf32>
    %cst_81 = arith.constant 9.99999974E-6 : f32
    %371 = arith.addf %368, %cst_81 : f32
    %372 = math.rsqrt %371 : f32
    %373 = vector.broadcast %372 : f32 to vector<8x8xf32>
    %374 = arith.mulf %370, %373 : vector<8x8xf32>
    %c1_82 = arith.constant 1 : index
    %375 = memref.load %arg4[%c1_82] : memref<3xf32, #tpu.memory_space<smem>>
    %376 = vector.broadcast %375 : f32 to vector<8x8xf32>
    %377 = arith.mulf %374, %376 : vector<8x8xf32>
    %c1_83 = arith.constant 1 : index
    %378 = memref.load %arg5[%c1_83] : memref<3xf32, #tpu.memory_space<smem>>
    %379 = vector.broadcast %378 : f32 to vector<8x8xf32>
    %380 = arith.addf %377, %379 : vector<8x8xf32>
    %cst_84 = arith.constant 0.000000e+00 : f32
    %381 = vector.broadcast %cst_84 : f32 to vector<8x8xf32>
    %382 = arith.maximumf %380, %381 : vector<8x8xf32>
    %c1_85 = arith.constant 1 : index
    %c1_86 = arith.constant 1 : index
    %c1_87 = arith.constant 1 : index
    %383 = vector.load %arg9[%c1_85, %c1_86, %c1_87] : memref<3x16x16xf32, #tpu.memory_space<vmem>>, vector<1x8x8xf32>
    %384 = vector.shape_cast %383 : vector<1x8x8xf32> to vector<8x8xf32>
    %385 = vector.shape_cast %382 : vector<8x8xf32> to vector<1x8x8xf32>
    tpu.vector_store %arg9[%c1_85, %c1_86, %c1_87], %385 {strides = array<i32>} : memref<3x16x16xf32, #tpu.memory_space<vmem>>, vector<1x8x8xf32>,
    %cst_88 = arith.constant 0.000000e+00 : f32
    %386 = vector.broadcast %cst_88 : f32 to vector<8x8xf32>
    %c54 = arith.constant 54 : index
    %387 = memref.load %arg1[%c54] : memref<81xf32, #tpu.memory_space<smem>>
    %388 = vector.broadcast %387 : f32 to vector<8x8xf32>
    %389 = arith.mulf %388, %65 : vector<8x8xf32>
    %390 = arith.addf %386, %389 : vector<8x8xf32>
    %c55 = arith.constant 55 : index
    %391 = memref.load %arg1[%c55] : memref<81xf32, #tpu.memory_space<smem>>
    %392 = vector.broadcast %391 : f32 to vector<8x8xf32>
    %393 = arith.mulf %392, %66 : vector<8x8xf32>
    %394 = arith.addf %390, %393 : vector<8x8xf32>
    %c56 = arith.constant 56 : index
    %395 = memref.load %arg1[%c56] : memref<81xf32, #tpu.memory_space<smem>>
    %396 = vector.broadcast %395 : f32 to vector<8x8xf32>
    %397 = arith.mulf %396, %67 : vector<8x8xf32>
    %398 = arith.addf %394, %397 : vector<8x8xf32>
    %c57 = arith.constant 57 : index
    %399 = memref.load %arg1[%c57] : memref<81xf32, #tpu.memory_space<smem>>
    %400 = vector.broadcast %399 : f32 to vector<8x8xf32>
    %401 = arith.mulf %400, %68 : vector<8x8xf32>
    %402 = arith.addf %398, %401 : vector<8x8xf32>
    %c58 = arith.constant 58 : index
    %403 = memref.load %arg1[%c58] : memref<81xf32, #tpu.memory_space<smem>>
    %404 = vector.broadcast %403 : f32 to vector<8x8xf32>
    %405 = arith.mulf %404, %69 : vector<8x8xf32>
    %406 = arith.addf %402, %405 : vector<8x8xf32>
    %c59 = arith.constant 59 : index
    %407 = memref.load %arg1[%c59] : memref<81xf32, #tpu.memory_space<smem>>
    %408 = vector.broadcast %407 : f32 to vector<8x8xf32>
    %409 = arith.mulf %408, %70 : vector<8x8xf32>
    %410 = arith.addf %406, %409 : vector<8x8xf32>
    %c60 = arith.constant 60 : index
    %411 = memref.load %arg1[%c60] : memref<81xf32, #tpu.memory_space<smem>>
    %412 = vector.broadcast %411 : f32 to vector<8x8xf32>
    %413 = arith.mulf %412, %71 : vector<8x8xf32>
    %414 = arith.addf %410, %413 : vector<8x8xf32>
    %c61 = arith.constant 61 : index
    %415 = memref.load %arg1[%c61] : memref<81xf32, #tpu.memory_space<smem>>
    %416 = vector.broadcast %415 : f32 to vector<8x8xf32>
    %417 = arith.mulf %416, %72 : vector<8x8xf32>
    %418 = arith.addf %414, %417 : vector<8x8xf32>
    %c62 = arith.constant 62 : index
    %419 = memref.load %arg1[%c62] : memref<81xf32, #tpu.memory_space<smem>>
    %420 = vector.broadcast %419 : f32 to vector<8x8xf32>
    %421 = arith.mulf %420, %73 : vector<8x8xf32>
    %422 = arith.addf %418, %421 : vector<8x8xf32>
    %c63 = arith.constant 63 : index
    %423 = memref.load %arg1[%c63] : memref<81xf32, #tpu.memory_space<smem>>
    %424 = vector.broadcast %423 : f32 to vector<8x8xf32>
    %425 = arith.mulf %424, %82 : vector<8x8xf32>
    %426 = arith.addf %422, %425 : vector<8x8xf32>
    %c64 = arith.constant 64 : index
    %427 = memref.load %arg1[%c64] : memref<81xf32, #tpu.memory_space<smem>>
    %428 = vector.broadcast %427 : f32 to vector<8x8xf32>
    %429 = arith.mulf %428, %83 : vector<8x8xf32>
    %430 = arith.addf %426, %429 : vector<8x8xf32>
    %c65 = arith.constant 65 : index
    %431 = memref.load %arg1[%c65] : memref<81xf32, #tpu.memory_space<smem>>
    %432 = vector.broadcast %431 : f32 to vector<8x8xf32>
    %433 = arith.mulf %432, %84 : vector<8x8xf32>
    %434 = arith.addf %430, %433 : vector<8x8xf32>
    %c66 = arith.constant 66 : index
    %435 = memref.load %arg1[%c66] : memref<81xf32, #tpu.memory_space<smem>>
    %436 = vector.broadcast %435 : f32 to vector<8x8xf32>
    %437 = arith.mulf %436, %85 : vector<8x8xf32>
    %438 = arith.addf %434, %437 : vector<8x8xf32>
    %c67 = arith.constant 67 : index
    %439 = memref.load %arg1[%c67] : memref<81xf32, #tpu.memory_space<smem>>
    %440 = vector.broadcast %439 : f32 to vector<8x8xf32>
    %441 = arith.mulf %440, %86 : vector<8x8xf32>
    %442 = arith.addf %438, %441 : vector<8x8xf32>
    %c68 = arith.constant 68 : index
    %443 = memref.load %arg1[%c68] : memref<81xf32, #tpu.memory_space<smem>>
    %444 = vector.broadcast %443 : f32 to vector<8x8xf32>
    %445 = arith.mulf %444, %87 : vector<8x8xf32>
    %446 = arith.addf %442, %445 : vector<8x8xf32>
    %c69 = arith.constant 69 : index
    %447 = memref.load %arg1[%c69] : memref<81xf32, #tpu.memory_space<smem>>
    %448 = vector.broadcast %447 : f32 to vector<8x8xf32>
    %449 = arith.mulf %448, %88 : vector<8x8xf32>
    %450 = arith.addf %446, %449 : vector<8x8xf32>
    %c70 = arith.constant 70 : index
    %451 = memref.load %arg1[%c70] : memref<81xf32, #tpu.memory_space<smem>>
    %452 = vector.broadcast %451 : f32 to vector<8x8xf32>
    %453 = arith.mulf %452, %89 : vector<8x8xf32>
    %454 = arith.addf %450, %453 : vector<8x8xf32>
    %c71 = arith.constant 71 : index
    %455 = memref.load %arg1[%c71] : memref<81xf32, #tpu.memory_space<smem>>
    %456 = vector.broadcast %455 : f32 to vector<8x8xf32>
    %457 = arith.mulf %456, %90 : vector<8x8xf32>
    %458 = arith.addf %454, %457 : vector<8x8xf32>
    %c72 = arith.constant 72 : index
    %459 = memref.load %arg1[%c72] : memref<81xf32, #tpu.memory_space<smem>>
    %460 = vector.broadcast %459 : f32 to vector<8x8xf32>
    %461 = arith.mulf %460, %99 : vector<8x8xf32>
    %462 = arith.addf %458, %461 : vector<8x8xf32>
    %c73 = arith.constant 73 : index
    %463 = memref.load %arg1[%c73] : memref<81xf32, #tpu.memory_space<smem>>
    %464 = vector.broadcast %463 : f32 to vector<8x8xf32>
    %465 = arith.mulf %464, %100 : vector<8x8xf32>
    %466 = arith.addf %462, %465 : vector<8x8xf32>
    %c74 = arith.constant 74 : index
    %467 = memref.load %arg1[%c74] : memref<81xf32, #tpu.memory_space<smem>>
    %468 = vector.broadcast %467 : f32 to vector<8x8xf32>
    %469 = arith.mulf %468, %101 : vector<8x8xf32>
    %470 = arith.addf %466, %469 : vector<8x8xf32>
    %c75 = arith.constant 75 : index
    %471 = memref.load %arg1[%c75] : memref<81xf32, #tpu.memory_space<smem>>
    %472 = vector.broadcast %471 : f32 to vector<8x8xf32>
    %473 = arith.mulf %472, %102 : vector<8x8xf32>
    %474 = arith.addf %470, %473 : vector<8x8xf32>
    %c76 = arith.constant 76 : index
    %475 = memref.load %arg1[%c76] : memref<81xf32, #tpu.memory_space<smem>>
    %476 = vector.broadcast %475 : f32 to vector<8x8xf32>
    %477 = arith.mulf %476, %103 : vector<8x8xf32>
    %478 = arith.addf %474, %477 : vector<8x8xf32>
    %c77 = arith.constant 77 : index
    %479 = memref.load %arg1[%c77] : memref<81xf32, #tpu.memory_space<smem>>
    %480 = vector.broadcast %479 : f32 to vector<8x8xf32>
    %481 = arith.mulf %480, %104 : vector<8x8xf32>
    %482 = arith.addf %478, %481 : vector<8x8xf32>
    %c78 = arith.constant 78 : index
    %483 = memref.load %arg1[%c78] : memref<81xf32, #tpu.memory_space<smem>>
    %484 = vector.broadcast %483 : f32 to vector<8x8xf32>
    %485 = arith.mulf %484, %105 : vector<8x8xf32>
    %486 = arith.addf %482, %485 : vector<8x8xf32>
    %c79 = arith.constant 79 : index
    %487 = memref.load %arg1[%c79] : memref<81xf32, #tpu.memory_space<smem>>
    %488 = vector.broadcast %487 : f32 to vector<8x8xf32>
    %489 = arith.mulf %488, %106 : vector<8x8xf32>
    %490 = arith.addf %486, %489 : vector<8x8xf32>
    %c80 = arith.constant 80 : index
    %491 = memref.load %arg1[%c80] : memref<81xf32, #tpu.memory_space<smem>>
    %492 = vector.broadcast %491 : f32 to vector<8x8xf32>
    %493 = arith.mulf %492, %107 : vector<8x8xf32>
    %494 = arith.addf %490, %493 : vector<8x8xf32>
    %495 = vector.shape_cast %494 : vector<8x8xf32> to vector<1x8x8xf32>
    %cst_89 = arith.constant dense<0.000000e+00> : vector<1xf32>
    %496 = vector.multi_reduction <add>, %495, %cst_89 [1, 2] : vector<1x8x8xf32> to vector<1xf32>
    %497 = vector.shape_cast %496 : vector<1xf32> to vector<1x1x1xf32>
    %498 = vector.extract %497[0, 0, 0] : f32 from vector<1x1x1xf32>
    %cst_90 = arith.constant 6.400000e+01 : f32
    %499 = arith.divf %498, %cst_90 : f32
    %500 = vector.broadcast %499 : f32 to vector<8x8xf32>
    %501 = arith.subf %494, %500 : vector<8x8xf32>
    %502 = arith.mulf %501, %501 : vector<8x8xf32>
    %503 = vector.shape_cast %502 : vector<8x8xf32> to vector<1x8x8xf32>
    %cst_91 = arith.constant dense<0.000000e+00> : vector<1xf32>
    %504 = vector.multi_reduction <add>, %503, %cst_91 [1, 2] : vector<1x8x8xf32> to vector<1xf32>
    %505 = vector.shape_cast %504 : vector<1xf32> to vector<1x1x1xf32>
    %506 = vector.extract %505[0, 0, 0] : f32 from vector<1x1x1xf32>
    %cst_92 = arith.constant 6.400000e+01 : f32
    %507 = arith.divf %506, %cst_92 : f32
    %508 = vector.broadcast %499 : f32 to vector<8x8xf32>
    %509 = arith.subf %494, %508 : vector<8x8xf32>
    %cst_93 = arith.constant 9.99999974E-6 : f32
    %510 = arith.addf %507, %cst_93 : f32
    %511 = math.rsqrt %510 : f32
    %512 = vector.broadcast %511 : f32 to vector<8x8xf32>
    %513 = arith.mulf %509, %512 : vector<8x8xf32>
    %c2_94 = arith.constant 2 : index
    %514 = memref.load %arg4[%c2_94] : memref<3xf32, #tpu.memory_space<smem>>
    %515 = vector.broadcast %514 : f32 to vector<8x8xf32>
    %516 = arith.mulf %513, %515 : vector<8x8xf32>
    %c2_95 = arith.constant 2 : index
    %517 = memref.load %arg5[%c2_95] : memref<3xf32, #tpu.memory_space<smem>>
    %518 = vector.broadcast %517 : f32 to vector<8x8xf32>
    %519 = arith.addf %516, %518 : vector<8x8xf32>
    %cst_96 = arith.constant 0.000000e+00 : f32
    %520 = vector.broadcast %cst_96 : f32 to vector<8x8xf32>
    %521 = arith.maximumf %519, %520 : vector<8x8xf32>
    %c2_97 = arith.constant 2 : index
    %c1_98 = arith.constant 1 : index
    %c1_99 = arith.constant 1 : index
    %522 = vector.load %arg9[%c2_97, %c1_98, %c1_99] : memref<3x16x16xf32, #tpu.memory_space<vmem>>, vector<1x8x8xf32>
    %523 = vector.shape_cast %522 : vector<1x8x8xf32> to vector<8x8xf32>
    %524 = vector.shape_cast %521 : vector<8x8xf32> to vector<1x8x8xf32>
    tpu.vector_store %arg9[%c2_97, %c1_98, %c1_99], %524 {strides = array<i32>} : memref<3x16x16xf32, #tpu.memory_space<vmem>>, vector<1x8x8xf32>,
    %c0_100 = arith.constant 0 : index
    %c0_101 = arith.constant 0 : index
    %c0_102 = arith.constant 0 : index
    %525 = vector.load %arg9[%c0_100, %c0_101, %c0_102] : memref<3x16x16xf32, #tpu.memory_space<vmem>>, vector<1x8x8xf32>
    %526 = vector.shape_cast %525 : vector<1x8x8xf32> to vector<8x8xf32>
    %c0_103 = arith.constant 0 : index
    %c0_104 = arith.constant 0 : index
    %c1_105 = arith.constant 1 : index
    %527 = vector.load %arg9[%c0_103, %c0_104, %c1_105] : memref<3x16x16xf32, #tpu.memory_space<vmem>>, vector<1x8x8xf32>
    %528 = vector.shape_cast %527 : vector<1x8x8xf32> to vector<8x8xf32>
    %c0_106 = arith.constant 0 : index
    %c0_107 = arith.constant 0 : index
    %c2_108 = arith.constant 2 : index
    %529 = vector.load %arg9[%c0_106, %c0_107, %c2_108] : memref<3x16x16xf32, #tpu.memory_space<vmem>>, vector<1x8x8xf32>
    %530 = vector.shape_cast %529 : vector<1x8x8xf32> to vector<8x8xf32>
    %c0_109 = arith.constant 0 : index
    %c1_110 = arith.constant 1 : index
    %c0_111 = arith.constant 0 : index
    %531 = vector.load %arg9[%c0_109, %c1_110, %c0_111] : memref<3x16x16xf32, #tpu.memory_space<vmem>>, vector<1x8x8xf32>
    %532 = vector.shape_cast %531 : vector<1x8x8xf32> to vector<8x8xf32>
    %c0_112 = arith.constant 0 : index
    %c1_113 = arith.constant 1 : index
    %c1_114 = arith.constant 1 : index
    %533 = vector.load %arg9[%c0_112, %c1_113, %c1_114] : memref<3x16x16xf32, #tpu.memory_space<vmem>>, vector<1x8x8xf32>
    %534 = vector.shape_cast %533 : vector<1x8x8xf32> to vector<8x8xf32>
    %c0_115 = arith.constant 0 : index
    %c1_116 = arith.constant 1 : index
    %c2_117 = arith.constant 2 : index
    %535 = vector.load %arg9[%c0_115, %c1_116, %c2_117] : memref<3x16x16xf32, #tpu.memory_space<vmem>>, vector<1x8x8xf32>
    %536 = vector.shape_cast %535 : vector<1x8x8xf32> to vector<8x8xf32>
    %c0_118 = arith.constant 0 : index
    %c2_119 = arith.constant 2 : index
    %c0_120 = arith.constant 0 : index
    %537 = vector.load %arg9[%c0_118, %c2_119, %c0_120] : memref<3x16x16xf32, #tpu.memory_space<vmem>>, vector<1x8x8xf32>
    %538 = vector.shape_cast %537 : vector<1x8x8xf32> to vector<8x8xf32>
    %c0_121 = arith.constant 0 : index
    %c2_122 = arith.constant 2 : index
    %c1_123 = arith.constant 1 : index
    %539 = vector.load %arg9[%c0_121, %c2_122, %c1_123] : memref<3x16x16xf32, #tpu.memory_space<vmem>>, vector<1x8x8xf32>
    %540 = vector.shape_cast %539 : vector<1x8x8xf32> to vector<8x8xf32>
    %c0_124 = arith.constant 0 : index
    %c2_125 = arith.constant 2 : index
    %c2_126 = arith.constant 2 : index
    %541 = vector.load %arg9[%c0_124, %c2_125, %c2_126] : memref<3x16x16xf32, #tpu.memory_space<vmem>>, vector<1x8x8xf32>
    %542 = vector.shape_cast %541 : vector<1x8x8xf32> to vector<8x8xf32>
    %c1_127 = arith.constant 1 : index
    %c0_128 = arith.constant 0 : index
    %c0_129 = arith.constant 0 : index
    %543 = vector.load %arg9[%c1_127, %c0_128, %c0_129] : memref<3x16x16xf32, #tpu.memory_space<vmem>>, vector<1x8x8xf32>
    %544 = vector.shape_cast %543 : vector<1x8x8xf32> to vector<8x8xf32>
    %c1_130 = arith.constant 1 : index
    %c0_131 = arith.constant 0 : index
    %c1_132 = arith.constant 1 : index
    %545 = vector.load %arg9[%c1_130, %c0_131, %c1_132] : memref<3x16x16xf32, #tpu.memory_space<vmem>>, vector<1x8x8xf32>
    %546 = vector.shape_cast %545 : vector<1x8x8xf32> to vector<8x8xf32>
    %c1_133 = arith.constant 1 : index
    %c0_134 = arith.constant 0 : index
    %c2_135 = arith.constant 2 : index
    %547 = vector.load %arg9[%c1_133, %c0_134, %c2_135] : memref<3x16x16xf32, #tpu.memory_space<vmem>>, vector<1x8x8xf32>
    %548 = vector.shape_cast %547 : vector<1x8x8xf32> to vector<8x8xf32>
    %c1_136 = arith.constant 1 : index
    %c1_137 = arith.constant 1 : index
    %c0_138 = arith.constant 0 : index
    %549 = vector.load %arg9[%c1_136, %c1_137, %c0_138] : memref<3x16x16xf32, #tpu.memory_space<vmem>>, vector<1x8x8xf32>
    %550 = vector.shape_cast %549 : vector<1x8x8xf32> to vector<8x8xf32>
    %c1_139 = arith.constant 1 : index
    %c1_140 = arith.constant 1 : index
    %c1_141 = arith.constant 1 : index
    %551 = vector.load %arg9[%c1_139, %c1_140, %c1_141] : memref<3x16x16xf32, #tpu.memory_space<vmem>>, vector<1x8x8xf32>
    %552 = vector.shape_cast %551 : vector<1x8x8xf32> to vector<8x8xf32>
    %c1_142 = arith.constant 1 : index
    %c1_143 = arith.constant 1 : index
    %c2_144 = arith.constant 2 : index
    %553 = vector.load %arg9[%c1_142, %c1_143, %c2_144] : memref<3x16x16xf32, #tpu.memory_space<vmem>>, vector<1x8x8xf32>
    %554 = vector.shape_cast %553 : vector<1x8x8xf32> to vector<8x8xf32>
    %c1_145 = arith.constant 1 : index
    %c2_146 = arith.constant 2 : index
    %c0_147 = arith.constant 0 : index
    %555 = vector.load %arg9[%c1_145, %c2_146, %c0_147] : memref<3x16x16xf32, #tpu.memory_space<vmem>>, vector<1x8x8xf32>
    %556 = vector.shape_cast %555 : vector<1x8x8xf32> to vector<8x8xf32>
    %c1_148 = arith.constant 1 : index
    %c2_149 = arith.constant 2 : index
    %c1_150 = arith.constant 1 : index
    %557 = vector.load %arg9[%c1_148, %c2_149, %c1_150] : memref<3x16x16xf32, #tpu.memory_space<vmem>>, vector<1x8x8xf32>
    %558 = vector.shape_cast %557 : vector<1x8x8xf32> to vector<8x8xf32>
    %c1_151 = arith.constant 1 : index
    %c2_152 = arith.constant 2 : index
    %c2_153 = arith.constant 2 : index
    %559 = vector.load %arg9[%c1_151, %c2_152, %c2_153] : memref<3x16x16xf32, #tpu.memory_space<vmem>>, vector<1x8x8xf32>
    %560 = vector.shape_cast %559 : vector<1x8x8xf32> to vector<8x8xf32>
    %c2_154 = arith.constant 2 : index
    %c0_155 = arith.constant 0 : index
    %c0_156 = arith.constant 0 : index
    %561 = vector.load %arg9[%c2_154, %c0_155, %c0_156] : memref<3x16x16xf32, #tpu.memory_space<vmem>>, vector<1x8x8xf32>
    %562 = vector.shape_cast %561 : vector<1x8x8xf32> to vector<8x8xf32>
    %c2_157 = arith.constant 2 : index
    %c0_158 = arith.constant 0 : index
    %c1_159 = arith.constant 1 : index
    %563 = vector.load %arg9[%c2_157, %c0_158, %c1_159] : memref<3x16x16xf32, #tpu.memory_space<vmem>>, vector<1x8x8xf32>
    %564 = vector.shape_cast %563 : vector<1x8x8xf32> to vector<8x8xf32>
    %c2_160 = arith.constant 2 : index
    %c0_161 = arith.constant 0 : index
    %c2_162 = arith.constant 2 : index
    %565 = vector.load %arg9[%c2_160, %c0_161, %c2_162] : memref<3x16x16xf32, #tpu.memory_space<vmem>>, vector<1x8x8xf32>
    %566 = vector.shape_cast %565 : vector<1x8x8xf32> to vector<8x8xf32>
    %c2_163 = arith.constant 2 : index
    %c1_164 = arith.constant 1 : index
    %c0_165 = arith.constant 0 : index
    %567 = vector.load %arg9[%c2_163, %c1_164, %c0_165] : memref<3x16x16xf32, #tpu.memory_space<vmem>>, vector<1x8x8xf32>
    %568 = vector.shape_cast %567 : vector<1x8x8xf32> to vector<8x8xf32>
    %c2_166 = arith.constant 2 : index
    %c1_167 = arith.constant 1 : index
    %c1_168 = arith.constant 1 : index
    %569 = vector.load %arg9[%c2_166, %c1_167, %c1_168] : memref<3x16x16xf32, #tpu.memory_space<vmem>>, vector<1x8x8xf32>
    %570 = vector.shape_cast %569 : vector<1x8x8xf32> to vector<8x8xf32>
    %c2_169 = arith.constant 2 : index
    %c1_170 = arith.constant 1 : index
    %c2_171 = arith.constant 2 : index
    %571 = vector.load %arg9[%c2_169, %c1_170, %c2_171] : memref<3x16x16xf32, #tpu.memory_space<vmem>>, vector<1x8x8xf32>
    %572 = vector.shape_cast %571 : vector<1x8x8xf32> to vector<8x8xf32>
    %c2_172 = arith.constant 2 : index
    %c2_173 = arith.constant 2 : index
    %c0_174 = arith.constant 0 : index
    %573 = vector.load %arg9[%c2_172, %c2_173, %c0_174] : memref<3x16x16xf32, #tpu.memory_space<vmem>>, vector<1x8x8xf32>
    %574 = vector.shape_cast %573 : vector<1x8x8xf32> to vector<8x8xf32>
    %c2_175 = arith.constant 2 : index
    %c2_176 = arith.constant 2 : index
    %c1_177 = arith.constant 1 : index
    %575 = vector.load %arg9[%c2_175, %c2_176, %c1_177] : memref<3x16x16xf32, #tpu.memory_space<vmem>>, vector<1x8x8xf32>
    %576 = vector.shape_cast %575 : vector<1x8x8xf32> to vector<8x8xf32>
    %c2_178 = arith.constant 2 : index
    %c2_179 = arith.constant 2 : index
    %c2_180 = arith.constant 2 : index
    %577 = vector.load %arg9[%c2_178, %c2_179, %c2_180] : memref<3x16x16xf32, #tpu.memory_space<vmem>>, vector<1x8x8xf32>
    %578 = vector.shape_cast %577 : vector<1x8x8xf32> to vector<8x8xf32>
    %cst_181 = arith.constant 0.000000e+00 : f32
    %579 = vector.broadcast %cst_181 : f32 to vector<8x8xf32>
    %c0_182 = arith.constant 0 : index
    %580 = memref.load %arg2[%c0_182] : memref<108xf32, #tpu.memory_space<smem>>
    %581 = vector.broadcast %580 : f32 to vector<8x8xf32>
    %582 = arith.mulf %581, %526 : vector<8x8xf32>
    %583 = arith.addf %579, %582 : vector<8x8xf32>
    %c1_183 = arith.constant 1 : index
    %584 = memref.load %arg2[%c1_183] : memref<108xf32, #tpu.memory_space<smem>>
    %585 = vector.broadcast %584 : f32 to vector<8x8xf32>
    %586 = arith.mulf %585, %528 : vector<8x8xf32>
    %587 = arith.addf %583, %586 : vector<8x8xf32>
    %c2_184 = arith.constant 2 : index
    %588 = memref.load %arg2[%c2_184] : memref<108xf32, #tpu.memory_space<smem>>
    %589 = vector.broadcast %588 : f32 to vector<8x8xf32>
    %590 = arith.mulf %589, %530 : vector<8x8xf32>
    %591 = arith.addf %587, %590 : vector<8x8xf32>
    %c3_185 = arith.constant 3 : index
    %592 = memref.load %arg2[%c3_185] : memref<108xf32, #tpu.memory_space<smem>>
    %593 = vector.broadcast %592 : f32 to vector<8x8xf32>
    %594 = arith.mulf %593, %532 : vector<8x8xf32>
    %595 = arith.addf %591, %594 : vector<8x8xf32>
    %c4_186 = arith.constant 4 : index
    %596 = memref.load %arg2[%c4_186] : memref<108xf32, #tpu.memory_space<smem>>
    %597 = vector.broadcast %596 : f32 to vector<8x8xf32>
    %598 = arith.mulf %597, %534 : vector<8x8xf32>
    %599 = arith.addf %595, %598 : vector<8x8xf32>
    %c5_187 = arith.constant 5 : index
    %600 = memref.load %arg2[%c5_187] : memref<108xf32, #tpu.memory_space<smem>>
    %601 = vector.broadcast %600 : f32 to vector<8x8xf32>
    %602 = arith.mulf %601, %536 : vector<8x8xf32>
    %603 = arith.addf %599, %602 : vector<8x8xf32>
    %c6_188 = arith.constant 6 : index
    %604 = memref.load %arg2[%c6_188] : memref<108xf32, #tpu.memory_space<smem>>
    %605 = vector.broadcast %604 : f32 to vector<8x8xf32>
    %606 = arith.mulf %605, %538 : vector<8x8xf32>
    %607 = arith.addf %603, %606 : vector<8x8xf32>
    %c7_189 = arith.constant 7 : index
    %608 = memref.load %arg2[%c7_189] : memref<108xf32, #tpu.memory_space<smem>>
    %609 = vector.broadcast %608 : f32 to vector<8x8xf32>
    %610 = arith.mulf %609, %540 : vector<8x8xf32>
    %611 = arith.addf %607, %610 : vector<8x8xf32>
    %c8_190 = arith.constant 8 : index
    %612 = memref.load %arg2[%c8_190] : memref<108xf32, #tpu.memory_space<smem>>
    %613 = vector.broadcast %612 : f32 to vector<8x8xf32>
    %614 = arith.mulf %613, %542 : vector<8x8xf32>
    %615 = arith.addf %611, %614 : vector<8x8xf32>
    %c9_191 = arith.constant 9 : index
    %616 = memref.load %arg2[%c9_191] : memref<108xf32, #tpu.memory_space<smem>>
    %617 = vector.broadcast %616 : f32 to vector<8x8xf32>
    %618 = arith.mulf %617, %544 : vector<8x8xf32>
    %619 = arith.addf %615, %618 : vector<8x8xf32>
    %c10_192 = arith.constant 10 : index
    %620 = memref.load %arg2[%c10_192] : memref<108xf32, #tpu.memory_space<smem>>
    %621 = vector.broadcast %620 : f32 to vector<8x8xf32>
    %622 = arith.mulf %621, %546 : vector<8x8xf32>
    %623 = arith.addf %619, %622 : vector<8x8xf32>
    %c11_193 = arith.constant 11 : index
    %624 = memref.load %arg2[%c11_193] : memref<108xf32, #tpu.memory_space<smem>>
    %625 = vector.broadcast %624 : f32 to vector<8x8xf32>
    %626 = arith.mulf %625, %548 : vector<8x8xf32>
    %627 = arith.addf %623, %626 : vector<8x8xf32>
    %c12_194 = arith.constant 12 : index
    %628 = memref.load %arg2[%c12_194] : memref<108xf32, #tpu.memory_space<smem>>
    %629 = vector.broadcast %628 : f32 to vector<8x8xf32>
    %630 = arith.mulf %629, %550 : vector<8x8xf32>
    %631 = arith.addf %627, %630 : vector<8x8xf32>
    %c13_195 = arith.constant 13 : index
    %632 = memref.load %arg2[%c13_195] : memref<108xf32, #tpu.memory_space<smem>>
    %633 = vector.broadcast %632 : f32 to vector<8x8xf32>
    %634 = arith.mulf %633, %552 : vector<8x8xf32>
    %635 = arith.addf %631, %634 : vector<8x8xf32>
    %c14_196 = arith.constant 14 : index
    %636 = memref.load %arg2[%c14_196] : memref<108xf32, #tpu.memory_space<smem>>
    %637 = vector.broadcast %636 : f32 to vector<8x8xf32>
    %638 = arith.mulf %637, %554 : vector<8x8xf32>
    %639 = arith.addf %635, %638 : vector<8x8xf32>
    %c15_197 = arith.constant 15 : index
    %640 = memref.load %arg2[%c15_197] : memref<108xf32, #tpu.memory_space<smem>>
    %641 = vector.broadcast %640 : f32 to vector<8x8xf32>
    %642 = arith.mulf %641, %556 : vector<8x8xf32>
    %643 = arith.addf %639, %642 : vector<8x8xf32>
    %c16_198 = arith.constant 16 : index
    %644 = memref.load %arg2[%c16_198] : memref<108xf32, #tpu.memory_space<smem>>
    %645 = vector.broadcast %644 : f32 to vector<8x8xf32>
    %646 = arith.mulf %645, %558 : vector<8x8xf32>
    %647 = arith.addf %643, %646 : vector<8x8xf32>
    %c17_199 = arith.constant 17 : index
    %648 = memref.load %arg2[%c17_199] : memref<108xf32, #tpu.memory_space<smem>>
    %649 = vector.broadcast %648 : f32 to vector<8x8xf32>
    %650 = arith.mulf %649, %560 : vector<8x8xf32>
    %651 = arith.addf %647, %650 : vector<8x8xf32>
    %c18_200 = arith.constant 18 : index
    %652 = memref.load %arg2[%c18_200] : memref<108xf32, #tpu.memory_space<smem>>
    %653 = vector.broadcast %652 : f32 to vector<8x8xf32>
    %654 = arith.mulf %653, %562 : vector<8x8xf32>
    %655 = arith.addf %651, %654 : vector<8x8xf32>
    %c19_201 = arith.constant 19 : index
    %656 = memref.load %arg2[%c19_201] : memref<108xf32, #tpu.memory_space<smem>>
    %657 = vector.broadcast %656 : f32 to vector<8x8xf32>
    %658 = arith.mulf %657, %564 : vector<8x8xf32>
    %659 = arith.addf %655, %658 : vector<8x8xf32>
    %c20_202 = arith.constant 20 : index
    %660 = memref.load %arg2[%c20_202] : memref<108xf32, #tpu.memory_space<smem>>
    %661 = vector.broadcast %660 : f32 to vector<8x8xf32>
    %662 = arith.mulf %661, %566 : vector<8x8xf32>
    %663 = arith.addf %659, %662 : vector<8x8xf32>
    %c21_203 = arith.constant 21 : index
    %664 = memref.load %arg2[%c21_203] : memref<108xf32, #tpu.memory_space<smem>>
    %665 = vector.broadcast %664 : f32 to vector<8x8xf32>
    %666 = arith.mulf %665, %568 : vector<8x8xf32>
    %667 = arith.addf %663, %666 : vector<8x8xf32>
    %c22_204 = arith.constant 22 : index
    %668 = memref.load %arg2[%c22_204] : memref<108xf32, #tpu.memory_space<smem>>
    %669 = vector.broadcast %668 : f32 to vector<8x8xf32>
    %670 = arith.mulf %669, %570 : vector<8x8xf32>
    %671 = arith.addf %667, %670 : vector<8x8xf32>
    %c23_205 = arith.constant 23 : index
    %672 = memref.load %arg2[%c23_205] : memref<108xf32, #tpu.memory_space<smem>>
    %673 = vector.broadcast %672 : f32 to vector<8x8xf32>
    %674 = arith.mulf %673, %572 : vector<8x8xf32>
    %675 = arith.addf %671, %674 : vector<8x8xf32>
    %c24_206 = arith.constant 24 : index
    %676 = memref.load %arg2[%c24_206] : memref<108xf32, #tpu.memory_space<smem>>
    %677 = vector.broadcast %676 : f32 to vector<8x8xf32>
    %678 = arith.mulf %677, %574 : vector<8x8xf32>
    %679 = arith.addf %675, %678 : vector<8x8xf32>
    %c25_207 = arith.constant 25 : index
    %680 = memref.load %arg2[%c25_207] : memref<108xf32, #tpu.memory_space<smem>>
    %681 = vector.broadcast %680 : f32 to vector<8x8xf32>
    %682 = arith.mulf %681, %576 : vector<8x8xf32>
    %683 = arith.addf %679, %682 : vector<8x8xf32>
    %c26_208 = arith.constant 26 : index
    %684 = memref.load %arg2[%c26_208] : memref<108xf32, #tpu.memory_space<smem>>
    %685 = vector.broadcast %684 : f32 to vector<8x8xf32>
    %686 = arith.mulf %685, %578 : vector<8x8xf32>
    %687 = arith.addf %683, %686 : vector<8x8xf32>
    %c0_209 = arith.constant 0 : index
    %c1_210 = arith.constant 1 : index
    %c1_211 = arith.constant 1 : index
    %688 = vector.load %arg10[%c0_209, %c1_210, %c1_211] : memref<4x16x16xf32, #tpu.memory_space<vmem>>, vector<1x8x8xf32>
    %689 = vector.shape_cast %688 : vector<1x8x8xf32> to vector<8x8xf32>
    %690 = vector.shape_cast %687 : vector<8x8xf32> to vector<1x8x8xf32>
    tpu.vector_store %arg10[%c0_209, %c1_210, %c1_211], %690 {strides = array<i32>} : memref<4x16x16xf32, #tpu.memory_space<vmem>>, vector<1x8x8xf32>,
    %cst_212 = arith.constant 0.000000e+00 : f32
    %691 = vector.broadcast %cst_212 : f32 to vector<8x8xf32>
    %c27_213 = arith.constant 27 : index
    %692 = memref.load %arg2[%c27_213] : memref<108xf32, #tpu.memory_space<smem>>
    %693 = vector.broadcast %692 : f32 to vector<8x8xf32>
    %694 = arith.mulf %693, %526 : vector<8x8xf32>
    %695 = arith.addf %691, %694 : vector<8x8xf32>
    %c28_214 = arith.constant 28 : index
    %696 = memref.load %arg2[%c28_214] : memref<108xf32, #tpu.memory_space<smem>>
    %697 = vector.broadcast %696 : f32 to vector<8x8xf32>
    %698 = arith.mulf %697, %528 : vector<8x8xf32>
    %699 = arith.addf %695, %698 : vector<8x8xf32>
    %c29_215 = arith.constant 29 : index
    %700 = memref.load %arg2[%c29_215] : memref<108xf32, #tpu.memory_space<smem>>
    %701 = vector.broadcast %700 : f32 to vector<8x8xf32>
    %702 = arith.mulf %701, %530 : vector<8x8xf32>
    %703 = arith.addf %699, %702 : vector<8x8xf32>
    %c30_216 = arith.constant 30 : index
    %704 = memref.load %arg2[%c30_216] : memref<108xf32, #tpu.memory_space<smem>>
    %705 = vector.broadcast %704 : f32 to vector<8x8xf32>
    %706 = arith.mulf %705, %532 : vector<8x8xf32>
    %707 = arith.addf %703, %706 : vector<8x8xf32>
    %c31_217 = arith.constant 31 : index
    %708 = memref.load %arg2[%c31_217] : memref<108xf32, #tpu.memory_space<smem>>
    %709 = vector.broadcast %708 : f32 to vector<8x8xf32>
    %710 = arith.mulf %709, %534 : vector<8x8xf32>
    %711 = arith.addf %707, %710 : vector<8x8xf32>
    %c32_218 = arith.constant 32 : index
    %712 = memref.load %arg2[%c32_218] : memref<108xf32, #tpu.memory_space<smem>>
    %713 = vector.broadcast %712 : f32 to vector<8x8xf32>
    %714 = arith.mulf %713, %536 : vector<8x8xf32>
    %715 = arith.addf %711, %714 : vector<8x8xf32>
    %c33_219 = arith.constant 33 : index
    %716 = memref.load %arg2[%c33_219] : memref<108xf32, #tpu.memory_space<smem>>
    %717 = vector.broadcast %716 : f32 to vector<8x8xf32>
    %718 = arith.mulf %717, %538 : vector<8x8xf32>
    %719 = arith.addf %715, %718 : vector<8x8xf32>
    %c34_220 = arith.constant 34 : index
    %720 = memref.load %arg2[%c34_220] : memref<108xf32, #tpu.memory_space<smem>>
    %721 = vector.broadcast %720 : f32 to vector<8x8xf32>
    %722 = arith.mulf %721, %540 : vector<8x8xf32>
    %723 = arith.addf %719, %722 : vector<8x8xf32>
    %c35_221 = arith.constant 35 : index
    %724 = memref.load %arg2[%c35_221] : memref<108xf32, #tpu.memory_space<smem>>
    %725 = vector.broadcast %724 : f32 to vector<8x8xf32>
    %726 = arith.mulf %725, %542 : vector<8x8xf32>
    %727 = arith.addf %723, %726 : vector<8x8xf32>
    %c36_222 = arith.constant 36 : index
    %728 = memref.load %arg2[%c36_222] : memref<108xf32, #tpu.memory_space<smem>>
    %729 = vector.broadcast %728 : f32 to vector<8x8xf32>
    %730 = arith.mulf %729, %544 : vector<8x8xf32>
    %731 = arith.addf %727, %730 : vector<8x8xf32>
    %c37_223 = arith.constant 37 : index
    %732 = memref.load %arg2[%c37_223] : memref<108xf32, #tpu.memory_space<smem>>
    %733 = vector.broadcast %732 : f32 to vector<8x8xf32>
    %734 = arith.mulf %733, %546 : vector<8x8xf32>
    %735 = arith.addf %731, %734 : vector<8x8xf32>
    %c38_224 = arith.constant 38 : index
    %736 = memref.load %arg2[%c38_224] : memref<108xf32, #tpu.memory_space<smem>>
    %737 = vector.broadcast %736 : f32 to vector<8x8xf32>
    %738 = arith.mulf %737, %548 : vector<8x8xf32>
    %739 = arith.addf %735, %738 : vector<8x8xf32>
    %c39_225 = arith.constant 39 : index
    %740 = memref.load %arg2[%c39_225] : memref<108xf32, #tpu.memory_space<smem>>
    %741 = vector.broadcast %740 : f32 to vector<8x8xf32>
    %742 = arith.mulf %741, %550 : vector<8x8xf32>
    %743 = arith.addf %739, %742 : vector<8x8xf32>
    %c40_226 = arith.constant 40 : index
    %744 = memref.load %arg2[%c40_226] : memref<108xf32, #tpu.memory_space<smem>>
    %745 = vector.broadcast %744 : f32 to vector<8x8xf32>
    %746 = arith.mulf %745, %552 : vector<8x8xf32>
    %747 = arith.addf %743, %746 : vector<8x8xf32>
    %c41_227 = arith.constant 41 : index
    %748 = memref.load %arg2[%c41_227] : memref<108xf32, #tpu.memory_space<smem>>
    %749 = vector.broadcast %748 : f32 to vector<8x8xf32>
    %750 = arith.mulf %749, %554 : vector<8x8xf32>
    %751 = arith.addf %747, %750 : vector<8x8xf32>
    %c42_228 = arith.constant 42 : index
    %752 = memref.load %arg2[%c42_228] : memref<108xf32, #tpu.memory_space<smem>>
    %753 = vector.broadcast %752 : f32 to vector<8x8xf32>
    %754 = arith.mulf %753, %556 : vector<8x8xf32>
    %755 = arith.addf %751, %754 : vector<8x8xf32>
    %c43_229 = arith.constant 43 : index
    %756 = memref.load %arg2[%c43_229] : memref<108xf32, #tpu.memory_space<smem>>
    %757 = vector.broadcast %756 : f32 to vector<8x8xf32>
    %758 = arith.mulf %757, %558 : vector<8x8xf32>
    %759 = arith.addf %755, %758 : vector<8x8xf32>
    %c44_230 = arith.constant 44 : index
    %760 = memref.load %arg2[%c44_230] : memref<108xf32, #tpu.memory_space<smem>>
    %761 = vector.broadcast %760 : f32 to vector<8x8xf32>
    %762 = arith.mulf %761, %560 : vector<8x8xf32>
    %763 = arith.addf %759, %762 : vector<8x8xf32>
    %c45_231 = arith.constant 45 : index
    %764 = memref.load %arg2[%c45_231] : memref<108xf32, #tpu.memory_space<smem>>
    %765 = vector.broadcast %764 : f32 to vector<8x8xf32>
    %766 = arith.mulf %765, %562 : vector<8x8xf32>
    %767 = arith.addf %763, %766 : vector<8x8xf32>
    %c46_232 = arith.constant 46 : index
    %768 = memref.load %arg2[%c46_232] : memref<108xf32, #tpu.memory_space<smem>>
    %769 = vector.broadcast %768 : f32 to vector<8x8xf32>
    %770 = arith.mulf %769, %564 : vector<8x8xf32>
    %771 = arith.addf %767, %770 : vector<8x8xf32>
    %c47_233 = arith.constant 47 : index
    %772 = memref.load %arg2[%c47_233] : memref<108xf32, #tpu.memory_space<smem>>
    %773 = vector.broadcast %772 : f32 to vector<8x8xf32>
    %774 = arith.mulf %773, %566 : vector<8x8xf32>
    %775 = arith.addf %771, %774 : vector<8x8xf32>
    %c48_234 = arith.constant 48 : index
    %776 = memref.load %arg2[%c48_234] : memref<108xf32, #tpu.memory_space<smem>>
    %777 = vector.broadcast %776 : f32 to vector<8x8xf32>
    %778 = arith.mulf %777, %568 : vector<8x8xf32>
    %779 = arith.addf %775, %778 : vector<8x8xf32>
    %c49_235 = arith.constant 49 : index
    %780 = memref.load %arg2[%c49_235] : memref<108xf32, #tpu.memory_space<smem>>
    %781 = vector.broadcast %780 : f32 to vector<8x8xf32>
    %782 = arith.mulf %781, %570 : vector<8x8xf32>
    %783 = arith.addf %779, %782 : vector<8x8xf32>
    %c50_236 = arith.constant 50 : index
    %784 = memref.load %arg2[%c50_236] : memref<108xf32, #tpu.memory_space<smem>>
    %785 = vector.broadcast %784 : f32 to vector<8x8xf32>
    %786 = arith.mulf %785, %572 : vector<8x8xf32>
    %787 = arith.addf %783, %786 : vector<8x8xf32>
    %c51_237 = arith.constant 51 : index
    %788 = memref.load %arg2[%c51_237] : memref<108xf32, #tpu.memory_space<smem>>
    %789 = vector.broadcast %788 : f32 to vector<8x8xf32>
    %790 = arith.mulf %789, %574 : vector<8x8xf32>
    %791 = arith.addf %787, %790 : vector<8x8xf32>
    %c52_238 = arith.constant 52 : index
    %792 = memref.load %arg2[%c52_238] : memref<108xf32, #tpu.memory_space<smem>>
    %793 = vector.broadcast %792 : f32 to vector<8x8xf32>
    %794 = arith.mulf %793, %576 : vector<8x8xf32>
    %795 = arith.addf %791, %794 : vector<8x8xf32>
    %c53_239 = arith.constant 53 : index
    %796 = memref.load %arg2[%c53_239] : memref<108xf32, #tpu.memory_space<smem>>
    %797 = vector.broadcast %796 : f32 to vector<8x8xf32>
    %798 = arith.mulf %797, %578 : vector<8x8xf32>
    %799 = arith.addf %795, %798 : vector<8x8xf32>
    %c1_240 = arith.constant 1 : index
    %c1_241 = arith.constant 1 : index
    %c1_242 = arith.constant 1 : index
    %800 = vector.load %arg10[%c1_240, %c1_241, %c1_242] : memref<4x16x16xf32, #tpu.memory_space<vmem>>, vector<1x8x8xf32>
    %801 = vector.shape_cast %800 : vector<1x8x8xf32> to vector<8x8xf32>
    %802 = vector.shape_cast %799 : vector<8x8xf32> to vector<1x8x8xf32>
    tpu.vector_store %arg10[%c1_240, %c1_241, %c1_242], %802 {strides = array<i32>} : memref<4x16x16xf32, #tpu.memory_space<vmem>>, vector<1x8x8xf32>,
    %cst_243 = arith.constant 0.000000e+00 : f32
    %803 = vector.broadcast %cst_243 : f32 to vector<8x8xf32>
    %c54_244 = arith.constant 54 : index
    %804 = memref.load %arg2[%c54_244] : memref<108xf32, #tpu.memory_space<smem>>
    %805 = vector.broadcast %804 : f32 to vector<8x8xf32>
    %806 = arith.mulf %805, %526 : vector<8x8xf32>
    %807 = arith.addf %803, %806 : vector<8x8xf32>
    %c55_245 = arith.constant 55 : index
    %808 = memref.load %arg2[%c55_245] : memref<108xf32, #tpu.memory_space<smem>>
    %809 = vector.broadcast %808 : f32 to vector<8x8xf32>
    %810 = arith.mulf %809, %528 : vector<8x8xf32>
    %811 = arith.addf %807, %810 : vector<8x8xf32>
    %c56_246 = arith.constant 56 : index
    %812 = memref.load %arg2[%c56_246] : memref<108xf32, #tpu.memory_space<smem>>
    %813 = vector.broadcast %812 : f32 to vector<8x8xf32>
    %814 = arith.mulf %813, %530 : vector<8x8xf32>
    %815 = arith.addf %811, %814 : vector<8x8xf32>
    %c57_247 = arith.constant 57 : index
    %816 = memref.load %arg2[%c57_247] : memref<108xf32, #tpu.memory_space<smem>>
    %817 = vector.broadcast %816 : f32 to vector<8x8xf32>
    %818 = arith.mulf %817, %532 : vector<8x8xf32>
    %819 = arith.addf %815, %818 : vector<8x8xf32>
    %c58_248 = arith.constant 58 : index
    %820 = memref.load %arg2[%c58_248] : memref<108xf32, #tpu.memory_space<smem>>
    %821 = vector.broadcast %820 : f32 to vector<8x8xf32>
    %822 = arith.mulf %821, %534 : vector<8x8xf32>
    %823 = arith.addf %819, %822 : vector<8x8xf32>
    %c59_249 = arith.constant 59 : index
    %824 = memref.load %arg2[%c59_249] : memref<108xf32, #tpu.memory_space<smem>>
    %825 = vector.broadcast %824 : f32 to vector<8x8xf32>
    %826 = arith.mulf %825, %536 : vector<8x8xf32>
    %827 = arith.addf %823, %826 : vector<8x8xf32>
    %c60_250 = arith.constant 60 : index
    %828 = memref.load %arg2[%c60_250] : memref<108xf32, #tpu.memory_space<smem>>
    %829 = vector.broadcast %828 : f32 to vector<8x8xf32>
    %830 = arith.mulf %829, %538 : vector<8x8xf32>
    %831 = arith.addf %827, %830 : vector<8x8xf32>
    %c61_251 = arith.constant 61 : index
    %832 = memref.load %arg2[%c61_251] : memref<108xf32, #tpu.memory_space<smem>>
    %833 = vector.broadcast %832 : f32 to vector<8x8xf32>
    %834 = arith.mulf %833, %540 : vector<8x8xf32>
    %835 = arith.addf %831, %834 : vector<8x8xf32>
    %c62_252 = arith.constant 62 : index
    %836 = memref.load %arg2[%c62_252] : memref<108xf32, #tpu.memory_space<smem>>
    %837 = vector.broadcast %836 : f32 to vector<8x8xf32>
    %838 = arith.mulf %837, %542 : vector<8x8xf32>
    %839 = arith.addf %835, %838 : vector<8x8xf32>
    %c63_253 = arith.constant 63 : index
    %840 = memref.load %arg2[%c63_253] : memref<108xf32, #tpu.memory_space<smem>>
    %841 = vector.broadcast %840 : f32 to vector<8x8xf32>
    %842 = arith.mulf %841, %544 : vector<8x8xf32>
    %843 = arith.addf %839, %842 : vector<8x8xf32>
    %c64_254 = arith.constant 64 : index
    %844 = memref.load %arg2[%c64_254] : memref<108xf32, #tpu.memory_space<smem>>
    %845 = vector.broadcast %844 : f32 to vector<8x8xf32>
    %846 = arith.mulf %845, %546 : vector<8x8xf32>
    %847 = arith.addf %843, %846 : vector<8x8xf32>
    %c65_255 = arith.constant 65 : index
    %848 = memref.load %arg2[%c65_255] : memref<108xf32, #tpu.memory_space<smem>>
    %849 = vector.broadcast %848 : f32 to vector<8x8xf32>
    %850 = arith.mulf %849, %548 : vector<8x8xf32>
    %851 = arith.addf %847, %850 : vector<8x8xf32>
    %c66_256 = arith.constant 66 : index
    %852 = memref.load %arg2[%c66_256] : memref<108xf32, #tpu.memory_space<smem>>
    %853 = vector.broadcast %852 : f32 to vector<8x8xf32>
    %854 = arith.mulf %853, %550 : vector<8x8xf32>
    %855 = arith.addf %851, %854 : vector<8x8xf32>
    %c67_257 = arith.constant 67 : index
    %856 = memref.load %arg2[%c67_257] : memref<108xf32, #tpu.memory_space<smem>>
    %857 = vector.broadcast %856 : f32 to vector<8x8xf32>
    %858 = arith.mulf %857, %552 : vector<8x8xf32>
    %859 = arith.addf %855, %858 : vector<8x8xf32>
    %c68_258 = arith.constant 68 : index
    %860 = memref.load %arg2[%c68_258] : memref<108xf32, #tpu.memory_space<smem>>
    %861 = vector.broadcast %860 : f32 to vector<8x8xf32>
    %862 = arith.mulf %861, %554 : vector<8x8xf32>
    %863 = arith.addf %859, %862 : vector<8x8xf32>
    %c69_259 = arith.constant 69 : index
    %864 = memref.load %arg2[%c69_259] : memref<108xf32, #tpu.memory_space<smem>>
    %865 = vector.broadcast %864 : f32 to vector<8x8xf32>
    %866 = arith.mulf %865, %556 : vector<8x8xf32>
    %867 = arith.addf %863, %866 : vector<8x8xf32>
    %c70_260 = arith.constant 70 : index
    %868 = memref.load %arg2[%c70_260] : memref<108xf32, #tpu.memory_space<smem>>
    %869 = vector.broadcast %868 : f32 to vector<8x8xf32>
    %870 = arith.mulf %869, %558 : vector<8x8xf32>
    %871 = arith.addf %867, %870 : vector<8x8xf32>
    %c71_261 = arith.constant 71 : index
    %872 = memref.load %arg2[%c71_261] : memref<108xf32, #tpu.memory_space<smem>>
    %873 = vector.broadcast %872 : f32 to vector<8x8xf32>
    %874 = arith.mulf %873, %560 : vector<8x8xf32>
    %875 = arith.addf %871, %874 : vector<8x8xf32>
    %c72_262 = arith.constant 72 : index
    %876 = memref.load %arg2[%c72_262] : memref<108xf32, #tpu.memory_space<smem>>
    %877 = vector.broadcast %876 : f32 to vector<8x8xf32>
    %878 = arith.mulf %877, %562 : vector<8x8xf32>
    %879 = arith.addf %875, %878 : vector<8x8xf32>
    %c73_263 = arith.constant 73 : index
    %880 = memref.load %arg2[%c73_263] : memref<108xf32, #tpu.memory_space<smem>>
    %881 = vector.broadcast %880 : f32 to vector<8x8xf32>
    %882 = arith.mulf %881, %564 : vector<8x8xf32>
    %883 = arith.addf %879, %882 : vector<8x8xf32>
    %c74_264 = arith.constant 74 : index
    %884 = memref.load %arg2[%c74_264] : memref<108xf32, #tpu.memory_space<smem>>
    %885 = vector.broadcast %884 : f32 to vector<8x8xf32>
    %886 = arith.mulf %885, %566 : vector<8x8xf32>
    %887 = arith.addf %883, %886 : vector<8x8xf32>
    %c75_265 = arith.constant 75 : index
    %888 = memref.load %arg2[%c75_265] : memref<108xf32, #tpu.memory_space<smem>>
    %889 = vector.broadcast %888 : f32 to vector<8x8xf32>
    %890 = arith.mulf %889, %568 : vector<8x8xf32>
    %891 = arith.addf %887, %890 : vector<8x8xf32>
    %c76_266 = arith.constant 76 : index
    %892 = memref.load %arg2[%c76_266] : memref<108xf32, #tpu.memory_space<smem>>
    %893 = vector.broadcast %892 : f32 to vector<8x8xf32>
    %894 = arith.mulf %893, %570 : vector<8x8xf32>
    %895 = arith.addf %891, %894 : vector<8x8xf32>
    %c77_267 = arith.constant 77 : index
    %896 = memref.load %arg2[%c77_267] : memref<108xf32, #tpu.memory_space<smem>>
    %897 = vector.broadcast %896 : f32 to vector<8x8xf32>
    %898 = arith.mulf %897, %572 : vector<8x8xf32>
    %899 = arith.addf %895, %898 : vector<8x8xf32>
    %c78_268 = arith.constant 78 : index
    %900 = memref.load %arg2[%c78_268] : memref<108xf32, #tpu.memory_space<smem>>
    %901 = vector.broadcast %900 : f32 to vector<8x8xf32>
    %902 = arith.mulf %901, %574 : vector<8x8xf32>
    %903 = arith.addf %899, %902 : vector<8x8xf32>
    %c79_269 = arith.constant 79 : index
    %904 = memref.load %arg2[%c79_269] : memref<108xf32, #tpu.memory_space<smem>>
    %905 = vector.broadcast %904 : f32 to vector<8x8xf32>
    %906 = arith.mulf %905, %576 : vector<8x8xf32>
    %907 = arith.addf %903, %906 : vector<8x8xf32>
    %c80_270 = arith.constant 80 : index
    %908 = memref.load %arg2[%c80_270] : memref<108xf32, #tpu.memory_space<smem>>
    %909 = vector.broadcast %908 : f32 to vector<8x8xf32>
    %910 = arith.mulf %909, %578 : vector<8x8xf32>
    %911 = arith.addf %907, %910 : vector<8x8xf32>
    %c2_271 = arith.constant 2 : index
    %c1_272 = arith.constant 1 : index
    %c1_273 = arith.constant 1 : index
    %912 = vector.load %arg10[%c2_271, %c1_272, %c1_273] : memref<4x16x16xf32, #tpu.memory_space<vmem>>, vector<1x8x8xf32>
    %913 = vector.shape_cast %912 : vector<1x8x8xf32> to vector<8x8xf32>
    %914 = vector.shape_cast %911 : vector<8x8xf32> to vector<1x8x8xf32>
    tpu.vector_store %arg10[%c2_271, %c1_272, %c1_273], %914 {strides = array<i32>} : memref<4x16x16xf32, #tpu.memory_space<vmem>>, vector<1x8x8xf32>,
    %cst_274 = arith.constant 0.000000e+00 : f32
    %915 = vector.broadcast %cst_274 : f32 to vector<8x8xf32>
    %c81 = arith.constant 81 : index
    %916 = memref.load %arg2[%c81] : memref<108xf32, #tpu.memory_space<smem>>
    %917 = vector.broadcast %916 : f32 to vector<8x8xf32>
    %918 = arith.mulf %917, %526 : vector<8x8xf32>
    %919 = arith.addf %915, %918 : vector<8x8xf32>
    %c82 = arith.constant 82 : index
    %920 = memref.load %arg2[%c82] : memref<108xf32, #tpu.memory_space<smem>>
    %921 = vector.broadcast %920 : f32 to vector<8x8xf32>
    %922 = arith.mulf %921, %528 : vector<8x8xf32>
    %923 = arith.addf %919, %922 : vector<8x8xf32>
    %c83 = arith.constant 83 : index
    %924 = memref.load %arg2[%c83] : memref<108xf32, #tpu.memory_space<smem>>
    %925 = vector.broadcast %924 : f32 to vector<8x8xf32>
    %926 = arith.mulf %925, %530 : vector<8x8xf32>
    %927 = arith.addf %923, %926 : vector<8x8xf32>
    %c84 = arith.constant 84 : index
    %928 = memref.load %arg2[%c84] : memref<108xf32, #tpu.memory_space<smem>>
    %929 = vector.broadcast %928 : f32 to vector<8x8xf32>
    %930 = arith.mulf %929, %532 : vector<8x8xf32>
    %931 = arith.addf %927, %930 : vector<8x8xf32>
    %c85 = arith.constant 85 : index
    %932 = memref.load %arg2[%c85] : memref<108xf32, #tpu.memory_space<smem>>
    %933 = vector.broadcast %932 : f32 to vector<8x8xf32>
    %934 = arith.mulf %933, %534 : vector<8x8xf32>
    %935 = arith.addf %931, %934 : vector<8x8xf32>
    %c86 = arith.constant 86 : index
    %936 = memref.load %arg2[%c86] : memref<108xf32, #tpu.memory_space<smem>>
    %937 = vector.broadcast %936 : f32 to vector<8x8xf32>
    %938 = arith.mulf %937, %536 : vector<8x8xf32>
    %939 = arith.addf %935, %938 : vector<8x8xf32>
    %c87 = arith.constant 87 : index
    %940 = memref.load %arg2[%c87] : memref<108xf32, #tpu.memory_space<smem>>
    %941 = vector.broadcast %940 : f32 to vector<8x8xf32>
    %942 = arith.mulf %941, %538 : vector<8x8xf32>
    %943 = arith.addf %939, %942 : vector<8x8xf32>
    %c88 = arith.constant 88 : index
    %944 = memref.load %arg2[%c88] : memref<108xf32, #tpu.memory_space<smem>>
    %945 = vector.broadcast %944 : f32 to vector<8x8xf32>
    %946 = arith.mulf %945, %540 : vector<8x8xf32>
    %947 = arith.addf %943, %946 : vector<8x8xf32>
    %c89 = arith.constant 89 : index
    %948 = memref.load %arg2[%c89] : memref<108xf32, #tpu.memory_space<smem>>
    %949 = vector.broadcast %948 : f32 to vector<8x8xf32>
    %950 = arith.mulf %949, %542 : vector<8x8xf32>
    %951 = arith.addf %947, %950 : vector<8x8xf32>
    %c90 = arith.constant 90 : index
    %952 = memref.load %arg2[%c90] : memref<108xf32, #tpu.memory_space<smem>>
    %953 = vector.broadcast %952 : f32 to vector<8x8xf32>
    %954 = arith.mulf %953, %544 : vector<8x8xf32>
    %955 = arith.addf %951, %954 : vector<8x8xf32>
    %c91 = arith.constant 91 : index
    %956 = memref.load %arg2[%c91] : memref<108xf32, #tpu.memory_space<smem>>
    %957 = vector.broadcast %956 : f32 to vector<8x8xf32>
    %958 = arith.mulf %957, %546 : vector<8x8xf32>
    %959 = arith.addf %955, %958 : vector<8x8xf32>
    %c92 = arith.constant 92 : index
    %960 = memref.load %arg2[%c92] : memref<108xf32, #tpu.memory_space<smem>>
    %961 = vector.broadcast %960 : f32 to vector<8x8xf32>
    %962 = arith.mulf %961, %548 : vector<8x8xf32>
    %963 = arith.addf %959, %962 : vector<8x8xf32>
    %c93 = arith.constant 93 : index
    %964 = memref.load %arg2[%c93] : memref<108xf32, #tpu.memory_space<smem>>
    %965 = vector.broadcast %964 : f32 to vector<8x8xf32>
    %966 = arith.mulf %965, %550 : vector<8x8xf32>
    %967 = arith.addf %963, %966 : vector<8x8xf32>
    %c94 = arith.constant 94 : index
    %968 = memref.load %arg2[%c94] : memref<108xf32, #tpu.memory_space<smem>>
    %969 = vector.broadcast %968 : f32 to vector<8x8xf32>
    %970 = arith.mulf %969, %552 : vector<8x8xf32>
    %971 = arith.addf %967, %970 : vector<8x8xf32>
    %c95 = arith.constant 95 : index
    %972 = memref.load %arg2[%c95] : memref<108xf32, #tpu.memory_space<smem>>
    %973 = vector.broadcast %972 : f32 to vector<8x8xf32>
    %974 = arith.mulf %973, %554 : vector<8x8xf32>
    %975 = arith.addf %971, %974 : vector<8x8xf32>
    %c96 = arith.constant 96 : index
    %976 = memref.load %arg2[%c96] : memref<108xf32, #tpu.memory_space<smem>>
    %977 = vector.broadcast %976 : f32 to vector<8x8xf32>
    %978 = arith.mulf %977, %556 : vector<8x8xf32>
    %979 = arith.addf %975, %978 : vector<8x8xf32>
    %c97 = arith.constant 97 : index
    %980 = memref.load %arg2[%c97] : memref<108xf32, #tpu.memory_space<smem>>
    %981 = vector.broadcast %980 : f32 to vector<8x8xf32>
    %982 = arith.mulf %981, %558 : vector<8x8xf32>
    %983 = arith.addf %979, %982 : vector<8x8xf32>
    %c98 = arith.constant 98 : index
    %984 = memref.load %arg2[%c98] : memref<108xf32, #tpu.memory_space<smem>>
    %985 = vector.broadcast %984 : f32 to vector<8x8xf32>
    %986 = arith.mulf %985, %560 : vector<8x8xf32>
    %987 = arith.addf %983, %986 : vector<8x8xf32>
    %c99 = arith.constant 99 : index
    %988 = memref.load %arg2[%c99] : memref<108xf32, #tpu.memory_space<smem>>
    %989 = vector.broadcast %988 : f32 to vector<8x8xf32>
    %990 = arith.mulf %989, %562 : vector<8x8xf32>
    %991 = arith.addf %987, %990 : vector<8x8xf32>
    %c100 = arith.constant 100 : index
    %992 = memref.load %arg2[%c100] : memref<108xf32, #tpu.memory_space<smem>>
    %993 = vector.broadcast %992 : f32 to vector<8x8xf32>
    %994 = arith.mulf %993, %564 : vector<8x8xf32>
    %995 = arith.addf %991, %994 : vector<8x8xf32>
    %c101 = arith.constant 101 : index
    %996 = memref.load %arg2[%c101] : memref<108xf32, #tpu.memory_space<smem>>
    %997 = vector.broadcast %996 : f32 to vector<8x8xf32>
    %998 = arith.mulf %997, %566 : vector<8x8xf32>
    %999 = arith.addf %995, %998 : vector<8x8xf32>
    %c102 = arith.constant 102 : index
    %1000 = memref.load %arg2[%c102] : memref<108xf32, #tpu.memory_space<smem>>
    %1001 = vector.broadcast %1000 : f32 to vector<8x8xf32>
    %1002 = arith.mulf %1001, %568 : vector<8x8xf32>
    %1003 = arith.addf %999, %1002 : vector<8x8xf32>
    %c103 = arith.constant 103 : index
    %1004 = memref.load %arg2[%c103] : memref<108xf32, #tpu.memory_space<smem>>
    %1005 = vector.broadcast %1004 : f32 to vector<8x8xf32>
    %1006 = arith.mulf %1005, %570 : vector<8x8xf32>
    %1007 = arith.addf %1003, %1006 : vector<8x8xf32>
    %c104 = arith.constant 104 : index
    %1008 = memref.load %arg2[%c104] : memref<108xf32, #tpu.memory_space<smem>>
    %1009 = vector.broadcast %1008 : f32 to vector<8x8xf32>
    %1010 = arith.mulf %1009, %572 : vector<8x8xf32>
    %1011 = arith.addf %1007, %1010 : vector<8x8xf32>
    %c105 = arith.constant 105 : index
    %1012 = memref.load %arg2[%c105] : memref<108xf32, #tpu.memory_space<smem>>
    %1013 = vector.broadcast %1012 : f32 to vector<8x8xf32>
    %1014 = arith.mulf %1013, %574 : vector<8x8xf32>
    %1015 = arith.addf %1011, %1014 : vector<8x8xf32>
    %c106 = arith.constant 106 : index
    %1016 = memref.load %arg2[%c106] : memref<108xf32, #tpu.memory_space<smem>>
    %1017 = vector.broadcast %1016 : f32 to vector<8x8xf32>
    %1018 = arith.mulf %1017, %576 : vector<8x8xf32>
    %1019 = arith.addf %1015, %1018 : vector<8x8xf32>
    %c107 = arith.constant 107 : index
    %1020 = memref.load %arg2[%c107] : memref<108xf32, #tpu.memory_space<smem>>
    %1021 = vector.broadcast %1020 : f32 to vector<8x8xf32>
    %1022 = arith.mulf %1021, %578 : vector<8x8xf32>
    %1023 = arith.addf %1019, %1022 : vector<8x8xf32>
    %c3_275 = arith.constant 3 : index
    %c1_276 = arith.constant 1 : index
    %c1_277 = arith.constant 1 : index
    %1024 = vector.load %arg10[%c3_275, %c1_276, %c1_277] : memref<4x16x16xf32, #tpu.memory_space<vmem>>, vector<1x8x8xf32>
    %1025 = vector.shape_cast %1024 : vector<1x8x8xf32> to vector<8x8xf32>
    %1026 = vector.shape_cast %1023 : vector<8x8xf32> to vector<1x8x8xf32>
    tpu.vector_store %arg10[%c3_275, %c1_276, %c1_277], %1026 {strides = array<i32>} : memref<4x16x16xf32, #tpu.memory_space<vmem>>, vector<1x8x8xf32>,
    %c0_278 = arith.constant 0 : index
    %c0_279 = arith.constant 0 : index
    %c0_280 = arith.constant 0 : index
    %1027 = vector.load %arg10[%c0_278, %c0_279, %c0_280] : memref<4x16x16xf32, #tpu.memory_space<vmem>>, vector<1x8x8xf32>
    %1028 = vector.shape_cast %1027 : vector<1x8x8xf32> to vector<8x8xf32>
    %c0_281 = arith.constant 0 : index
    %c0_282 = arith.constant 0 : index
    %c1_283 = arith.constant 1 : index
    %1029 = vector.load %arg10[%c0_281, %c0_282, %c1_283] : memref<4x16x16xf32, #tpu.memory_space<vmem>>, vector<1x8x8xf32>
    %1030 = vector.shape_cast %1029 : vector<1x8x8xf32> to vector<8x8xf32>
    %c0_284 = arith.constant 0 : index
    %c0_285 = arith.constant 0 : index
    %c2_286 = arith.constant 2 : index
    %1031 = vector.load %arg10[%c0_284, %c0_285, %c2_286] : memref<4x16x16xf32, #tpu.memory_space<vmem>>, vector<1x8x8xf32>
    %1032 = vector.shape_cast %1031 : vector<1x8x8xf32> to vector<8x8xf32>
    %c0_287 = arith.constant 0 : index
    %c1_288 = arith.constant 1 : index
    %c0_289 = arith.constant 0 : index
    %1033 = vector.load %arg10[%c0_287, %c1_288, %c0_289] : memref<4x16x16xf32, #tpu.memory_space<vmem>>, vector<1x8x8xf32>
    %1034 = vector.shape_cast %1033 : vector<1x8x8xf32> to vector<8x8xf32>
    %c0_290 = arith.constant 0 : index
    %c1_291 = arith.constant 1 : index
    %c1_292 = arith.constant 1 : index
    %1035 = vector.load %arg10[%c0_290, %c1_291, %c1_292] : memref<4x16x16xf32, #tpu.memory_space<vmem>>, vector<1x8x8xf32>
    %1036 = vector.shape_cast %1035 : vector<1x8x8xf32> to vector<8x8xf32>
    %c0_293 = arith.constant 0 : index
    %c1_294 = arith.constant 1 : index
    %c2_295 = arith.constant 2 : index
    %1037 = vector.load %arg10[%c0_293, %c1_294, %c2_295] : memref<4x16x16xf32, #tpu.memory_space<vmem>>, vector<1x8x8xf32>
    %1038 = vector.shape_cast %1037 : vector<1x8x8xf32> to vector<8x8xf32>
    %c0_296 = arith.constant 0 : index
    %c2_297 = arith.constant 2 : index
    %c0_298 = arith.constant 0 : index
    %1039 = vector.load %arg10[%c0_296, %c2_297, %c0_298] : memref<4x16x16xf32, #tpu.memory_space<vmem>>, vector<1x8x8xf32>
    %1040 = vector.shape_cast %1039 : vector<1x8x8xf32> to vector<8x8xf32>
    %c0_299 = arith.constant 0 : index
    %c2_300 = arith.constant 2 : index
    %c1_301 = arith.constant 1 : index
    %1041 = vector.load %arg10[%c0_299, %c2_300, %c1_301] : memref<4x16x16xf32, #tpu.memory_space<vmem>>, vector<1x8x8xf32>
    %1042 = vector.shape_cast %1041 : vector<1x8x8xf32> to vector<8x8xf32>
    %c0_302 = arith.constant 0 : index
    %c2_303 = arith.constant 2 : index
    %c2_304 = arith.constant 2 : index
    %1043 = vector.load %arg10[%c0_302, %c2_303, %c2_304] : memref<4x16x16xf32, #tpu.memory_space<vmem>>, vector<1x8x8xf32>
    %1044 = vector.shape_cast %1043 : vector<1x8x8xf32> to vector<8x8xf32>
    %c1_305 = arith.constant 1 : index
    %c0_306 = arith.constant 0 : index
    %c0_307 = arith.constant 0 : index
    %1045 = vector.load %arg10[%c1_305, %c0_306, %c0_307] : memref<4x16x16xf32, #tpu.memory_space<vmem>>, vector<1x8x8xf32>
    %1046 = vector.shape_cast %1045 : vector<1x8x8xf32> to vector<8x8xf32>
    %c1_308 = arith.constant 1 : index
    %c0_309 = arith.constant 0 : index
    %c1_310 = arith.constant 1 : index
    %1047 = vector.load %arg10[%c1_308, %c0_309, %c1_310] : memref<4x16x16xf32, #tpu.memory_space<vmem>>, vector<1x8x8xf32>
    %1048 = vector.shape_cast %1047 : vector<1x8x8xf32> to vector<8x8xf32>
    %c1_311 = arith.constant 1 : index
    %c0_312 = arith.constant 0 : index
    %c2_313 = arith.constant 2 : index
    %1049 = vector.load %arg10[%c1_311, %c0_312, %c2_313] : memref<4x16x16xf32, #tpu.memory_space<vmem>>, vector<1x8x8xf32>
    %1050 = vector.shape_cast %1049 : vector<1x8x8xf32> to vector<8x8xf32>
    %c1_314 = arith.constant 1 : index
    %c1_315 = arith.constant 1 : index
    %c0_316 = arith.constant 0 : index
    %1051 = vector.load %arg10[%c1_314, %c1_315, %c0_316] : memref<4x16x16xf32, #tpu.memory_space<vmem>>, vector<1x8x8xf32>
    %1052 = vector.shape_cast %1051 : vector<1x8x8xf32> to vector<8x8xf32>
    %c1_317 = arith.constant 1 : index
    %c1_318 = arith.constant 1 : index
    %c1_319 = arith.constant 1 : index
    %1053 = vector.load %arg10[%c1_317, %c1_318, %c1_319] : memref<4x16x16xf32, #tpu.memory_space<vmem>>, vector<1x8x8xf32>
    %1054 = vector.shape_cast %1053 : vector<1x8x8xf32> to vector<8x8xf32>
    %c1_320 = arith.constant 1 : index
    %c1_321 = arith.constant 1 : index
    %c2_322 = arith.constant 2 : index
    %1055 = vector.load %arg10[%c1_320, %c1_321, %c2_322] : memref<4x16x16xf32, #tpu.memory_space<vmem>>, vector<1x8x8xf32>
    %1056 = vector.shape_cast %1055 : vector<1x8x8xf32> to vector<8x8xf32>
    %c1_323 = arith.constant 1 : index
    %c2_324 = arith.constant 2 : index
    %c0_325 = arith.constant 0 : index
    %1057 = vector.load %arg10[%c1_323, %c2_324, %c0_325] : memref<4x16x16xf32, #tpu.memory_space<vmem>>, vector<1x8x8xf32>
    %1058 = vector.shape_cast %1057 : vector<1x8x8xf32> to vector<8x8xf32>
    %c1_326 = arith.constant 1 : index
    %c2_327 = arith.constant 2 : index
    %c1_328 = arith.constant 1 : index
    %1059 = vector.load %arg10[%c1_326, %c2_327, %c1_328] : memref<4x16x16xf32, #tpu.memory_space<vmem>>, vector<1x8x8xf32>
    %1060 = vector.shape_cast %1059 : vector<1x8x8xf32> to vector<8x8xf32>
    %c1_329 = arith.constant 1 : index
    %c2_330 = arith.constant 2 : index
    %c2_331 = arith.constant 2 : index
    %1061 = vector.load %arg10[%c1_329, %c2_330, %c2_331] : memref<4x16x16xf32, #tpu.memory_space<vmem>>, vector<1x8x8xf32>
    %1062 = vector.shape_cast %1061 : vector<1x8x8xf32> to vector<8x8xf32>
    %c2_332 = arith.constant 2 : index
    %c0_333 = arith.constant 0 : index
    %c0_334 = arith.constant 0 : index
    %1063 = vector.load %arg10[%c2_332, %c0_333, %c0_334] : memref<4x16x16xf32, #tpu.memory_space<vmem>>, vector<1x8x8xf32>
    %1064 = vector.shape_cast %1063 : vector<1x8x8xf32> to vector<8x8xf32>
    %c2_335 = arith.constant 2 : index
    %c0_336 = arith.constant 0 : index
    %c1_337 = arith.constant 1 : index
    %1065 = vector.load %arg10[%c2_335, %c0_336, %c1_337] : memref<4x16x16xf32, #tpu.memory_space<vmem>>, vector<1x8x8xf32>
    %1066 = vector.shape_cast %1065 : vector<1x8x8xf32> to vector<8x8xf32>
    %c2_338 = arith.constant 2 : index
    %c0_339 = arith.constant 0 : index
    %c2_340 = arith.constant 2 : index
    %1067 = vector.load %arg10[%c2_338, %c0_339, %c2_340] : memref<4x16x16xf32, #tpu.memory_space<vmem>>, vector<1x8x8xf32>
    %1068 = vector.shape_cast %1067 : vector<1x8x8xf32> to vector<8x8xf32>
    %c2_341 = arith.constant 2 : index
    %c1_342 = arith.constant 1 : index
    %c0_343 = arith.constant 0 : index
    %1069 = vector.load %arg10[%c2_341, %c1_342, %c0_343] : memref<4x16x16xf32, #tpu.memory_space<vmem>>, vector<1x8x8xf32>
    %1070 = vector.shape_cast %1069 : vector<1x8x8xf32> to vector<8x8xf32>
    %c2_344 = arith.constant 2 : index
    %c1_345 = arith.constant 1 : index
    %c1_346 = arith.constant 1 : index
    %1071 = vector.load %arg10[%c2_344, %c1_345, %c1_346] : memref<4x16x16xf32, #tpu.memory_space<vmem>>, vector<1x8x8xf32>
    %1072 = vector.shape_cast %1071 : vector<1x8x8xf32> to vector<8x8xf32>
    %c2_347 = arith.constant 2 : index
    %c1_348 = arith.constant 1 : index
    %c2_349 = arith.constant 2 : index
    %1073 = vector.load %arg10[%c2_347, %c1_348, %c2_349] : memref<4x16x16xf32, #tpu.memory_space<vmem>>, vector<1x8x8xf32>
    %1074 = vector.shape_cast %1073 : vector<1x8x8xf32> to vector<8x8xf32>
    %c2_350 = arith.constant 2 : index
    %c2_351 = arith.constant 2 : index
    %c0_352 = arith.constant 0 : index
    %1075 = vector.load %arg10[%c2_350, %c2_351, %c0_352] : memref<4x16x16xf32, #tpu.memory_space<vmem>>, vector<1x8x8xf32>
    %1076 = vector.shape_cast %1075 : vector<1x8x8xf32> to vector<8x8xf32>
    %c2_353 = arith.constant 2 : index
    %c2_354 = arith.constant 2 : index
    %c1_355 = arith.constant 1 : index
    %1077 = vector.load %arg10[%c2_353, %c2_354, %c1_355] : memref<4x16x16xf32, #tpu.memory_space<vmem>>, vector<1x8x8xf32>
    %1078 = vector.shape_cast %1077 : vector<1x8x8xf32> to vector<8x8xf32>
    %c2_356 = arith.constant 2 : index
    %c2_357 = arith.constant 2 : index
    %c2_358 = arith.constant 2 : index
    %1079 = vector.load %arg10[%c2_356, %c2_357, %c2_358] : memref<4x16x16xf32, #tpu.memory_space<vmem>>, vector<1x8x8xf32>
    %1080 = vector.shape_cast %1079 : vector<1x8x8xf32> to vector<8x8xf32>
    %c3_359 = arith.constant 3 : index
    %c0_360 = arith.constant 0 : index
    %c0_361 = arith.constant 0 : index
    %1081 = vector.load %arg10[%c3_359, %c0_360, %c0_361] : memref<4x16x16xf32, #tpu.memory_space<vmem>>, vector<1x8x8xf32>
    %1082 = vector.shape_cast %1081 : vector<1x8x8xf32> to vector<8x8xf32>
    %c3_362 = arith.constant 3 : index
    %c0_363 = arith.constant 0 : index
    %c1_364 = arith.constant 1 : index
    %1083 = vector.load %arg10[%c3_362, %c0_363, %c1_364] : memref<4x16x16xf32, #tpu.memory_space<vmem>>, vector<1x8x8xf32>
    %1084 = vector.shape_cast %1083 : vector<1x8x8xf32> to vector<8x8xf32>
    %c3_365 = arith.constant 3 : index
    %c0_366 = arith.constant 0 : index
    %c2_367 = arith.constant 2 : index
    %1085 = vector.load %arg10[%c3_365, %c0_366, %c2_367] : memref<4x16x16xf32, #tpu.memory_space<vmem>>, vector<1x8x8xf32>
    %1086 = vector.shape_cast %1085 : vector<1x8x8xf32> to vector<8x8xf32>
    %c3_368 = arith.constant 3 : index
    %c1_369 = arith.constant 1 : index
    %c0_370 = arith.constant 0 : index
    %1087 = vector.load %arg10[%c3_368, %c1_369, %c0_370] : memref<4x16x16xf32, #tpu.memory_space<vmem>>, vector<1x8x8xf32>
    %1088 = vector.shape_cast %1087 : vector<1x8x8xf32> to vector<8x8xf32>
    %c3_371 = arith.constant 3 : index
    %c1_372 = arith.constant 1 : index
    %c1_373 = arith.constant 1 : index
    %1089 = vector.load %arg10[%c3_371, %c1_372, %c1_373] : memref<4x16x16xf32, #tpu.memory_space<vmem>>, vector<1x8x8xf32>
    %1090 = vector.shape_cast %1089 : vector<1x8x8xf32> to vector<8x8xf32>
    %c3_374 = arith.constant 3 : index
    %c1_375 = arith.constant 1 : index
    %c2_376 = arith.constant 2 : index
    %1091 = vector.load %arg10[%c3_374, %c1_375, %c2_376] : memref<4x16x16xf32, #tpu.memory_space<vmem>>, vector<1x8x8xf32>
    %1092 = vector.shape_cast %1091 : vector<1x8x8xf32> to vector<8x8xf32>
    %c3_377 = arith.constant 3 : index
    %c2_378 = arith.constant 2 : index
    %c0_379 = arith.constant 0 : index
    %1093 = vector.load %arg10[%c3_377, %c2_378, %c0_379] : memref<4x16x16xf32, #tpu.memory_space<vmem>>, vector<1x8x8xf32>
    %1094 = vector.shape_cast %1093 : vector<1x8x8xf32> to vector<8x8xf32>
    %c3_380 = arith.constant 3 : index
    %c2_381 = arith.constant 2 : index
    %c1_382 = arith.constant 1 : index
    %1095 = vector.load %arg10[%c3_380, %c2_381, %c1_382] : memref<4x16x16xf32, #tpu.memory_space<vmem>>, vector<1x8x8xf32>
    %1096 = vector.shape_cast %1095 : vector<1x8x8xf32> to vector<8x8xf32>
    %c3_383 = arith.constant 3 : index
    %c2_384 = arith.constant 2 : index
    %c2_385 = arith.constant 2 : index
    %1097 = vector.load %arg10[%c3_383, %c2_384, %c2_385] : memref<4x16x16xf32, #tpu.memory_space<vmem>>, vector<1x8x8xf32>
    %1098 = vector.shape_cast %1097 : vector<1x8x8xf32> to vector<8x8xf32>
    %cst_386 = arith.constant 0.000000e+00 : f32
    %1099 = vector.broadcast %cst_386 : f32 to vector<8x8xf32>
    %c0_387 = arith.constant 0 : index
    %1100 = memref.load %arg3[%c0_387] : memref<144xf32, #tpu.memory_space<smem>>
    %1101 = vector.broadcast %1100 : f32 to vector<8x8xf32>
    %1102 = arith.mulf %1101, %1028 : vector<8x8xf32>
    %1103 = arith.addf %1099, %1102 : vector<8x8xf32>
    %c1_388 = arith.constant 1 : index
    %1104 = memref.load %arg3[%c1_388] : memref<144xf32, #tpu.memory_space<smem>>
    %1105 = vector.broadcast %1104 : f32 to vector<8x8xf32>
    %1106 = arith.mulf %1105, %1030 : vector<8x8xf32>
    %1107 = arith.addf %1103, %1106 : vector<8x8xf32>
    %c2_389 = arith.constant 2 : index
    %1108 = memref.load %arg3[%c2_389] : memref<144xf32, #tpu.memory_space<smem>>
    %1109 = vector.broadcast %1108 : f32 to vector<8x8xf32>
    %1110 = arith.mulf %1109, %1032 : vector<8x8xf32>
    %1111 = arith.addf %1107, %1110 : vector<8x8xf32>
    %c3_390 = arith.constant 3 : index
    %1112 = memref.load %arg3[%c3_390] : memref<144xf32, #tpu.memory_space<smem>>
    %1113 = vector.broadcast %1112 : f32 to vector<8x8xf32>
    %1114 = arith.mulf %1113, %1034 : vector<8x8xf32>
    %1115 = arith.addf %1111, %1114 : vector<8x8xf32>
    %c4_391 = arith.constant 4 : index
    %1116 = memref.load %arg3[%c4_391] : memref<144xf32, #tpu.memory_space<smem>>
    %1117 = vector.broadcast %1116 : f32 to vector<8x8xf32>
    %1118 = arith.mulf %1117, %1036 : vector<8x8xf32>
    %1119 = arith.addf %1115, %1118 : vector<8x8xf32>
    %c5_392 = arith.constant 5 : index
    %1120 = memref.load %arg3[%c5_392] : memref<144xf32, #tpu.memory_space<smem>>
    %1121 = vector.broadcast %1120 : f32 to vector<8x8xf32>
    %1122 = arith.mulf %1121, %1038 : vector<8x8xf32>
    %1123 = arith.addf %1119, %1122 : vector<8x8xf32>
    %c6_393 = arith.constant 6 : index
    %1124 = memref.load %arg3[%c6_393] : memref<144xf32, #tpu.memory_space<smem>>
    %1125 = vector.broadcast %1124 : f32 to vector<8x8xf32>
    %1126 = arith.mulf %1125, %1040 : vector<8x8xf32>
    %1127 = arith.addf %1123, %1126 : vector<8x8xf32>
    %c7_394 = arith.constant 7 : index
    %1128 = memref.load %arg3[%c7_394] : memref<144xf32, #tpu.memory_space<smem>>
    %1129 = vector.broadcast %1128 : f32 to vector<8x8xf32>
    %1130 = arith.mulf %1129, %1042 : vector<8x8xf32>
    %1131 = arith.addf %1127, %1130 : vector<8x8xf32>
    %c8_395 = arith.constant 8 : index
    %1132 = memref.load %arg3[%c8_395] : memref<144xf32, #tpu.memory_space<smem>>
    %1133 = vector.broadcast %1132 : f32 to vector<8x8xf32>
    %1134 = arith.mulf %1133, %1044 : vector<8x8xf32>
    %1135 = arith.addf %1131, %1134 : vector<8x8xf32>
    %c9_396 = arith.constant 9 : index
    %1136 = memref.load %arg3[%c9_396] : memref<144xf32, #tpu.memory_space<smem>>
    %1137 = vector.broadcast %1136 : f32 to vector<8x8xf32>
    %1138 = arith.mulf %1137, %1046 : vector<8x8xf32>
    %1139 = arith.addf %1135, %1138 : vector<8x8xf32>
    %c10_397 = arith.constant 10 : index
    %1140 = memref.load %arg3[%c10_397] : memref<144xf32, #tpu.memory_space<smem>>
    %1141 = vector.broadcast %1140 : f32 to vector<8x8xf32>
    %1142 = arith.mulf %1141, %1048 : vector<8x8xf32>
    %1143 = arith.addf %1139, %1142 : vector<8x8xf32>
    %c11_398 = arith.constant 11 : index
    %1144 = memref.load %arg3[%c11_398] : memref<144xf32, #tpu.memory_space<smem>>
    %1145 = vector.broadcast %1144 : f32 to vector<8x8xf32>
    %1146 = arith.mulf %1145, %1050 : vector<8x8xf32>
    %1147 = arith.addf %1143, %1146 : vector<8x8xf32>
    %c12_399 = arith.constant 12 : index
    %1148 = memref.load %arg3[%c12_399] : memref<144xf32, #tpu.memory_space<smem>>
    %1149 = vector.broadcast %1148 : f32 to vector<8x8xf32>
    %1150 = arith.mulf %1149, %1052 : vector<8x8xf32>
    %1151 = arith.addf %1147, %1150 : vector<8x8xf32>
    %c13_400 = arith.constant 13 : index
    %1152 = memref.load %arg3[%c13_400] : memref<144xf32, #tpu.memory_space<smem>>
    %1153 = vector.broadcast %1152 : f32 to vector<8x8xf32>
    %1154 = arith.mulf %1153, %1054 : vector<8x8xf32>
    %1155 = arith.addf %1151, %1154 : vector<8x8xf32>
    %c14_401 = arith.constant 14 : index
    %1156 = memref.load %arg3[%c14_401] : memref<144xf32, #tpu.memory_space<smem>>
    %1157 = vector.broadcast %1156 : f32 to vector<8x8xf32>
    %1158 = arith.mulf %1157, %1056 : vector<8x8xf32>
    %1159 = arith.addf %1155, %1158 : vector<8x8xf32>
    %c15_402 = arith.constant 15 : index
    %1160 = memref.load %arg3[%c15_402] : memref<144xf32, #tpu.memory_space<smem>>
    %1161 = vector.broadcast %1160 : f32 to vector<8x8xf32>
    %1162 = arith.mulf %1161, %1058 : vector<8x8xf32>
    %1163 = arith.addf %1159, %1162 : vector<8x8xf32>
    %c16_403 = arith.constant 16 : index
    %1164 = memref.load %arg3[%c16_403] : memref<144xf32, #tpu.memory_space<smem>>
    %1165 = vector.broadcast %1164 : f32 to vector<8x8xf32>
    %1166 = arith.mulf %1165, %1060 : vector<8x8xf32>
    %1167 = arith.addf %1163, %1166 : vector<8x8xf32>
    %c17_404 = arith.constant 17 : index
    %1168 = memref.load %arg3[%c17_404] : memref<144xf32, #tpu.memory_space<smem>>
    %1169 = vector.broadcast %1168 : f32 to vector<8x8xf32>
    %1170 = arith.mulf %1169, %1062 : vector<8x8xf32>
    %1171 = arith.addf %1167, %1170 : vector<8x8xf32>
    %c18_405 = arith.constant 18 : index
    %1172 = memref.load %arg3[%c18_405] : memref<144xf32, #tpu.memory_space<smem>>
    %1173 = vector.broadcast %1172 : f32 to vector<8x8xf32>
    %1174 = arith.mulf %1173, %1064 : vector<8x8xf32>
    %1175 = arith.addf %1171, %1174 : vector<8x8xf32>
    %c19_406 = arith.constant 19 : index
    %1176 = memref.load %arg3[%c19_406] : memref<144xf32, #tpu.memory_space<smem>>
    %1177 = vector.broadcast %1176 : f32 to vector<8x8xf32>
    %1178 = arith.mulf %1177, %1066 : vector<8x8xf32>
    %1179 = arith.addf %1175, %1178 : vector<8x8xf32>
    %c20_407 = arith.constant 20 : index
    %1180 = memref.load %arg3[%c20_407] : memref<144xf32, #tpu.memory_space<smem>>
    %1181 = vector.broadcast %1180 : f32 to vector<8x8xf32>
    %1182 = arith.mulf %1181, %1068 : vector<8x8xf32>
    %1183 = arith.addf %1179, %1182 : vector<8x8xf32>
    %c21_408 = arith.constant 21 : index
    %1184 = memref.load %arg3[%c21_408] : memref<144xf32, #tpu.memory_space<smem>>
    %1185 = vector.broadcast %1184 : f32 to vector<8x8xf32>
    %1186 = arith.mulf %1185, %1070 : vector<8x8xf32>
    %1187 = arith.addf %1183, %1186 : vector<8x8xf32>
    %c22_409 = arith.constant 22 : index
    %1188 = memref.load %arg3[%c22_409] : memref<144xf32, #tpu.memory_space<smem>>
    %1189 = vector.broadcast %1188 : f32 to vector<8x8xf32>
    %1190 = arith.mulf %1189, %1072 : vector<8x8xf32>
    %1191 = arith.addf %1187, %1190 : vector<8x8xf32>
    %c23_410 = arith.constant 23 : index
    %1192 = memref.load %arg3[%c23_410] : memref<144xf32, #tpu.memory_space<smem>>
    %1193 = vector.broadcast %1192 : f32 to vector<8x8xf32>
    %1194 = arith.mulf %1193, %1074 : vector<8x8xf32>
    %1195 = arith.addf %1191, %1194 : vector<8x8xf32>
    %c24_411 = arith.constant 24 : index
    %1196 = memref.load %arg3[%c24_411] : memref<144xf32, #tpu.memory_space<smem>>
    %1197 = vector.broadcast %1196 : f32 to vector<8x8xf32>
    %1198 = arith.mulf %1197, %1076 : vector<8x8xf32>
    %1199 = arith.addf %1195, %1198 : vector<8x8xf32>
    %c25_412 = arith.constant 25 : index
    %1200 = memref.load %arg3[%c25_412] : memref<144xf32, #tpu.memory_space<smem>>
    %1201 = vector.broadcast %1200 : f32 to vector<8x8xf32>
    %1202 = arith.mulf %1201, %1078 : vector<8x8xf32>
    %1203 = arith.addf %1199, %1202 : vector<8x8xf32>
    %c26_413 = arith.constant 26 : index
    %1204 = memref.load %arg3[%c26_413] : memref<144xf32, #tpu.memory_space<smem>>
    %1205 = vector.broadcast %1204 : f32 to vector<8x8xf32>
    %1206 = arith.mulf %1205, %1080 : vector<8x8xf32>
    %1207 = arith.addf %1203, %1206 : vector<8x8xf32>
    %c27_414 = arith.constant 27 : index
    %1208 = memref.load %arg3[%c27_414] : memref<144xf32, #tpu.memory_space<smem>>
    %1209 = vector.broadcast %1208 : f32 to vector<8x8xf32>
    %1210 = arith.mulf %1209, %1082 : vector<8x8xf32>
    %1211 = arith.addf %1207, %1210 : vector<8x8xf32>
    %c28_415 = arith.constant 28 : index
    %1212 = memref.load %arg3[%c28_415] : memref<144xf32, #tpu.memory_space<smem>>
    %1213 = vector.broadcast %1212 : f32 to vector<8x8xf32>
    %1214 = arith.mulf %1213, %1084 : vector<8x8xf32>
    %1215 = arith.addf %1211, %1214 : vector<8x8xf32>
    %c29_416 = arith.constant 29 : index
    %1216 = memref.load %arg3[%c29_416] : memref<144xf32, #tpu.memory_space<smem>>
    %1217 = vector.broadcast %1216 : f32 to vector<8x8xf32>
    %1218 = arith.mulf %1217, %1086 : vector<8x8xf32>
    %1219 = arith.addf %1215, %1218 : vector<8x8xf32>
    %c30_417 = arith.constant 30 : index
    %1220 = memref.load %arg3[%c30_417] : memref<144xf32, #tpu.memory_space<smem>>
    %1221 = vector.broadcast %1220 : f32 to vector<8x8xf32>
    %1222 = arith.mulf %1221, %1088 : vector<8x8xf32>
    %1223 = arith.addf %1219, %1222 : vector<8x8xf32>
    %c31_418 = arith.constant 31 : index
    %1224 = memref.load %arg3[%c31_418] : memref<144xf32, #tpu.memory_space<smem>>
    %1225 = vector.broadcast %1224 : f32 to vector<8x8xf32>
    %1226 = arith.mulf %1225, %1090 : vector<8x8xf32>
    %1227 = arith.addf %1223, %1226 : vector<8x8xf32>
    %c32_419 = arith.constant 32 : index
    %1228 = memref.load %arg3[%c32_419] : memref<144xf32, #tpu.memory_space<smem>>
    %1229 = vector.broadcast %1228 : f32 to vector<8x8xf32>
    %1230 = arith.mulf %1229, %1092 : vector<8x8xf32>
    %1231 = arith.addf %1227, %1230 : vector<8x8xf32>
    %c33_420 = arith.constant 33 : index
    %1232 = memref.load %arg3[%c33_420] : memref<144xf32, #tpu.memory_space<smem>>
    %1233 = vector.broadcast %1232 : f32 to vector<8x8xf32>
    %1234 = arith.mulf %1233, %1094 : vector<8x8xf32>
    %1235 = arith.addf %1231, %1234 : vector<8x8xf32>
    %c34_421 = arith.constant 34 : index
    %1236 = memref.load %arg3[%c34_421] : memref<144xf32, #tpu.memory_space<smem>>
    %1237 = vector.broadcast %1236 : f32 to vector<8x8xf32>
    %1238 = arith.mulf %1237, %1096 : vector<8x8xf32>
    %1239 = arith.addf %1235, %1238 : vector<8x8xf32>
    %c35_422 = arith.constant 35 : index
    %1240 = memref.load %arg3[%c35_422] : memref<144xf32, #tpu.memory_space<smem>>
    %1241 = vector.broadcast %1240 : f32 to vector<8x8xf32>
    %1242 = arith.mulf %1241, %1098 : vector<8x8xf32>
    %1243 = arith.addf %1239, %1242 : vector<8x8xf32>
    %c0_423 = arith.constant 0 : index
    %c0_424 = arith.constant 0 : index
    %c0_425 = arith.constant 0 : index
    %c0_426 = arith.constant 0 : index
    %1244 = vector.load %arg7[%c0_423, %c0_424, %c0_425, %c0_426] : memref<1x4x8x8xf32, #tpu.memory_space<vmem>>, vector<1x1x8x8xf32>
    %1245 = vector.shape_cast %1244 : vector<1x1x8x8xf32> to vector<8x8xf32>
    %1246 = vector.shape_cast %1243 : vector<8x8xf32> to vector<1x1x8x8xf32>
    tpu.vector_store %arg7[%c0_423, %c0_424, %c0_425, %c0_426], %1246 {strides = array<i32>} : memref<1x4x8x8xf32, #tpu.memory_space<vmem>>, vector<1x1x8x8xf32>,
    %cst_427 = arith.constant 0.000000e+00 : f32
    %1247 = vector.broadcast %cst_427 : f32 to vector<8x8xf32>
    %c36_428 = arith.constant 36 : index
    %1248 = memref.load %arg3[%c36_428] : memref<144xf32, #tpu.memory_space<smem>>
    %1249 = vector.broadcast %1248 : f32 to vector<8x8xf32>
    %1250 = arith.mulf %1249, %1028 : vector<8x8xf32>
    %1251 = arith.addf %1247, %1250 : vector<8x8xf32>
    %c37_429 = arith.constant 37 : index
    %1252 = memref.load %arg3[%c37_429] : memref<144xf32, #tpu.memory_space<smem>>
    %1253 = vector.broadcast %1252 : f32 to vector<8x8xf32>
    %1254 = arith.mulf %1253, %1030 : vector<8x8xf32>
    %1255 = arith.addf %1251, %1254 : vector<8x8xf32>
    %c38_430 = arith.constant 38 : index
    %1256 = memref.load %arg3[%c38_430] : memref<144xf32, #tpu.memory_space<smem>>
    %1257 = vector.broadcast %1256 : f32 to vector<8x8xf32>
    %1258 = arith.mulf %1257, %1032 : vector<8x8xf32>
    %1259 = arith.addf %1255, %1258 : vector<8x8xf32>
    %c39_431 = arith.constant 39 : index
    %1260 = memref.load %arg3[%c39_431] : memref<144xf32, #tpu.memory_space<smem>>
    %1261 = vector.broadcast %1260 : f32 to vector<8x8xf32>
    %1262 = arith.mulf %1261, %1034 : vector<8x8xf32>
    %1263 = arith.addf %1259, %1262 : vector<8x8xf32>
    %c40_432 = arith.constant 40 : index
    %1264 = memref.load %arg3[%c40_432] : memref<144xf32, #tpu.memory_space<smem>>
    %1265 = vector.broadcast %1264 : f32 to vector<8x8xf32>
    %1266 = arith.mulf %1265, %1036 : vector<8x8xf32>
    %1267 = arith.addf %1263, %1266 : vector<8x8xf32>
    %c41_433 = arith.constant 41 : index
    %1268 = memref.load %arg3[%c41_433] : memref<144xf32, #tpu.memory_space<smem>>
    %1269 = vector.broadcast %1268 : f32 to vector<8x8xf32>
    %1270 = arith.mulf %1269, %1038 : vector<8x8xf32>
    %1271 = arith.addf %1267, %1270 : vector<8x8xf32>
    %c42_434 = arith.constant 42 : index
    %1272 = memref.load %arg3[%c42_434] : memref<144xf32, #tpu.memory_space<smem>>
    %1273 = vector.broadcast %1272 : f32 to vector<8x8xf32>
    %1274 = arith.mulf %1273, %1040 : vector<8x8xf32>
    %1275 = arith.addf %1271, %1274 : vector<8x8xf32>
    %c43_435 = arith.constant 43 : index
    %1276 = memref.load %arg3[%c43_435] : memref<144xf32, #tpu.memory_space<smem>>
    %1277 = vector.broadcast %1276 : f32 to vector<8x8xf32>
    %1278 = arith.mulf %1277, %1042 : vector<8x8xf32>
    %1279 = arith.addf %1275, %1278 : vector<8x8xf32>
    %c44_436 = arith.constant 44 : index
    %1280 = memref.load %arg3[%c44_436] : memref<144xf32, #tpu.memory_space<smem>>
    %1281 = vector.broadcast %1280 : f32 to vector<8x8xf32>
    %1282 = arith.mulf %1281, %1044 : vector<8x8xf32>
    %1283 = arith.addf %1279, %1282 : vector<8x8xf32>
    %c45_437 = arith.constant 45 : index
    %1284 = memref.load %arg3[%c45_437] : memref<144xf32, #tpu.memory_space<smem>>
    %1285 = vector.broadcast %1284 : f32 to vector<8x8xf32>
    %1286 = arith.mulf %1285, %1046 : vector<8x8xf32>
    %1287 = arith.addf %1283, %1286 : vector<8x8xf32>
    %c46_438 = arith.constant 46 : index
    %1288 = memref.load %arg3[%c46_438] : memref<144xf32, #tpu.memory_space<smem>>
    %1289 = vector.broadcast %1288 : f32 to vector<8x8xf32>
    %1290 = arith.mulf %1289, %1048 : vector<8x8xf32>
    %1291 = arith.addf %1287, %1290 : vector<8x8xf32>
    %c47_439 = arith.constant 47 : index
    %1292 = memref.load %arg3[%c47_439] : memref<144xf32, #tpu.memory_space<smem>>
    %1293 = vector.broadcast %1292 : f32 to vector<8x8xf32>
    %1294 = arith.mulf %1293, %1050 : vector<8x8xf32>
    %1295 = arith.addf %1291, %1294 : vector<8x8xf32>
    %c48_440 = arith.constant 48 : index
    %1296 = memref.load %arg3[%c48_440] : memref<144xf32, #tpu.memory_space<smem>>
    %1297 = vector.broadcast %1296 : f32 to vector<8x8xf32>
    %1298 = arith.mulf %1297, %1052 : vector<8x8xf32>
    %1299 = arith.addf %1295, %1298 : vector<8x8xf32>
    %c49_441 = arith.constant 49 : index
    %1300 = memref.load %arg3[%c49_441] : memref<144xf32, #tpu.memory_space<smem>>
    %1301 = vector.broadcast %1300 : f32 to vector<8x8xf32>
    %1302 = arith.mulf %1301, %1054 : vector<8x8xf32>
    %1303 = arith.addf %1299, %1302 : vector<8x8xf32>
    %c50_442 = arith.constant 50 : index
    %1304 = memref.load %arg3[%c50_442] : memref<144xf32, #tpu.memory_space<smem>>
    %1305 = vector.broadcast %1304 : f32 to vector<8x8xf32>
    %1306 = arith.mulf %1305, %1056 : vector<8x8xf32>
    %1307 = arith.addf %1303, %1306 : vector<8x8xf32>
    %c51_443 = arith.constant 51 : index
    %1308 = memref.load %arg3[%c51_443] : memref<144xf32, #tpu.memory_space<smem>>
    %1309 = vector.broadcast %1308 : f32 to vector<8x8xf32>
    %1310 = arith.mulf %1309, %1058 : vector<8x8xf32>
    %1311 = arith.addf %1307, %1310 : vector<8x8xf32>
    %c52_444 = arith.constant 52 : index
    %1312 = memref.load %arg3[%c52_444] : memref<144xf32, #tpu.memory_space<smem>>
    %1313 = vector.broadcast %1312 : f32 to vector<8x8xf32>
    %1314 = arith.mulf %1313, %1060 : vector<8x8xf32>
    %1315 = arith.addf %1311, %1314 : vector<8x8xf32>
    %c53_445 = arith.constant 53 : index
    %1316 = memref.load %arg3[%c53_445] : memref<144xf32, #tpu.memory_space<smem>>
    %1317 = vector.broadcast %1316 : f32 to vector<8x8xf32>
    %1318 = arith.mulf %1317, %1062 : vector<8x8xf32>
    %1319 = arith.addf %1315, %1318 : vector<8x8xf32>
    %c54_446 = arith.constant 54 : index
    %1320 = memref.load %arg3[%c54_446] : memref<144xf32, #tpu.memory_space<smem>>
    %1321 = vector.broadcast %1320 : f32 to vector<8x8xf32>
    %1322 = arith.mulf %1321, %1064 : vector<8x8xf32>
    %1323 = arith.addf %1319, %1322 : vector<8x8xf32>
    %c55_447 = arith.constant 55 : index
    %1324 = memref.load %arg3[%c55_447] : memref<144xf32, #tpu.memory_space<smem>>
    %1325 = vector.broadcast %1324 : f32 to vector<8x8xf32>
    %1326 = arith.mulf %1325, %1066 : vector<8x8xf32>
    %1327 = arith.addf %1323, %1326 : vector<8x8xf32>
    %c56_448 = arith.constant 56 : index
    %1328 = memref.load %arg3[%c56_448] : memref<144xf32, #tpu.memory_space<smem>>
    %1329 = vector.broadcast %1328 : f32 to vector<8x8xf32>
    %1330 = arith.mulf %1329, %1068 : vector<8x8xf32>
    %1331 = arith.addf %1327, %1330 : vector<8x8xf32>
    %c57_449 = arith.constant 57 : index
    %1332 = memref.load %arg3[%c57_449] : memref<144xf32, #tpu.memory_space<smem>>
    %1333 = vector.broadcast %1332 : f32 to vector<8x8xf32>
    %1334 = arith.mulf %1333, %1070 : vector<8x8xf32>
    %1335 = arith.addf %1331, %1334 : vector<8x8xf32>
    %c58_450 = arith.constant 58 : index
    %1336 = memref.load %arg3[%c58_450] : memref<144xf32, #tpu.memory_space<smem>>
    %1337 = vector.broadcast %1336 : f32 to vector<8x8xf32>
    %1338 = arith.mulf %1337, %1072 : vector<8x8xf32>
    %1339 = arith.addf %1335, %1338 : vector<8x8xf32>
    %c59_451 = arith.constant 59 : index
    %1340 = memref.load %arg3[%c59_451] : memref<144xf32, #tpu.memory_space<smem>>
    %1341 = vector.broadcast %1340 : f32 to vector<8x8xf32>
    %1342 = arith.mulf %1341, %1074 : vector<8x8xf32>
    %1343 = arith.addf %1339, %1342 : vector<8x8xf32>
    %c60_452 = arith.constant 60 : index
    %1344 = memref.load %arg3[%c60_452] : memref<144xf32, #tpu.memory_space<smem>>
    %1345 = vector.broadcast %1344 : f32 to vector<8x8xf32>
    %1346 = arith.mulf %1345, %1076 : vector<8x8xf32>
    %1347 = arith.addf %1343, %1346 : vector<8x8xf32>
    %c61_453 = arith.constant 61 : index
    %1348 = memref.load %arg3[%c61_453] : memref<144xf32, #tpu.memory_space<smem>>
    %1349 = vector.broadcast %1348 : f32 to vector<8x8xf32>
    %1350 = arith.mulf %1349, %1078 : vector<8x8xf32>
    %1351 = arith.addf %1347, %1350 : vector<8x8xf32>
    %c62_454 = arith.constant 62 : index
    %1352 = memref.load %arg3[%c62_454] : memref<144xf32, #tpu.memory_space<smem>>
    %1353 = vector.broadcast %1352 : f32 to vector<8x8xf32>
    %1354 = arith.mulf %1353, %1080 : vector<8x8xf32>
    %1355 = arith.addf %1351, %1354 : vector<8x8xf32>
    %c63_455 = arith.constant 63 : index
    %1356 = memref.load %arg3[%c63_455] : memref<144xf32, #tpu.memory_space<smem>>
    %1357 = vector.broadcast %1356 : f32 to vector<8x8xf32>
    %1358 = arith.mulf %1357, %1082 : vector<8x8xf32>
    %1359 = arith.addf %1355, %1358 : vector<8x8xf32>
    %c64_456 = arith.constant 64 : index
    %1360 = memref.load %arg3[%c64_456] : memref<144xf32, #tpu.memory_space<smem>>
    %1361 = vector.broadcast %1360 : f32 to vector<8x8xf32>
    %1362 = arith.mulf %1361, %1084 : vector<8x8xf32>
    %1363 = arith.addf %1359, %1362 : vector<8x8xf32>
    %c65_457 = arith.constant 65 : index
    %1364 = memref.load %arg3[%c65_457] : memref<144xf32, #tpu.memory_space<smem>>
    %1365 = vector.broadcast %1364 : f32 to vector<8x8xf32>
    %1366 = arith.mulf %1365, %1086 : vector<8x8xf32>
    %1367 = arith.addf %1363, %1366 : vector<8x8xf32>
    %c66_458 = arith.constant 66 : index
    %1368 = memref.load %arg3[%c66_458] : memref<144xf32, #tpu.memory_space<smem>>
    %1369 = vector.broadcast %1368 : f32 to vector<8x8xf32>
    %1370 = arith.mulf %1369, %1088 : vector<8x8xf32>
    %1371 = arith.addf %1367, %1370 : vector<8x8xf32>
    %c67_459 = arith.constant 67 : index
    %1372 = memref.load %arg3[%c67_459] : memref<144xf32, #tpu.memory_space<smem>>
    %1373 = vector.broadcast %1372 : f32 to vector<8x8xf32>
    %1374 = arith.mulf %1373, %1090 : vector<8x8xf32>
    %1375 = arith.addf %1371, %1374 : vector<8x8xf32>
    %c68_460 = arith.constant 68 : index
    %1376 = memref.load %arg3[%c68_460] : memref<144xf32, #tpu.memory_space<smem>>
    %1377 = vector.broadcast %1376 : f32 to vector<8x8xf32>
    %1378 = arith.mulf %1377, %1092 : vector<8x8xf32>
    %1379 = arith.addf %1375, %1378 : vector<8x8xf32>
    %c69_461 = arith.constant 69 : index
    %1380 = memref.load %arg3[%c69_461] : memref<144xf32, #tpu.memory_space<smem>>
    %1381 = vector.broadcast %1380 : f32 to vector<8x8xf32>
    %1382 = arith.mulf %1381, %1094 : vector<8x8xf32>
    %1383 = arith.addf %1379, %1382 : vector<8x8xf32>
    %c70_462 = arith.constant 70 : index
    %1384 = memref.load %arg3[%c70_462] : memref<144xf32, #tpu.memory_space<smem>>
    %1385 = vector.broadcast %1384 : f32 to vector<8x8xf32>
    %1386 = arith.mulf %1385, %1096 : vector<8x8xf32>
    %1387 = arith.addf %1383, %1386 : vector<8x8xf32>
    %c71_463 = arith.constant 71 : index
    %1388 = memref.load %arg3[%c71_463] : memref<144xf32, #tpu.memory_space<smem>>
    %1389 = vector.broadcast %1388 : f32 to vector<8x8xf32>
    %1390 = arith.mulf %1389, %1098 : vector<8x8xf32>
    %1391 = arith.addf %1387, %1390 : vector<8x8xf32>
    %c0_464 = arith.constant 0 : index
    %c1_465 = arith.constant 1 : index
    %c0_466 = arith.constant 0 : index
    %c0_467 = arith.constant 0 : index
    %1392 = vector.load %arg7[%c0_464, %c1_465, %c0_466, %c0_467] : memref<1x4x8x8xf32, #tpu.memory_space<vmem>>, vector<1x1x8x8xf32>
    %1393 = vector.shape_cast %1392 : vector<1x1x8x8xf32> to vector<8x8xf32>
    %1394 = vector.shape_cast %1391 : vector<8x8xf32> to vector<1x1x8x8xf32>
    tpu.vector_store %arg7[%c0_464, %c1_465, %c0_466, %c0_467], %1394 {strides = array<i32>} : memref<1x4x8x8xf32, #tpu.memory_space<vmem>>, vector<1x1x8x8xf32>,
    %cst_468 = arith.constant 0.000000e+00 : f32
    %1395 = vector.broadcast %cst_468 : f32 to vector<8x8xf32>
    %c72_469 = arith.constant 72 : index
    %1396 = memref.load %arg3[%c72_469] : memref<144xf32, #tpu.memory_space<smem>>
    %1397 = vector.broadcast %1396 : f32 to vector<8x8xf32>
    %1398 = arith.mulf %1397, %1028 : vector<8x8xf32>
    %1399 = arith.addf %1395, %1398 : vector<8x8xf32>
    %c73_470 = arith.constant 73 : index
    %1400 = memref.load %arg3[%c73_470] : memref<144xf32, #tpu.memory_space<smem>>
    %1401 = vector.broadcast %1400 : f32 to vector<8x8xf32>
    %1402 = arith.mulf %1401, %1030 : vector<8x8xf32>
    %1403 = arith.addf %1399, %1402 : vector<8x8xf32>
    %c74_471 = arith.constant 74 : index
    %1404 = memref.load %arg3[%c74_471] : memref<144xf32, #tpu.memory_space<smem>>
    %1405 = vector.broadcast %1404 : f32 to vector<8x8xf32>
    %1406 = arith.mulf %1405, %1032 : vector<8x8xf32>
    %1407 = arith.addf %1403, %1406 : vector<8x8xf32>
    %c75_472 = arith.constant 75 : index
    %1408 = memref.load %arg3[%c75_472] : memref<144xf32, #tpu.memory_space<smem>>
    %1409 = vector.broadcast %1408 : f32 to vector<8x8xf32>
    %1410 = arith.mulf %1409, %1034 : vector<8x8xf32>
    %1411 = arith.addf %1407, %1410 : vector<8x8xf32>
    %c76_473 = arith.constant 76 : index
    %1412 = memref.load %arg3[%c76_473] : memref<144xf32, #tpu.memory_space<smem>>
    %1413 = vector.broadcast %1412 : f32 to vector<8x8xf32>
    %1414 = arith.mulf %1413, %1036 : vector<8x8xf32>
    %1415 = arith.addf %1411, %1414 : vector<8x8xf32>
    %c77_474 = arith.constant 77 : index
    %1416 = memref.load %arg3[%c77_474] : memref<144xf32, #tpu.memory_space<smem>>
    %1417 = vector.broadcast %1416 : f32 to vector<8x8xf32>
    %1418 = arith.mulf %1417, %1038 : vector<8x8xf32>
    %1419 = arith.addf %1415, %1418 : vector<8x8xf32>
    %c78_475 = arith.constant 78 : index
    %1420 = memref.load %arg3[%c78_475] : memref<144xf32, #tpu.memory_space<smem>>
    %1421 = vector.broadcast %1420 : f32 to vector<8x8xf32>
    %1422 = arith.mulf %1421, %1040 : vector<8x8xf32>
    %1423 = arith.addf %1419, %1422 : vector<8x8xf32>
    %c79_476 = arith.constant 79 : index
    %1424 = memref.load %arg3[%c79_476] : memref<144xf32, #tpu.memory_space<smem>>
    %1425 = vector.broadcast %1424 : f32 to vector<8x8xf32>
    %1426 = arith.mulf %1425, %1042 : vector<8x8xf32>
    %1427 = arith.addf %1423, %1426 : vector<8x8xf32>
    %c80_477 = arith.constant 80 : index
    %1428 = memref.load %arg3[%c80_477] : memref<144xf32, #tpu.memory_space<smem>>
    %1429 = vector.broadcast %1428 : f32 to vector<8x8xf32>
    %1430 = arith.mulf %1429, %1044 : vector<8x8xf32>
    %1431 = arith.addf %1427, %1430 : vector<8x8xf32>
    %c81_478 = arith.constant 81 : index
    %1432 = memref.load %arg3[%c81_478] : memref<144xf32, #tpu.memory_space<smem>>
    %1433 = vector.broadcast %1432 : f32 to vector<8x8xf32>
    %1434 = arith.mulf %1433, %1046 : vector<8x8xf32>
    %1435 = arith.addf %1431, %1434 : vector<8x8xf32>
    %c82_479 = arith.constant 82 : index
    %1436 = memref.load %arg3[%c82_479] : memref<144xf32, #tpu.memory_space<smem>>
    %1437 = vector.broadcast %1436 : f32 to vector<8x8xf32>
    %1438 = arith.mulf %1437, %1048 : vector<8x8xf32>
    %1439 = arith.addf %1435, %1438 : vector<8x8xf32>
    %c83_480 = arith.constant 83 : index
    %1440 = memref.load %arg3[%c83_480] : memref<144xf32, #tpu.memory_space<smem>>
    %1441 = vector.broadcast %1440 : f32 to vector<8x8xf32>
    %1442 = arith.mulf %1441, %1050 : vector<8x8xf32>
    %1443 = arith.addf %1439, %1442 : vector<8x8xf32>
    %c84_481 = arith.constant 84 : index
    %1444 = memref.load %arg3[%c84_481] : memref<144xf32, #tpu.memory_space<smem>>
    %1445 = vector.broadcast %1444 : f32 to vector<8x8xf32>
    %1446 = arith.mulf %1445, %1052 : vector<8x8xf32>
    %1447 = arith.addf %1443, %1446 : vector<8x8xf32>
    %c85_482 = arith.constant 85 : index
    %1448 = memref.load %arg3[%c85_482] : memref<144xf32, #tpu.memory_space<smem>>
    %1449 = vector.broadcast %1448 : f32 to vector<8x8xf32>
    %1450 = arith.mulf %1449, %1054 : vector<8x8xf32>
    %1451 = arith.addf %1447, %1450 : vector<8x8xf32>
    %c86_483 = arith.constant 86 : index
    %1452 = memref.load %arg3[%c86_483] : memref<144xf32, #tpu.memory_space<smem>>
    %1453 = vector.broadcast %1452 : f32 to vector<8x8xf32>
    %1454 = arith.mulf %1453, %1056 : vector<8x8xf32>
    %1455 = arith.addf %1451, %1454 : vector<8x8xf32>
    %c87_484 = arith.constant 87 : index
    %1456 = memref.load %arg3[%c87_484] : memref<144xf32, #tpu.memory_space<smem>>
    %1457 = vector.broadcast %1456 : f32 to vector<8x8xf32>
    %1458 = arith.mulf %1457, %1058 : vector<8x8xf32>
    %1459 = arith.addf %1455, %1458 : vector<8x8xf32>
    %c88_485 = arith.constant 88 : index
    %1460 = memref.load %arg3[%c88_485] : memref<144xf32, #tpu.memory_space<smem>>
    %1461 = vector.broadcast %1460 : f32 to vector<8x8xf32>
    %1462 = arith.mulf %1461, %1060 : vector<8x8xf32>
    %1463 = arith.addf %1459, %1462 : vector<8x8xf32>
    %c89_486 = arith.constant 89 : index
    %1464 = memref.load %arg3[%c89_486] : memref<144xf32, #tpu.memory_space<smem>>
    %1465 = vector.broadcast %1464 : f32 to vector<8x8xf32>
    %1466 = arith.mulf %1465, %1062 : vector<8x8xf32>
    %1467 = arith.addf %1463, %1466 : vector<8x8xf32>
    %c90_487 = arith.constant 90 : index
    %1468 = memref.load %arg3[%c90_487] : memref<144xf32, #tpu.memory_space<smem>>
    %1469 = vector.broadcast %1468 : f32 to vector<8x8xf32>
    %1470 = arith.mulf %1469, %1064 : vector<8x8xf32>
    %1471 = arith.addf %1467, %1470 : vector<8x8xf32>
    %c91_488 = arith.constant 91 : index
    %1472 = memref.load %arg3[%c91_488] : memref<144xf32, #tpu.memory_space<smem>>
    %1473 = vector.broadcast %1472 : f32 to vector<8x8xf32>
    %1474 = arith.mulf %1473, %1066 : vector<8x8xf32>
    %1475 = arith.addf %1471, %1474 : vector<8x8xf32>
    %c92_489 = arith.constant 92 : index
    %1476 = memref.load %arg3[%c92_489] : memref<144xf32, #tpu.memory_space<smem>>
    %1477 = vector.broadcast %1476 : f32 to vector<8x8xf32>
    %1478 = arith.mulf %1477, %1068 : vector<8x8xf32>
    %1479 = arith.addf %1475, %1478 : vector<8x8xf32>
    %c93_490 = arith.constant 93 : index
    %1480 = memref.load %arg3[%c93_490] : memref<144xf32, #tpu.memory_space<smem>>
    %1481 = vector.broadcast %1480 : f32 to vector<8x8xf32>
    %1482 = arith.mulf %1481, %1070 : vector<8x8xf32>
    %1483 = arith.addf %1479, %1482 : vector<8x8xf32>
    %c94_491 = arith.constant 94 : index
    %1484 = memref.load %arg3[%c94_491] : memref<144xf32, #tpu.memory_space<smem>>
    %1485 = vector.broadcast %1484 : f32 to vector<8x8xf32>
    %1486 = arith.mulf %1485, %1072 : vector<8x8xf32>
    %1487 = arith.addf %1483, %1486 : vector<8x8xf32>
    %c95_492 = arith.constant 95 : index
    %1488 = memref.load %arg3[%c95_492] : memref<144xf32, #tpu.memory_space<smem>>
    %1489 = vector.broadcast %1488 : f32 to vector<8x8xf32>
    %1490 = arith.mulf %1489, %1074 : vector<8x8xf32>
    %1491 = arith.addf %1487, %1490 : vector<8x8xf32>
    %c96_493 = arith.constant 96 : index
    %1492 = memref.load %arg3[%c96_493] : memref<144xf32, #tpu.memory_space<smem>>
    %1493 = vector.broadcast %1492 : f32 to vector<8x8xf32>
    %1494 = arith.mulf %1493, %1076 : vector<8x8xf32>
    %1495 = arith.addf %1491, %1494 : vector<8x8xf32>
    %c97_494 = arith.constant 97 : index
    %1496 = memref.load %arg3[%c97_494] : memref<144xf32, #tpu.memory_space<smem>>
    %1497 = vector.broadcast %1496 : f32 to vector<8x8xf32>
    %1498 = arith.mulf %1497, %1078 : vector<8x8xf32>
    %1499 = arith.addf %1495, %1498 : vector<8x8xf32>
    %c98_495 = arith.constant 98 : index
    %1500 = memref.load %arg3[%c98_495] : memref<144xf32, #tpu.memory_space<smem>>
    %1501 = vector.broadcast %1500 : f32 to vector<8x8xf32>
    %1502 = arith.mulf %1501, %1080 : vector<8x8xf32>
    %1503 = arith.addf %1499, %1502 : vector<8x8xf32>
    %c99_496 = arith.constant 99 : index
    %1504 = memref.load %arg3[%c99_496] : memref<144xf32, #tpu.memory_space<smem>>
    %1505 = vector.broadcast %1504 : f32 to vector<8x8xf32>
    %1506 = arith.mulf %1505, %1082 : vector<8x8xf32>
    %1507 = arith.addf %1503, %1506 : vector<8x8xf32>
    %c100_497 = arith.constant 100 : index
    %1508 = memref.load %arg3[%c100_497] : memref<144xf32, #tpu.memory_space<smem>>
    %1509 = vector.broadcast %1508 : f32 to vector<8x8xf32>
    %1510 = arith.mulf %1509, %1084 : vector<8x8xf32>
    %1511 = arith.addf %1507, %1510 : vector<8x8xf32>
    %c101_498 = arith.constant 101 : index
    %1512 = memref.load %arg3[%c101_498] : memref<144xf32, #tpu.memory_space<smem>>
    %1513 = vector.broadcast %1512 : f32 to vector<8x8xf32>
    %1514 = arith.mulf %1513, %1086 : vector<8x8xf32>
    %1515 = arith.addf %1511, %1514 : vector<8x8xf32>
    %c102_499 = arith.constant 102 : index
    %1516 = memref.load %arg3[%c102_499] : memref<144xf32, #tpu.memory_space<smem>>
    %1517 = vector.broadcast %1516 : f32 to vector<8x8xf32>
    %1518 = arith.mulf %1517, %1088 : vector<8x8xf32>
    %1519 = arith.addf %1515, %1518 : vector<8x8xf32>
    %c103_500 = arith.constant 103 : index
    %1520 = memref.load %arg3[%c103_500] : memref<144xf32, #tpu.memory_space<smem>>
    %1521 = vector.broadcast %1520 : f32 to vector<8x8xf32>
    %1522 = arith.mulf %1521, %1090 : vector<8x8xf32>
    %1523 = arith.addf %1519, %1522 : vector<8x8xf32>
    %c104_501 = arith.constant 104 : index
    %1524 = memref.load %arg3[%c104_501] : memref<144xf32, #tpu.memory_space<smem>>
    %1525 = vector.broadcast %1524 : f32 to vector<8x8xf32>
    %1526 = arith.mulf %1525, %1092 : vector<8x8xf32>
    %1527 = arith.addf %1523, %1526 : vector<8x8xf32>
    %c105_502 = arith.constant 105 : index
    %1528 = memref.load %arg3[%c105_502] : memref<144xf32, #tpu.memory_space<smem>>
    %1529 = vector.broadcast %1528 : f32 to vector<8x8xf32>
    %1530 = arith.mulf %1529, %1094 : vector<8x8xf32>
    %1531 = arith.addf %1527, %1530 : vector<8x8xf32>
    %c106_503 = arith.constant 106 : index
    %1532 = memref.load %arg3[%c106_503] : memref<144xf32, #tpu.memory_space<smem>>
    %1533 = vector.broadcast %1532 : f32 to vector<8x8xf32>
    %1534 = arith.mulf %1533, %1096 : vector<8x8xf32>
    %1535 = arith.addf %1531, %1534 : vector<8x8xf32>
    %c107_504 = arith.constant 107 : index
    %1536 = memref.load %arg3[%c107_504] : memref<144xf32, #tpu.memory_space<smem>>
    %1537 = vector.broadcast %1536 : f32 to vector<8x8xf32>
    %1538 = arith.mulf %1537, %1098 : vector<8x8xf32>
    %1539 = arith.addf %1535, %1538 : vector<8x8xf32>
    %c0_505 = arith.constant 0 : index
    %c2_506 = arith.constant 2 : index
    %c0_507 = arith.constant 0 : index
    %c0_508 = arith.constant 0 : index
    %1540 = vector.load %arg7[%c0_505, %c2_506, %c0_507, %c0_508] : memref<1x4x8x8xf32, #tpu.memory_space<vmem>>, vector<1x1x8x8xf32>
    %1541 = vector.shape_cast %1540 : vector<1x1x8x8xf32> to vector<8x8xf32>
    %1542 = vector.shape_cast %1539 : vector<8x8xf32> to vector<1x1x8x8xf32>
    tpu.vector_store %arg7[%c0_505, %c2_506, %c0_507, %c0_508], %1542 {strides = array<i32>} : memref<1x4x8x8xf32, #tpu.memory_space<vmem>>, vector<1x1x8x8xf32>,
    %cst_509 = arith.constant 0.000000e+00 : f32
    %1543 = vector.broadcast %cst_509 : f32 to vector<8x8xf32>
    %c108 = arith.constant 108 : index
    %1544 = memref.load %arg3[%c108] : memref<144xf32, #tpu.memory_space<smem>>
    %1545 = vector.broadcast %1544 : f32 to vector<8x8xf32>
    %1546 = arith.mulf %1545, %1028 : vector<8x8xf32>
    %1547 = arith.addf %1543, %1546 : vector<8x8xf32>
    %c109 = arith.constant 109 : index
    %1548 = memref.load %arg3[%c109] : memref<144xf32, #tpu.memory_space<smem>>
    %1549 = vector.broadcast %1548 : f32 to vector<8x8xf32>
    %1550 = arith.mulf %1549, %1030 : vector<8x8xf32>
    %1551 = arith.addf %1547, %1550 : vector<8x8xf32>
    %c110 = arith.constant 110 : index
    %1552 = memref.load %arg3[%c110] : memref<144xf32, #tpu.memory_space<smem>>
    %1553 = vector.broadcast %1552 : f32 to vector<8x8xf32>
    %1554 = arith.mulf %1553, %1032 : vector<8x8xf32>
    %1555 = arith.addf %1551, %1554 : vector<8x8xf32>
    %c111 = arith.constant 111 : index
    %1556 = memref.load %arg3[%c111] : memref<144xf32, #tpu.memory_space<smem>>
    %1557 = vector.broadcast %1556 : f32 to vector<8x8xf32>
    %1558 = arith.mulf %1557, %1034 : vector<8x8xf32>
    %1559 = arith.addf %1555, %1558 : vector<8x8xf32>
    %c112 = arith.constant 112 : index
    %1560 = memref.load %arg3[%c112] : memref<144xf32, #tpu.memory_space<smem>>
    %1561 = vector.broadcast %1560 : f32 to vector<8x8xf32>
    %1562 = arith.mulf %1561, %1036 : vector<8x8xf32>
    %1563 = arith.addf %1559, %1562 : vector<8x8xf32>
    %c113 = arith.constant 113 : index
    %1564 = memref.load %arg3[%c113] : memref<144xf32, #tpu.memory_space<smem>>
    %1565 = vector.broadcast %1564 : f32 to vector<8x8xf32>
    %1566 = arith.mulf %1565, %1038 : vector<8x8xf32>
    %1567 = arith.addf %1563, %1566 : vector<8x8xf32>
    %c114 = arith.constant 114 : index
    %1568 = memref.load %arg3[%c114] : memref<144xf32, #tpu.memory_space<smem>>
    %1569 = vector.broadcast %1568 : f32 to vector<8x8xf32>
    %1570 = arith.mulf %1569, %1040 : vector<8x8xf32>
    %1571 = arith.addf %1567, %1570 : vector<8x8xf32>
    %c115 = arith.constant 115 : index
    %1572 = memref.load %arg3[%c115] : memref<144xf32, #tpu.memory_space<smem>>
    %1573 = vector.broadcast %1572 : f32 to vector<8x8xf32>
    %1574 = arith.mulf %1573, %1042 : vector<8x8xf32>
    %1575 = arith.addf %1571, %1574 : vector<8x8xf32>
    %c116 = arith.constant 116 : index
    %1576 = memref.load %arg3[%c116] : memref<144xf32, #tpu.memory_space<smem>>
    %1577 = vector.broadcast %1576 : f32 to vector<8x8xf32>
    %1578 = arith.mulf %1577, %1044 : vector<8x8xf32>
    %1579 = arith.addf %1575, %1578 : vector<8x8xf32>
    %c117 = arith.constant 117 : index
    %1580 = memref.load %arg3[%c117] : memref<144xf32, #tpu.memory_space<smem>>
    %1581 = vector.broadcast %1580 : f32 to vector<8x8xf32>
    %1582 = arith.mulf %1581, %1046 : vector<8x8xf32>
    %1583 = arith.addf %1579, %1582 : vector<8x8xf32>
    %c118 = arith.constant 118 : index
    %1584 = memref.load %arg3[%c118] : memref<144xf32, #tpu.memory_space<smem>>
    %1585 = vector.broadcast %1584 : f32 to vector<8x8xf32>
    %1586 = arith.mulf %1585, %1048 : vector<8x8xf32>
    %1587 = arith.addf %1583, %1586 : vector<8x8xf32>
    %c119 = arith.constant 119 : index
    %1588 = memref.load %arg3[%c119] : memref<144xf32, #tpu.memory_space<smem>>
    %1589 = vector.broadcast %1588 : f32 to vector<8x8xf32>
    %1590 = arith.mulf %1589, %1050 : vector<8x8xf32>
    %1591 = arith.addf %1587, %1590 : vector<8x8xf32>
    %c120 = arith.constant 120 : index
    %1592 = memref.load %arg3[%c120] : memref<144xf32, #tpu.memory_space<smem>>
    %1593 = vector.broadcast %1592 : f32 to vector<8x8xf32>
    %1594 = arith.mulf %1593, %1052 : vector<8x8xf32>
    %1595 = arith.addf %1591, %1594 : vector<8x8xf32>
    %c121 = arith.constant 121 : index
    %1596 = memref.load %arg3[%c121] : memref<144xf32, #tpu.memory_space<smem>>
    %1597 = vector.broadcast %1596 : f32 to vector<8x8xf32>
    %1598 = arith.mulf %1597, %1054 : vector<8x8xf32>
    %1599 = arith.addf %1595, %1598 : vector<8x8xf32>
    %c122 = arith.constant 122 : index
    %1600 = memref.load %arg3[%c122] : memref<144xf32, #tpu.memory_space<smem>>
    %1601 = vector.broadcast %1600 : f32 to vector<8x8xf32>
    %1602 = arith.mulf %1601, %1056 : vector<8x8xf32>
    %1603 = arith.addf %1599, %1602 : vector<8x8xf32>
    %c123 = arith.constant 123 : index
    %1604 = memref.load %arg3[%c123] : memref<144xf32, #tpu.memory_space<smem>>
    %1605 = vector.broadcast %1604 : f32 to vector<8x8xf32>
    %1606 = arith.mulf %1605, %1058 : vector<8x8xf32>
    %1607 = arith.addf %1603, %1606 : vector<8x8xf32>
    %c124 = arith.constant 124 : index
    %1608 = memref.load %arg3[%c124] : memref<144xf32, #tpu.memory_space<smem>>
    %1609 = vector.broadcast %1608 : f32 to vector<8x8xf32>
    %1610 = arith.mulf %1609, %1060 : vector<8x8xf32>
    %1611 = arith.addf %1607, %1610 : vector<8x8xf32>
    %c125 = arith.constant 125 : index
    %1612 = memref.load %arg3[%c125] : memref<144xf32, #tpu.memory_space<smem>>
    %1613 = vector.broadcast %1612 : f32 to vector<8x8xf32>
    %1614 = arith.mulf %1613, %1062 : vector<8x8xf32>
    %1615 = arith.addf %1611, %1614 : vector<8x8xf32>
    %c126 = arith.constant 126 : index
    %1616 = memref.load %arg3[%c126] : memref<144xf32, #tpu.memory_space<smem>>
    %1617 = vector.broadcast %1616 : f32 to vector<8x8xf32>
    %1618 = arith.mulf %1617, %1064 : vector<8x8xf32>
    %1619 = arith.addf %1615, %1618 : vector<8x8xf32>
    %c127 = arith.constant 127 : index
    %1620 = memref.load %arg3[%c127] : memref<144xf32, #tpu.memory_space<smem>>
    %1621 = vector.broadcast %1620 : f32 to vector<8x8xf32>
    %1622 = arith.mulf %1621, %1066 : vector<8x8xf32>
    %1623 = arith.addf %1619, %1622 : vector<8x8xf32>
    %c128 = arith.constant 128 : index
    %1624 = memref.load %arg3[%c128] : memref<144xf32, #tpu.memory_space<smem>>
    %1625 = vector.broadcast %1624 : f32 to vector<8x8xf32>
    %1626 = arith.mulf %1625, %1068 : vector<8x8xf32>
    %1627 = arith.addf %1623, %1626 : vector<8x8xf32>
    %c129 = arith.constant 129 : index
    %1628 = memref.load %arg3[%c129] : memref<144xf32, #tpu.memory_space<smem>>
    %1629 = vector.broadcast %1628 : f32 to vector<8x8xf32>
    %1630 = arith.mulf %1629, %1070 : vector<8x8xf32>
    %1631 = arith.addf %1627, %1630 : vector<8x8xf32>
    %c130 = arith.constant 130 : index
    %1632 = memref.load %arg3[%c130] : memref<144xf32, #tpu.memory_space<smem>>
    %1633 = vector.broadcast %1632 : f32 to vector<8x8xf32>
    %1634 = arith.mulf %1633, %1072 : vector<8x8xf32>
    %1635 = arith.addf %1631, %1634 : vector<8x8xf32>
    %c131 = arith.constant 131 : index
    %1636 = memref.load %arg3[%c131] : memref<144xf32, #tpu.memory_space<smem>>
    %1637 = vector.broadcast %1636 : f32 to vector<8x8xf32>
    %1638 = arith.mulf %1637, %1074 : vector<8x8xf32>
    %1639 = arith.addf %1635, %1638 : vector<8x8xf32>
    %c132 = arith.constant 132 : index
    %1640 = memref.load %arg3[%c132] : memref<144xf32, #tpu.memory_space<smem>>
    %1641 = vector.broadcast %1640 : f32 to vector<8x8xf32>
    %1642 = arith.mulf %1641, %1076 : vector<8x8xf32>
    %1643 = arith.addf %1639, %1642 : vector<8x8xf32>
    %c133 = arith.constant 133 : index
    %1644 = memref.load %arg3[%c133] : memref<144xf32, #tpu.memory_space<smem>>
    %1645 = vector.broadcast %1644 : f32 to vector<8x8xf32>
    %1646 = arith.mulf %1645, %1078 : vector<8x8xf32>
    %1647 = arith.addf %1643, %1646 : vector<8x8xf32>
    %c134 = arith.constant 134 : index
    %1648 = memref.load %arg3[%c134] : memref<144xf32, #tpu.memory_space<smem>>
    %1649 = vector.broadcast %1648 : f32 to vector<8x8xf32>
    %1650 = arith.mulf %1649, %1080 : vector<8x8xf32>
    %1651 = arith.addf %1647, %1650 : vector<8x8xf32>
    %c135 = arith.constant 135 : index
    %1652 = memref.load %arg3[%c135] : memref<144xf32, #tpu.memory_space<smem>>
    %1653 = vector.broadcast %1652 : f32 to vector<8x8xf32>
    %1654 = arith.mulf %1653, %1082 : vector<8x8xf32>
    %1655 = arith.addf %1651, %1654 : vector<8x8xf32>
    %c136 = arith.constant 136 : index
    %1656 = memref.load %arg3[%c136] : memref<144xf32, #tpu.memory_space<smem>>
    %1657 = vector.broadcast %1656 : f32 to vector<8x8xf32>
    %1658 = arith.mulf %1657, %1084 : vector<8x8xf32>
    %1659 = arith.addf %1655, %1658 : vector<8x8xf32>
    %c137 = arith.constant 137 : index
    %1660 = memref.load %arg3[%c137] : memref<144xf32, #tpu.memory_space<smem>>
    %1661 = vector.broadcast %1660 : f32 to vector<8x8xf32>
    %1662 = arith.mulf %1661, %1086 : vector<8x8xf32>
    %1663 = arith.addf %1659, %1662 : vector<8x8xf32>
    %c138 = arith.constant 138 : index
    %1664 = memref.load %arg3[%c138] : memref<144xf32, #tpu.memory_space<smem>>
    %1665 = vector.broadcast %1664 : f32 to vector<8x8xf32>
    %1666 = arith.mulf %1665, %1088 : vector<8x8xf32>
    %1667 = arith.addf %1663, %1666 : vector<8x8xf32>
    %c139 = arith.constant 139 : index
    %1668 = memref.load %arg3[%c139] : memref<144xf32, #tpu.memory_space<smem>>
    %1669 = vector.broadcast %1668 : f32 to vector<8x8xf32>
    %1670 = arith.mulf %1669, %1090 : vector<8x8xf32>
    %1671 = arith.addf %1667, %1670 : vector<8x8xf32>
    %c140 = arith.constant 140 : index
    %1672 = memref.load %arg3[%c140] : memref<144xf32, #tpu.memory_space<smem>>
    %1673 = vector.broadcast %1672 : f32 to vector<8x8xf32>
    %1674 = arith.mulf %1673, %1092 : vector<8x8xf32>
    %1675 = arith.addf %1671, %1674 : vector<8x8xf32>
    %c141 = arith.constant 141 : index
    %1676 = memref.load %arg3[%c141] : memref<144xf32, #tpu.memory_space<smem>>
    %1677 = vector.broadcast %1676 : f32 to vector<8x8xf32>
    %1678 = arith.mulf %1677, %1094 : vector<8x8xf32>
    %1679 = arith.addf %1675, %1678 : vector<8x8xf32>
    %c142 = arith.constant 142 : index
    %1680 = memref.load %arg3[%c142] : memref<144xf32, #tpu.memory_space<smem>>
    %1681 = vector.broadcast %1680 : f32 to vector<8x8xf32>
    %1682 = arith.mulf %1681, %1096 : vector<8x8xf32>
    %1683 = arith.addf %1679, %1682 : vector<8x8xf32>
    %c143 = arith.constant 143 : index
    %1684 = memref.load %arg3[%c143] : memref<144xf32, #tpu.memory_space<smem>>
    %1685 = vector.broadcast %1684 : f32 to vector<8x8xf32>
    %1686 = arith.mulf %1685, %1098 : vector<8x8xf32>
    %1687 = arith.addf %1683, %1686 : vector<8x8xf32>
    %c0_510 = arith.constant 0 : index
    %c3_511 = arith.constant 3 : index
    %c0_512 = arith.constant 0 : index
    %c0_513 = arith.constant 0 : index
    %1688 = vector.load %arg7[%c0_510, %c3_511, %c0_512, %c0_513] : memref<1x4x8x8xf32, #tpu.memory_space<vmem>>, vector<1x1x8x8xf32>
    %1689 = vector.shape_cast %1688 : vector<1x1x8x8xf32> to vector<8x8xf32>
    %1690 = vector.shape_cast %1687 : vector<8x8xf32> to vector<1x1x8x8xf32>
    tpu.vector_store %arg7[%c0_510, %c3_511, %c0_512, %c0_513], %1690 {strides = array<i32>} : memref<1x4x8x8xf32, #tpu.memory_space<vmem>>, vector<1x1x8x8xf32>,
    return
  }
  func.func @transform_0(%arg0: i32) -> i32 {
    %c0_i32 = arith.constant 0 : i32
    %c0_i32_0 = arith.constant 0 : i32
    return %c0_i32 : i32
  }
  func.func @transform_1(%arg0: i32) -> i32 {
    %c0_i32 = arith.constant 0 : i32
    %c0_i32_0 = arith.constant 0 : i32
    return %c0_i32 : i32
  }
  func.func @transform_2(%arg0: i32) -> i32 {
    %c0_i32 = arith.constant 0 : i32
    %c0_i32_0 = arith.constant 0 : i32
    return %c0_i32 : i32
  }
  func.func @transform_3(%arg0: i32) -> i32 {
    %c0_i32 = arith.constant 0 : i32
    %c0_i32_0 = arith.constant 0 : i32
    return %c0_i32 : i32
  }
  func.func @transform_4(%arg0: i32) -> i32 {
    %c0_i32 = arith.constant 0 : i32
    %c0_i32_0 = arith.constant 0 : i32
    return %c0_i32 : i32
  }
  func.func @transform_5(%arg0: i32) -> (i32, i32, i32, i32) {
    %c0_i32 = arith.constant 0 : i32
    %c0_i32_0 = arith.constant 0 : i32
    %c0_i32_1 = arith.constant 0 : i32
    %c0_i32_2 = arith.constant 0 : i32
    return %arg0, %c0_i32, %c0_i32_0, %c0_i32_1 : i32, i32, i32, i32
  }
  func.func @transform_6(%arg0: i32) -> (i32, i32, i32, i32) {
    %c0_i32 = arith.constant 0 : i32
    %c0_i32_0 = arith.constant 0 : i32
    %c0_i32_1 = arith.constant 0 : i32
    %c0_i32_2 = arith.constant 0 : i32
    return %arg0, %c0_i32, %c0_i32_0, %c0_i32_1 : i32, i32, i32, i32
  }
}

</mosaic_0001>

<llo_original>
// kernel: ddnet_forward.1
$region0: #{ddnet_forward.1}
  #allocation0 [shape = 'u32[]', space=smem, size = 0x4, offset = 0x4, fixed_abs, tag = 'smem constant byte address 0x4 - core index']
  #allocation1 [shape = 'u32[72,128]{1,0:T(1,128)}', space=vmem, size = 0x9000, scoped, tag = 'internal scratch']
  #allocation2 [shape = 'f32[3,24,24]{2,1,0:T(8,128)}', space=vmem, size = 0x9000, scoped, tag = 'scratch operand']
  #allocation3 [shape = 'f32[3,16,16]{2,1,0:T(8,128)}', space=vmem, size = 0x6000, scoped, tag = 'scratch operand']
  #allocation4 [shape = 'f32[4,16,16]{2,1,0:T(8,128)}', space=vmem, size = 0x8000, scoped, tag = 'scratch operand']
  %s0 = inlined_call_operand.vmem [shape: f32[81], index: 0, kind: input, shape index: {}]
  %s1 = inlined_call_operand.vmem [shape: f32[108], index: 1, kind: input, shape index: {}]
  %s2 = inlined_call_operand.vmem [shape: f32[144], index: 2, kind: input, shape index: {}]
  %s3 = inlined_call_operand.vmem [shape: f32[3], index: 3, kind: input, shape index: {}]
  %s4 = inlined_call_operand.vmem [shape: f32[3], index: 4, kind: input, shape index: {}]
  %s5 = inlined_call_operand.vmem [shape: f32[2,3,16,16], index: 5, kind: input, shape index: {}]
  %s6 = inlined_call_operand.hbm [shape: f32[2,4,8,8], index: 6, kind: output, shape index: {}]
  %s7 = sld [smem:[#allocation0]]
  $region77: #{ddnet_forward.1} parent=0
    _
  %s9 = ssub.s32 1, %s7
  %s10 = scalar_select 0, %s9, %s7
  $region1: #{ddnet_forward.1} parent=0
    #allocation5 [shape = 'u8[512]{0}', space=smem, size = 0x200, scoped, tag = 'input window, operand 0, single buffered']
    #allocation6 [shape = 's32[2]{0}', space=sflag, size = 0x8, scoped, tag = 'scoped memory for ddnet_forward.1']
    #allocation7 [shape = 's32[2]{0}', space=sflag, size = 0x8, scoped, tag = 'scoped memory for ddnet_forward.1']
    #allocation8 [shape = 'u8[512]{0}', space=smem, size = 0x200, scoped, tag = 'input window, operand 1, single buffered']
    #allocation9 [shape = 's32[1]{0}', space=sflag, size = 0x4, scoped, tag = 'scoped memory for ddnet_forward.1']
    #allocation10 [shape = 'u8[1024]{0}', space=smem, size = 0x400, scoped, tag = 'input window, operand 2, single buffered']
    #allocation11 [shape = 'u8[512]{0}', space=smem, size = 0x200, scoped, tag = 'input window, operand 3, single buffered']
    #allocation12 [shape = 's32[1]{0}', space=sflag, size = 0x4, scoped, tag = 'scoped memory for ddnet_forward.1']
    #allocation13 [shape = 'u8[512]{0}', space=smem, size = 0x200, scoped, tag = 'input window, operand 4, single buffered']
    #allocation14 [shape = 'u8[32768]{0}', space=vmem, size = 0x8000, scoped, tag = 'output window, operand 0']
    %11 = vsyncpa [#allocation7], 0
    %12 = vsyncpa [#allocation9], 0
    %13 = vsyncpa [#allocation12], 0
    %14 = vsyncpa [#allocation6], 0
    %s15 = scalar_lea.sflag [#allocation6], 1
    %16 = vsyncpa %s15, 0
    loop: start=0, step=1, limit=4
    $region2: #{ddnet_forward.1} parent=1 // loop_pre_header
      _
    $region3: #{ddnet_forward.1} parent=1 // loop_header
      %s18 = sphi 0, %s22
      %p19 = scmp.ge.s32.totalorder %s18, 4
      %s26 = sphi 0, %s26
      %s28 = sphi 0, %s26
      %s29 = sphi 0, %s28
      %s43 = sphi 0, %s29
      %s47 = sphi 0, %s47
      %s49 = sphi 0, %s47
      %s50 = sphi 0, %s49
      %s64 = sphi 0, %s50
      %s68 = sphi 0, %s68
      %s70 = sphi 0, %s68
      %s71 = sphi 0, %s70
      %s85 = sphi 0, %s71
      %s89 = sphi 0, %s89
      %s91 = sphi 0, %s89
      %s92 = sphi 0, %s91
      %s106 = sphi 0, %s92
      %s110 = sphi 0, %s110
      %s112 = sphi 0, %s110
      %s113 = sphi 0, %s112
      %s127 = sphi 0, %s113
      %s133 = sphi 0, %s135
      %s136 = sphi 0, %s133
      %s137 = sphi 0, %s136
      %s153 = sphi 0, %s137
      %s159 = sphi 0, %s161
      %s162 = sphi 0, %s159
      %s163 = sphi 0, %s162
      %s179 = sphi 0, %s163
    $region4: #{ddnet_forward.1} parent=1 // loop_header_branch
      %21 = sbr.rel (%p19) target = $region8
    $region5: #{ddnet_forward.1} parent=1 // loop_body
      %s23 = ssub.s32 %s18, 1
      %s24 = ssub.s32 %s18, 2
      %s25 = sadd.s32 %s18, 1
      %s27 = sadd.s32 %s26, 1
      %p30 = scmp.eq.s32.totalorder %s18, 1
      %p31 = scmp.ne.s32.totalorder %s26, %s28
      %p32 = scmp.eq.s32.totalorder %s18, 0
      %p33 = por %p31, %p32
      %p34 = scmp.ne.s32.totalorder %s26, %s28
      %p35 = scmp.eq.s32.totalorder %s23, 1
      %p36 = por %p34, %p35
      %p37 = scmp.ne.s32.totalorder %s28, %s29
      %p38 = scmp.eq.s32.totalorder %s23, 0
      %p39 = por %p37, %p38
      %p40 = scmp.ne.s32.totalorder %s28, %s29
      %p41 = scmp.eq.s32.totalorder %s24, 1
      %p42 = por %p40, %p41
      %p44 = scmp.ne.s32.totalorder %s29, %s43
      %p45 = scmp.eq.s32.totalorder %s24, 0
      %p46 = por %p44, %p45
      %s48 = sadd.s32 %s47, 1
      %p51 = scmp.eq.s32.totalorder %s18, 1
      %p52 = scmp.ne.s32.totalorder %s47, %s49
      %p53 = scmp.eq.s32.totalorder %s18, 0
      %p54 = por %p52, %p53
      %p55 = scmp.ne.s32.totalorder %s47, %s49
      %p56 = scmp.eq.s32.totalorder %s23, 1
      %p57 = por %p55, %p56
      %p58 = scmp.ne.s32.totalorder %s49, %s50
      %p59 = scmp.eq.s32.totalorder %s23, 0
      %p60 = por %p58, %p59
      %p61 = scmp.ne.s32.totalorder %s49, %s50
      %p62 = scmp.eq.s32.totalorder %s24, 1
      %p63 = por %p61, %p62
      %p65 = scmp.ne.s32.totalorder %s50, %s64
      %p66 = scmp.eq.s32.totalorder %s24, 0
      %p67 = por %p65, %p66
      %s69 = sadd.s32 %s68, 1
      %p72 = scmp.eq.s32.totalorder %s18, 1
      %p73 = scmp.ne.s32.totalorder %s68, %s70
      %p74 = scmp.eq.s32.totalorder %s18, 0
      %p75 = por %p73, %p74
      %p76 = scmp.ne.s32.totalorder %s68, %s70
      %p77 = scmp.eq.s32.totalorder %s23, 1
      %p78 = por %p76, %p77
      %p79 = scmp.ne.s32.totalorder %s70, %s71
      %p80 = scmp.eq.s32.totalorder %s23, 0
      %p81 = por %p79, %p80
      %p82 = scmp.ne.s32.totalorder %s70, %s71
      %p83 = scmp.eq.s32.totalorder %s24, 1
      %p84 = por %p82, %p83
      %p86 = scmp.ne.s32.totalorder %s71, %s85
      %p87 = scmp.eq.s32.totalorder %s24, 0
      %p88 = por %p86, %p87
      %s90 = sadd.s32 %s89, 1
      %p93 = scmp.eq.s32.totalorder %s18, 1
      %p94 = scmp.ne.s32.totalorder %s89, %s91
      %p95 = scmp.eq.s32.totalorder %s18, 0
      %p96 = por %p94, %p95
      %p97 = scmp.ne.s32.totalorder %s89, %s91
      %p98 = scmp.eq.s32.totalorder %s23, 1
      %p99 = por %p97, %p98
      %p100 = scmp.ne.s32.totalorder %s91, %s92
      %p101 = scmp.eq.s32.totalorder %s23, 0
      %p102 = por %p100, %p101
      %p103 = scmp.ne.s32.totalorder %s91, %s92
      %p104 = scmp.eq.s32.totalorder %s24, 1
      %p105 = por %p103, %p104
      %p107 = scmp.ne.s32.totalorder %s92, %s106
      %p108 = scmp.eq.s32.totalorder %s24, 0
      %p109 = por %p107, %p108
      %s111 = sadd.s32 %s110, 1
      %p114 = scmp.eq.s32.totalorder %s18, 1
      %p115 = scmp.ne.s32.totalorder %s110, %s112
      %p116 = scmp.eq.s32.totalorder %s18, 0
      %p117 = por %p115, %p116
      %p118 = scmp.ne.s32.totalorder %s110, %s112
      %p119 = scmp.eq.s32.totalorder %s23, 1
      %p120 = por %p118, %p119
      %p121 = scmp.ne.s32.totalorder %s112, %s113
      %p122 = scmp.eq.s32.totalorder %s23, 0
      %p123 = por %p121, %p122
      %p124 = scmp.ne.s32.totalorder %s112, %s113
      %p125 = scmp.eq.s32.totalorder %s24, 1
      %p126 = por %p124, %p125
      %p128 = scmp.ne.s32.totalorder %s113, %s127
      %p129 = scmp.eq.s32.totalorder %s24, 0
      %p130 = por %p128, %p129
      %s131 = ssub.s32 %s18, %s25
      %p132 = scmp.eq.s32.totalorder %s131, 0
      %s134 = sadd.s32 %s133, 1
      %s135 = scalar_select %p132, %s133, %s134
      %p138 = pneg %p132
      %p139 = scmp.eq.s32.totalorder %s18, 1
      %p140 = por %p138, %p139
      %p141 = scmp.ne.s32.totalorder %s133, %s136
      %p142 = scmp.eq.s32.totalorder %s18, 0
      %p143 = por %p141, %p142
      %p144 = scmp.ne.s32.totalorder %s133, %s136
      %p145 = scmp.eq.s32.totalorder %s23, 1
      %p146 = por %p144, %p145
      %p147 = scmp.ne.s32.totalorder %s136, %s137
      %p148 = scmp.eq.s32.totalorder %s23, 0
      %p149 = por %p147, %p148
      %p150 = scmp.ne.s32.totalorder %s136, %s137
      %p151 = scmp.eq.s32.totalorder %s24, 1
      %p152 = por %p150, %p151
      %p154 = scmp.ne.s32.totalorder %s137, %s153
      %p155 = scmp.eq.s32.totalorder %s24, 0
      %p156 = por %p154, %p155
      %s157 = ssub.s32 %s18, %s25
      %p158 = scmp.eq.s32.totalorder %s157, 0
      %s160 = sadd.s32 %s159, 1
      %s161 = scalar_select %p158, %s159, %s160
      %p164 = pneg %p158
      %p165 = scmp.eq.s32.totalorder %s18, 1
      %p166 = por %p164, %p165
      %p167 = scmp.ne.s32.totalorder %s159, %s162
      %p168 = scmp.eq.s32.totalorder %s18, 0
      %p169 = por %p167, %p168
      %p170 = scmp.ne.s32.totalorder %s159, %s162
      %p171 = scmp.eq.s32.totalorder %s23, 1
      %p172 = por %p170, %p171
      %p173 = scmp.ne.s32.totalorder %s162, %s163
      %p174 = scmp.eq.s32.totalorder %s23, 0
      %p175 = por %p173, %p174
      %p176 = scmp.ne.s32.totalorder %s162, %s163
      %p177 = scmp.eq.s32.totalorder %s24, 1
      %p178 = por %p176, %p177
      %p180 = scmp.ne.s32.totalorder %s163, %s179
      %p181 = scmp.eq.s32.totalorder %s24, 0
      %p182 = por %p180, %p181
      %p183 = scmp.le.s32.totalorder 1, %s18
      %p184 = scmp.lt.s32.totalorder %s18, 3
      %p185 = pnand %p183, %p184
      %p186 = pneg %p185
      // Predicated region
      $region9: #{ddnet_forward.1} parent=5 // pred_check
        _
      $region10: #{ddnet_forward.1} parent=5 // pred_check_branch
        %188 = sbr.rel (%p185) target = $region12
      $region11: #{ddnet_forward.1} parent=5 // pred_region
        %s189 = ssub.s32 %s18, 1
        // Predicated region
        $region13: #{ddnet_forward.1} parent=11 // pred_check
          %p190 = pneg %p39
        $region14: #{ddnet_forward.1} parent=11 // pred_check_branch
          %192 = sbr.rel (%p190) target = $region16
        $region15: #{ddnet_forward.1} parent=11 // pred_region
          %194 = vsyncadd [#allocation7], 0
          %s196 = sshll.u32 %s0, 4
          %s197 = int_to_ptr.vmem [resolvable:$true] %s196
          %199 = dma.vmem_to_smem %s197, 16, [#allocation5], [#allocation7]
        $region16: #{ddnet_forward.1} parent=11 // pred_fallthru
          _
        // Predicated region
        $region17: #{ddnet_forward.1} parent=11 // pred_check
          %p200 = pneg %p60
        $region18: #{ddnet_forward.1} parent=11 // pred_check_branch
          %202 = sbr.rel (%p200) target = $region20
        $region19: #{ddnet_forward.1} parent=11 // pred_region
          %204 = vsyncadd [#allocation9], 0
          %s206 = sshll.u32 %s1, 4
          %s207 = int_to_ptr.vmem [resolvable:$true] %s206
          %209 = dma.vmem_to_smem %s207, 16, [#allocation8], [#allocation9]
        $region20: #{ddnet_forward.1} parent=11 // pred_fallthru
          _
        // Predicated region
        $region21: #{ddnet_forward.1} parent=11 // pred_check
          %p210 = pneg %p81
        $region22: #{ddnet_forward.1} parent=11 // pred_check_branch
          %212 = sbr.rel (%p210) target = $region24
        $region23: #{ddnet_forward.1} parent=11 // pred_region
          %214 = vsyncadd [#allocation9], 0
          %s216 = sshll.u32 %s2, 4
          %s217 = int_to_ptr.vmem [resolvable:$true] %s216
          %219 = dma.vmem_to_smem %s217, 32, [#allocation10], [#allocation9]
        $region24: #{ddnet_forward.1} parent=11 // pred_fallthru
          _
        // Predicated region
        $region25: #{ddnet_forward.1} parent=11 // pred_check
          %p220 = pneg %p102
        $region26: #{ddnet_forward.1} parent=11 // pred_check_branch
          %222 = sbr.rel (%p220) target = $region28
        $region27: #{ddnet_forward.1} parent=11 // pred_region
          %224 = vsyncadd [#allocation12], 0
          %s226 = sshll.u32 %s3, 4
          %s227 = int_to_ptr.vmem [resolvable:$true] %s226
          %229 = dma.vmem_to_smem %s227, 16, [#allocation11], [#allocation12]
        $region28: #{ddnet_forward.1} parent=11 // pred_fallthru
          _
        // Predicated region
        $region29: #{ddnet_forward.1} parent=11 // pred_check
          %p230 = pneg %p123
        $region30: #{ddnet_forward.1} parent=11 // pred_check_branch
          %232 = sbr.rel (%p230) target = $region32
        $region31: #{ddnet_forward.1} parent=11 // pred_region
          %234 = vsyncadd [#allocation12], 0
          %s236 = sshll.u32 %s4, 4
          %s237 = int_to_ptr.vmem [resolvable:$true] %s236
          %239 = dma.vmem_to_smem %s237, 16, [#allocation13], [#allocation12]
        $region32: #{ddnet_forward.1} parent=11 // pred_fallthru
          _
      $region12: #{ddnet_forward.1} parent=5 // pred_fallthru
        _
      %p240 = scmp.lt.s32.totalorder %s18, 2
      // Predicated region
      $region33: #{ddnet_forward.1} parent=5 // pred_check
        %p241 = pneg %p240
      $region34: #{ddnet_forward.1} parent=5 // pred_check_branch
        %243 = sbr.rel (%p241) target = $region36
      $region35: #{ddnet_forward.1} parent=5 // pred_region
        // Predicated region
        $region37: #{ddnet_forward.1} parent=35 // pred_check
          %p244 = pneg %p143
        $region38: #{ddnet_forward.1} parent=35 // pred_check_branch
          %246 = sbr.rel (%p244) target = $region40
        $region39: #{ddnet_forward.1} parent=35 // pred_region
          %p247 = scmp.lt.s32.totalorder %s18, 1
          %s248 = scalar_select %p247, %s18, 1
          %s249 = smul.addr %s248, 6
          %s250 = smul.addr %s249, 8
          %s251 = scalar_lea.vmem %s5, %s250
        $region40: #{ddnet_forward.1} parent=35 // pred_fallthru
          _
      $region36: #{ddnet_forward.1} parent=5 // pred_fallthru
        _
      %p252 = scmp.le.s32.totalorder 1, %s18
      %p253 = scmp.lt.s32.totalorder %s18, 3
      %p254 = pnand %p252, %p253
      %p255 = pneg %p254
      // Predicated region
      $region41: #{ddnet_forward.1} parent=5 // pred_check
        _
      $region42: #{ddnet_forward.1} parent=5 // pred_check_branch
        %257 = sbr.rel (%p254) target = $region44
      $region43: #{ddnet_forward.1} parent=5 // pred_region
        %s258 = ssub.s32 %s18, 1
        // Predicated region
        $region45: #{ddnet_forward.1} parent=43 // pred_check
          %p259 = pneg %p39
        $region46: #{ddnet_forward.1} parent=43 // pred_check_branch
          %261 = sbr.rel (%p259) target = $region48
        $region47: #{ddnet_forward.1} parent=43 // pred_region
          %263 = dma.done [#allocation7], 16
        $region48: #{ddnet_forward.1} parent=43 // pred_fallthru
          _
        // Predicated region
        $region49: #{ddnet_forward.1} parent=43 // pred_check
          %p264 = pneg %p60
        $region50: #{ddnet_forward.1} parent=43 // pred_check_branch
          %266 = sbr.rel (%p264) target = $region52
        $region51: #{ddnet_forward.1} parent=43 // pred_region
          %268 = dma.done [#allocation9], 16
        $region52: #{ddnet_forward.1} parent=43 // pred_fallthru
          _
        // Predicated region
        $region53: #{ddnet_forward.1} parent=43 // pred_check
          %p269 = pneg %p81
        $region54: #{ddnet_forward.1} parent=43 // pred_check_branch
          %271 = sbr.rel (%p269) target = $region56
        $region55: #{ddnet_forward.1} parent=43 // pred_region
          %273 = dma.done [#allocation9], 32
        $region56: #{ddnet_forward.1} parent=43 // pred_fallthru
          _
        // Predicated region
        $region57: #{ddnet_forward.1} parent=43 // pred_check
          %p274 = pneg %p102
        $region58: #{ddnet_forward.1} parent=43 // pred_check_branch
          %276 = sbr.rel (%p274) target = $region60
        $region59: #{ddnet_forward.1} parent=43 // pred_region
          %278 = dma.done [#allocation12], 16
        $region60: #{ddnet_forward.1} parent=43 // pred_fallthru
          _
        // Predicated region
        $region61: #{ddnet_forward.1} parent=43 // pred_check
          %p279 = pneg %p123
        $region62: #{ddnet_forward.1} parent=43 // pred_check_branch
          %281 = sbr.rel (%p279) target = $region64
        $region63: #{ddnet_forward.1} parent=43 // pred_region
          %283 = dma.done [#allocation12], 16
        $region64: #{ddnet_forward.1} parent=43 // pred_fallthru
          _
        %284 = sfence
        %p285 = pneg %p39
        %p286 = pneg %p36
        %p287 = pneg %p60
        %p288 = pneg %p57
        %p289 = pneg %p81
        %p290 = pneg %p78
        %p291 = pneg %p102
        %p292 = pneg %p99
        %p293 = pneg %p123
        %p294 = pneg %p120
        %p295 = scmp.lt.s32.totalorder %s23, 1
        %s296 = scalar_select %p295, %s23, 1
        %s297 = smul.addr %s296, 6
        %s298 = smul.addr %s297, 8
        %s299 = scalar_lea.vmem %s5, %s298
        %p300 = pneg %p149
        %p301 = pneg %p146
        %p302 = pneg %p175
        %p303 = pneg %p172
        %s304 = sand.u32 %s162, 1
        %s305 = scalar_lea.sflag [#allocation6], %s304
        %s306 = sand.u32 %s162, 1
        %s307 = smul.addr %s306, 32
        %s308 = scalar_lea.vmem [#allocation14], %s307
        %p309 = scmp.lt.s32.totalorder %s23, 1
        %s310 = scalar_select %p309, %s23, 1
        %s311 = smul.addr %s310, 6
        %s312 = smul.addr %s311, 8
        %s313 = scalar_lea.vmem %s5, %s312
        %vm314 = vcmask 195584
        %315 = vst.msk [vmem:[#allocation2] sm:$0xff] %vm314, 0.0
        %316 = vst.msk [vmem:[#allocation2 + $0x8] sm:$0xff] %vm314, 0.0
        %317 = vst.msk [vmem:[#allocation2 + $0x10] sm:$0xff] %vm314, 0.0
        %318 = vst.msk [vmem:[#allocation2 + $0x18] sm:$0xff] %vm314, 0.0
        %319 = vst.msk [vmem:[#allocation2 + $0x20] sm:$0xff] %vm314, 0.0
        %320 = vst.msk [vmem:[#allocation2 + $0x28] sm:$0xff] %vm314, 0.0
        %321 = vst.msk [vmem:[#allocation2 + $0x30] sm:$0xff] %vm314, 0.0
        %322 = vst.msk [vmem:[#allocation2 + $0x38] sm:$0xff] %vm314, 0.0
        %323 = vst.msk [vmem:[#allocation2 + $0x40] sm:$0xff] %vm314, 0.0
        %vm324 = vcmask 130048
        %325 = vst.msk [vmem:[#allocation3] sm:$0xff] %vm324, 0.0
        %326 = vst.msk [vmem:[#allocation3 + $0x8] sm:$0xff] %vm324, 0.0
        %327 = vst.msk [vmem:[#allocation3 + $0x10] sm:$0xff] %vm324, 0.0
        %328 = vst.msk [vmem:[#allocation3 + $0x18] sm:$0xff] %vm324, 0.0
        %329 = vst.msk [vmem:[#allocation3 + $0x20] sm:$0xff] %vm324, 0.0
        %330 = vst.msk [vmem:[#allocation3 + $0x28] sm:$0xff] %vm324, 0.0
        %331 = vst.msk [vmem:[#allocation4] sm:$0xff] %vm324, 0.0
        %332 = vst.msk [vmem:[#allocation4 + $0x8] sm:$0xff] %vm324, 0.0
        %333 = vst.msk [vmem:[#allocation4 + $0x10] sm:$0xff] %vm324, 0.0
        %334 = vst.msk [vmem:[#allocation4 + $0x18] sm:$0xff] %vm324, 0.0
        %335 = vst.msk [vmem:[#allocation4 + $0x20] sm:$0xff] %vm324, 0.0
        %336 = vst.msk [vmem:[#allocation4 + $0x28] sm:$0xff] %vm324, 0.0
        %337 = vst.msk [vmem:[#allocation4 + $0x30] sm:$0xff] %vm324, 0.0
        %338 = vst.msk [vmem:[#allocation4 + $0x38] sm:$0xff] %vm324, 0.0
        %v339 = vld [vmem:[%s313] sm:$0xff]
        %v340 = vld [vmem:[%s313 + $0x8] sm:$0xff]
        %343 = vrot.lane.b32.xlu0 %v339, 1
        %v344 = vpop.permute.xlu0 %343
        %345 = vrot.lane.b32.xlu0 %v340, 1
        %v346 = vpop.permute.xlu0 %345
        %vm349 = vcmask 138248
        %350 = vst.msk [vmem:[#allocation2 + $0x1] sm:$0xff] %vm349, %v344
        %351 = vst.msk [vmem:[#allocation2 + $0x9] sm:$0xff] %vm349, %v346
        %s352 = scalar_lea.vmem %s313, 16
        %v353 = vld [vmem:[%s352] sm:$0xff]
        %v354 = vld [vmem:[%s352 + $0x8] sm:$0xff]
        %357 = vrot.lane.b32.xlu0 %v353, 1
        %v358 = vpop.permute.xlu0 %357
        %359 = vrot.lane.b32.xlu0 %v354, 1
        %v360 = vpop.permute.xlu0 %359
        %s363 = scalar_lea.vmem [#allocation2], 24
        %364 = vst.msk [vmem:[%s363 + $0x1] sm:$0xff] %vm349, %v358
        %365 = vst.msk [vmem:[%s363 + $0x9] sm:$0xff] %vm349, %v360
        %s366 = scalar_lea.vmem %s313, 32
        %v367 = vld [vmem:[%s366] sm:$0xff]
        %v368 = vld [vmem:[%s366 + $0x8] sm:$0xff]
        %371 = vrot.lane.b32.xlu0 %v367, 1
        %v372 = vpop.permute.xlu0 %371
        %373 = vrot.lane.b32.xlu0 %v368, 1
        %v374 = vpop.permute.xlu0 %373
        %s377 = scalar_lea.vmem [#allocation2], 48
        %378 = vst.msk [vmem:[%s377 + $0x1] sm:$0xff] %vm349, %v372
        %379 = vst.msk [vmem:[%s377 + $0x9] sm:$0xff] %vm349, %v374
        %v380 = vlaneseq
        %v381 = vshrl.u32 %v380, 7
        %v382 = vadd.s32 %v381, 8
        %v383 = vlaneseq
        %v384 = vand.u32 %v383, 127
        %v385 = vmul.u32 %v381, 2
        %v386 = vmul.u32 %v382, 2
        %vm387 = vcmp.eq.s32.totalorder %v384, %v385
        %vm388 = vcmp.eq.s32.totalorder %v384, %v386
        %v389 = vsel %vm387, 1, 0
        %v390 = vsel %vm388, 1, 0
        %v391 = vcvt.s32.f32 %v389
        %v392 = vcvt.s32.f32 %v390
        %v393 = vadd.s32 %v385, 1
        %v394 = vadd.s32 %v386, 1
        %vm395 = vcmp.eq.s32.totalorder %v384, %v393
        %vm396 = vcmp.eq.s32.totalorder %v384, %v394
        %v397 = vsel %vm395, 1, 0
        %v398 = vsel %vm396, 1, 0
        %v399 = vcvt.s32.f32 %v397
        %v400 = vcvt.s32.f32 %v398
        %v401 = vadd.s32 %v381, 16
        %v402 = vmul.u32 %v384, 2
        %vm403 = vcmp.eq.s32.totalorder %v381, %v402
        %vm404 = vcmp.eq.s32.totalorder %v382, %v402
        %vm405 = vcmp.eq.s32.totalorder %v401, %v402
        %v406 = vsel %vm403, 1, 0
        %v407 = vsel %vm404, 1, 0
        %v408 = vsel %vm405, 1, 0
        %v409 = vcvt.s32.f32 %v406
        %v410 = vcvt.s32.f32 %v407
        %v411 = vcvt.s32.f32 %v408
        %v412 = vadd.s32 %v402, 1
        %vm413 = vcmp.eq.s32.totalorder %v381, %v412
        %vm414 = vcmp.eq.s32.totalorder %v382, %v412
        %vm415 = vcmp.eq.s32.totalorder %v401, %v412
        %v416 = vsel %vm413, 1, 0
        %v417 = vsel %vm414, 1, 0
        %v418 = vsel %vm415, 1, 0
        %v419 = vcvt.s32.f32 %v416
        %v420 = vcvt.s32.f32 %v417
        %v421 = vcvt.s32.f32 %v418
        %v422 = vld [vmem:[#allocation2] sm:$0xff]
        %v423 = vld [vmem:[#allocation2 + $0x8] sm:$0xff]
        %v424 = vld [vmem:[#allocation2 + $0x10] sm:$0xff]
        %v426 = vsel %vm314, %v391, 0
        %v429 = vsel %vm314, %v392, 0
        %431 = vmatpush.msra.mxu0 0.0
        %432 = vmatpush.msra.mxu0 0.0
        %433 = vmatpush.msra.mxu0 0.0
        %434 = vmatpush.msra.mxu0 0.0
        %435 = vmatpush.msra.mxu0 0.0
        %436 = vmatpush.msra.mxu0 0.0
        %437 = vmatpush.msra.mxu0 0.0
        %438 = vmatpush.msra.mxu0 0.0
        %439 = vmatpush.msra.mxu0 0.0
        %440 = vmatpush.msra.mxu0 0.0
        %441 = vmatpush.msra.mxu0 0.0
        %442 = vmatpush.msra.mxu0 0.0
        %443 = vmatpush.msra.mxu0 0.0
        %444 = vmatpush.msra.mxu0 %v424
        %445 = vmatpush.msra.mxu0 %v423
        %446 = vmatpush.msra.mxu0 %v422
        %447 = vmatmul.f32.gmra.mxu0 %v426
        %v448 = vpop.f32.mrf.mxu0
        %v449 = vadd.f32 0.0, %v448
        %450 = vmatmul.f32.gmra.mxu0 %v429
        %v451 = vpop.f32.mrf.mxu0
        %v452 = vadd.f32 0.0, %v451
        %453 = vdwg.mxu0
        %v455 = vsel %vm314, %v399, 0
        %v458 = vsel %vm314, %v400, 0
        %460 = vmatpush.msra.mxu0 0.0
        %461 = vmatpush.msra.mxu0 0.0
        %462 = vmatpush.msra.mxu0 0.0
        %463 = vmatpush.msra.mxu0 0.0
        %464 = vmatpush.msra.mxu0 0.0
        %465 = vmatpush.msra.mxu0 0.0
        %466 = vmatpush.msra.mxu0 0.0
        %467 = vmatpush.msra.mxu0 0.0
        %468 = vmatpush.msra.mxu0 0.0
        %469 = vmatpush.msra.mxu0 0.0
        %470 = vmatpush.msra.mxu0 0.0
        %471 = vmatpush.msra.mxu0 0.0
        %472 = vmatpush.msra.mxu0 0.0
        %473 = vmatpush.msra.mxu0 %v424
        %474 = vmatpush.msra.mxu0 %v423
        %475 = vmatpush.msra.mxu0 %v422
        %476 = vmatmul.f32.gmra.mxu0 %v455
        %v477 = vpop.f32.mrf.mxu0
        %v478 = vadd.f32 0.0, %v477
        %479 = vmatmul.f32.gmra.mxu0 %v458
        %v480 = vpop.f32.mrf.mxu0
        %v481 = vadd.f32 0.0, %v480
        %482 = vdwg.mxu0
        %v484 = vsel %vm314, %v449, 0
        %v487 = vsel %vm314, %v452, 0
        %489 = vmatpush.msra.mxu0 0.0
        %490 = vmatpush.msra.mxu0 0.0
        %491 = vmatpush.msra.mxu0 0.0
        %492 = vmatpush.msra.mxu0 0.0
        %493 = vmatpush.msra.mxu0 0.0
        %494 = vmatpush.msra.mxu0 0.0
        %495 = vmatpush.msra.mxu0 0.0
        %496 = vmatpush.msra.mxu0 0.0
        %497 = vmatpush.msra.mxu0 0.0
        %498 = vmatpush.msra.mxu0 0.0
        %499 = vmatpush.msra.mxu0 0.0
        %500 = vmatpush.msra.mxu0 0.0
        %501 = vmatpush.msra.mxu0 0.0
        %502 = vmatpush.msra.mxu0 %v411
        %503 = vmatpush.msra.mxu0 %v410
        %504 = vmatpush.msra.mxu0 %v409
        %505 = vmatmul.f32.gmra.mxu0 %v484
        %v506 = vpop.f32.mrf.mxu0
        %v507 = vadd.f32 0.0, %v506
        %508 = vmatmul.f32.gmra.mxu0 %v487
        %v509 = vpop.f32.mrf.mxu0
        %v510 = vadd.f32 0.0, %v509
        %511 = vdwg.mxu0
        %512 = vmatpush.msra.mxu0 0.0
        %513 = vmatpush.msra.mxu0 0.0
        %514 = vmatpush.msra.mxu0 0.0
        %515 = vmatpush.msra.mxu0 0.0
        %516 = vmatpush.msra.mxu0 0.0
        %517 = vmatpush.msra.mxu0 0.0
        %518 = vmatpush.msra.mxu0 0.0
        %519 = vmatpush.msra.mxu0 0.0
        %520 = vmatpush.msra.mxu0 0.0
        %521 = vmatpush.msra.mxu0 0.0
        %522 = vmatpush.msra.mxu0 0.0
        %523 = vmatpush.msra.mxu0 0.0
        %524 = vmatpush.msra.mxu0 0.0
        %525 = vmatpush.msra.mxu0 %v421
        %526 = vmatpush.msra.mxu0 %v420
        %527 = vmatpush.msra.mxu0 %v419
        %528 = vmatmul.f32.gmra.mxu0 %v484
        %v529 = vpop.f32.mrf.mxu0
        %v530 = vadd.f32 0.0, %v529
        %531 = vmatmul.f32.gmra.mxu0 %v487
        %v532 = vpop.f32.mrf.mxu0
        %v533 = vadd.f32 0.0, %v532
        %534 = vdwg.mxu0
        %v536 = vsel %vm314, %v478, 0
        %v539 = vsel %vm314, %v481, 0
        %541 = vmatpush.msra.mxu0 0.0
        %542 = vmatpush.msra.mxu0 0.0
        %543 = vmatpush.msra.mxu0 0.0
        %544 = vmatpush.msra.mxu0 0.0
        %545 = vmatpush.msra.mxu0 0.0
        %546 = vmatpush.msra.mxu0 0.0
        %547 = vmatpush.msra.mxu0 0.0
        %548 = vmatpush.msra.mxu0 0.0
        %549 = vmatpush.msra.mxu0 0.0
        %550 = vmatpush.msra.mxu0 0.0
        %551 = vmatpush.msra.mxu0 0.0
        %552 = vmatpush.msra.mxu0 0.0
        %553 = vmatpush.msra.mxu0 0.0
        %554 = vmatpush.msra.mxu0 %v411
        %555 = vmatpush.msra.mxu0 %v410
        %556 = vmatpush.msra.mxu0 %v409
        %557 = vmatmul.f32.gmra.mxu0 %v536
        %v558 = vpop.f32.mrf.mxu0
        %v559 = vadd.f32 0.0, %v558
        %560 = vmatmul.f32.gmra.mxu0 %v539
        %v561 = vpop.f32.mrf.mxu0
        %562 = vdwg.mxu0
        %563 = vmatpush.msra.mxu0 0.0
        %564 = vmatpush.msra.mxu0 0.0
        %565 = vmatpush.msra.mxu0 0.0
        %566 = vmatpush.msra.mxu0 0.0
        %567 = vmatpush.msra.mxu0 0.0
        %568 = vmatpush.msra.mxu0 0.0
        %569 = vmatpush.msra.mxu0 0.0
        %570 = vmatpush.msra.mxu0 0.0
        %571 = vmatpush.msra.mxu0 0.0
        %572 = vmatpush.msra.mxu0 0.0
        %573 = vmatpush.msra.mxu0 0.0
        %574 = vmatpush.msra.mxu0 0.0
        %575 = vmatpush.msra.mxu0 0.0
        %576 = vmatpush.msra.mxu0 %v421
        %577 = vmatpush.msra.mxu0 %v420
        %578 = vmatpush.msra.mxu0 %v419
        %579 = vmatmul.f32.gmra.mxu0 %v536
        %v580 = vpop.f32.mrf.mxu0
        %v581 = vadd.f32 0.0, %v580
        %582 = vmatmul.f32.gmra.mxu0 %v539
        %v583 = vpop.f32.mrf.mxu0
        %584 = vdwg.mxu0
        %v585 = vld [vmem:[%s363] sm:$0xff]
        %v586 = vld [vmem:[%s363 + $0x8] sm:$0xff]
        %v587 = vld [vmem:[%s363 + $0x10] sm:$0xff]
        %588 = vmatpush.msra.mxu0 0.0
        %589 = vmatpush.msra.mxu0 0.0
        %590 = vmatpush.msra.mxu0 0.0
        %591 = vmatpush.msra.mxu0 0.0
        %592 = vmatpush.msra.mxu0 0.0
        %593 = vmatpush.msra.mxu0 0.0
        %594 = vmatpush.msra.mxu0 0.0
        %595 = vmatpush.msra.mxu0 0.0
        %596 = vmatpush.msra.mxu0 0.0
        %597 = vmatpush.msra.mxu0 0.0
        %598 = vmatpush.msra.mxu0 0.0
        %599 = vmatpush.msra.mxu0 0.0
        %600 = vmatpush.msra.mxu0 0.0
        %601 = vmatpush.msra.mxu0 %v587
        %602 = vmatpush.msra.mxu0 %v586
        %603 = vmatpush.msra.mxu0 %v585
        %604 = vmatmul.f32.gmra.mxu0 %v426
        %v605 = vpop.f32.mrf.mxu0
        %v606 = vadd.f32 0.0, %v605
        %607 = vmatmul.f32.gmra.mxu0 %v429
        %v608 = vpop.f32.mrf.mxu0
        %v609 = vadd.f32 0.0, %v608
        %610 = vdwg.mxu0
        %611 = vmatpush.msra.mxu0 0.0
        %612 = vmatpush.msra.mxu0 0.0
        %613 = vmatpush.msra.mxu0 0.0
        %614 = vmatpush.msra.mxu0 0.0
        %615 = vmatpush.msra.mxu0 0.0
        %616 = vmatpush.msra.mxu0 0.0
        %617 = vmatpush.msra.mxu0 0.0
        %618 = vmatpush.msra.mxu0 0.0
        %619 = vmatpush.msra.mxu0 0.0
        %620 = vmatpush.msra.mxu0 0.0
        %621 = vmatpush.msra.mxu0 0.0
        %622 = vmatpush.msra.mxu0 0.0
        %623 = vmatpush.msra.mxu0 0.0
        %624 = vmatpush.msra.mxu0 %v587
        %625 = vmatpush.msra.mxu0 %v586
        %626 = vmatpush.msra.mxu0 %v585
        %627 = vmatmul.f32.gmra.mxu0 %v455
        %v628 = vpop.f32.mrf.mxu0
        %v629 = vadd.f32 0.0, %v628
        %630 = vmatmul.f32.gmra.mxu0 %v458
        %v631 = vpop.f32.mrf.mxu0
        %v632 = vadd.f32 0.0, %v631
        %633 = vdwg.mxu0
        %v635 = vsel %vm314, %v606, 0
        %v638 = vsel %vm314, %v609, 0
        %640 = vmatpush.msra.mxu0 0.0
        %641 = vmatpush.msra.mxu0 0.0
        %642 = vmatpush.msra.mxu0 0.0
        %643 = vmatpush.msra.mxu0 0.0
        %644 = vmatpush.msra.mxu0 0.0
        %645 = vmatpush.msra.mxu0 0.0
        %646 = vmatpush.msra.mxu0 0.0
        %647 = vmatpush.msra.mxu0 0.0
        %648 = vmatpush.msra.mxu0 0.0
        %649 = vmatpush.msra.mxu0 0.0
        %650 = vmatpush.msra.mxu0 0.0
        %651 = vmatpush.msra.mxu0 0.0
        %652 = vmatpush.msra.mxu0 0.0
        %653 = vmatpush.msra.mxu0 %v411
        %654 = vmatpush.msra.mxu0 %v410
        %655 = vmatpush.msra.mxu0 %v409
        %656 = vmatmul.f32.gmra.mxu0 %v635
        %v657 = vpop.f32.mrf.mxu0
        %v658 = vadd.f32 0.0, %v657
        %659 = vmatmul.f32.gmra.mxu0 %v638
        %v660 = vpop.f32.mrf.mxu0
        %v661 = vadd.f32 0.0, %v660
        %662 = vdwg.mxu0
        %663 = vmatpush.msra.mxu0 0.0
        %664 = vmatpush.msra.mxu0 0.0
        %665 = vmatpush.msra.mxu0 0.0
        %666 = vmatpush.msra.mxu0 0.0
        %667 = vmatpush.msra.mxu0 0.0
        %668 = vmatpush.msra.mxu0 0.0
        %669 = vmatpush.msra.mxu0 0.0
        %670 = vmatpush.msra.mxu0 0.0
        %671 = vmatpush.msra.mxu0 0.0
        %672 = vmatpush.msra.mxu0 0.0
        %673 = vmatpush.msra.mxu0 0.0
        %674 = vmatpush.msra.mxu0 0.0
        %675 = vmatpush.msra.mxu0 0.0
        %676 = vmatpush.msra.mxu0 %v421
        %677 = vmatpush.msra.mxu0 %v420
        %678 = vmatpush.msra.mxu0 %v419
        %679 = vmatmul.f32.gmra.mxu0 %v635
        %v680 = vpop.f32.mrf.mxu0
        %v681 = vadd.f32 0.0, %v680
        %682 = vmatmul.f32.gmra.mxu0 %v638
        %v683 = vpop.f32.mrf.mxu0
        %v684 = vadd.f32 0.0, %v683
        %685 = vdwg.mxu0
        %v687 = vsel %vm314, %v629, 0
        %v690 = vsel %vm314, %v632, 0
        %692 = vmatpush.msra.mxu0 0.0
        %693 = vmatpush.msra.mxu0 0.0
        %694 = vmatpush.msra.mxu0 0.0
        %695 = vmatpush.msra.mxu0 0.0
        %696 = vmatpush.msra.mxu0 0.0
        %697 = vmatpush.msra.mxu0 0.0
        %698 = vmatpush.msra.mxu0 0.0
        %699 = vmatpush.msra.mxu0 0.0
        %700 = vmatpush.msra.mxu0 0.0
        %701 = vmatpush.msra.mxu0 0.0
        %702 = vmatpush.msra.mxu0 0.0
        %703 = vmatpush.msra.mxu0 0.0
        %704 = vmatpush.msra.mxu0 0.0
        %705 = vmatpush.msra.mxu0 %v411
        %706 = vmatpush.msra.mxu0 %v410
        %707 = vmatpush.msra.mxu0 %v409
        %708 = vmatmul.f32.gmra.mxu0 %v687
        %v709 = vpop.f32.mrf.mxu0
        %v710 = vadd.f32 0.0, %v709
        %711 = vmatmul.f32.gmra.mxu0 %v690
        %v712 = vpop.f32.mrf.mxu0
        %713 = vdwg.mxu0
        %714 = vmatpush.msra.mxu0 0.0
        %715 = vmatpush.msra.mxu0 0.0
        %716 = vmatpush.msra.mxu0 0.0
        %717 = vmatpush.msra.mxu0 0.0
        %718 = vmatpush.msra.mxu0 0.0
        %719 = vmatpush.msra.mxu0 0.0
        %720 = vmatpush.msra.mxu0 0.0
        %721 = vmatpush.msra.mxu0 0.0
        %722 = vmatpush.msra.mxu0 0.0
        %723 = vmatpush.msra.mxu0 0.0
        %724 = vmatpush.msra.mxu0 0.0
        %725 = vmatpush.msra.mxu0 0.0
        %726 = vmatpush.msra.mxu0 0.0
        %727 = vmatpush.msra.mxu0 %v421
        %728 = vmatpush.msra.mxu0 %v420
        %729 = vmatpush.msra.mxu0 %v419
        %730 = vmatmul.f32.gmra.mxu0 %v687
        %v731 = vpop.f32.mrf.mxu0
        %v732 = vadd.f32 0.0, %v731
        %733 = vmatmul.f32.gmra.mxu0 %v690
        %v734 = vpop.f32.mrf.mxu0
        %735 = vdwg.mxu0
        %v736 = vld [vmem:[%s377] sm:$0xff]
        %v737 = vld [vmem:[%s377 + $0x8] sm:$0xff]
        %v738 = vld [vmem:[%s377 + $0x10] sm:$0xff]
        %739 = vmatpush.msra.mxu0 0.0
        %740 = vmatpush.msra.mxu0 0.0
        %741 = vmatpush.msra.mxu0 0.0
        %742 = vmatpush.msra.mxu0 0.0
        %743 = vmatpush.msra.mxu0 0.0
        %744 = vmatpush.msra.mxu0 0.0
        %745 = vmatpush.msra.mxu0 0.0
        %746 = vmatpush.msra.mxu0 0.0
        %747 = vmatpush.msra.mxu0 0.0
        %748 = vmatpush.msra.mxu0 0.0
        %749 = vmatpush.msra.mxu0 0.0
        %750 = vmatpush.msra.mxu0 0.0
        %751 = vmatpush.msra.mxu0 0.0
        %752 = vmatpush.msra.mxu0 %v738
        %753 = vmatpush.msra.mxu0 %v737
        %754 = vmatpush.msra.mxu0 %v736
        %755 = vmatmul.f32.gmra.mxu0 %v426
        %v756 = vpop.f32.mrf.mxu0
        %v757 = vadd.f32 0.0, %v756
        %758 = vmatmul.f32.gmra.mxu0 %v429
        %v759 = vpop.f32.mrf.mxu0
        %v760 = vadd.f32 0.0, %v759
        %761 = vdwg.mxu0
        %762 = vmatpush.msra.mxu0 0.0
        %763 = vmatpush.msra.mxu0 0.0
        %764 = vmatpush.msra.mxu0 0.0
        %765 = vmatpush.msra.mxu0 0.0
        %766 = vmatpush.msra.mxu0 0.0
        %767 = vmatpush.msra.mxu0 0.0
        %768 = vmatpush.msra.mxu0 0.0
        %769 = vmatpush.msra.mxu0 0.0
        %770 = vmatpush.msra.mxu0 0.0
        %771 = vmatpush.msra.mxu0 0.0
        %772 = vmatpush.msra.mxu0 0.0
        %773 = vmatpush.msra.mxu0 0.0
        %774 = vmatpush.msra.mxu0 0.0
        %775 = vmatpush.msra.mxu0 %v738
        %776 = vmatpush.msra.mxu0 %v737
        %777 = vmatpush.msra.mxu0 %v736
        %778 = vmatmul.f32.gmra.mxu0 %v455
        %v779 = vpop.f32.mrf.mxu0
        %v780 = vadd.f32 0.0, %v779
        %781 = vmatmul.f32.gmra.mxu0 %v458
        %v782 = vpop.f32.mrf.mxu0
        %v783 = vadd.f32 0.0, %v782
        %784 = vdwg.mxu0
        %v786 = vsel %vm314, %v757, 0
        %v789 = vsel %vm314, %v760, 0
        %791 = vmatpush.msra.mxu0 0.0
        %792 = vmatpush.msra.mxu0 0.0
        %793 = vmatpush.msra.mxu0 0.0
        %794 = vmatpush.msra.mxu0 0.0
        %795 = vmatpush.msra.mxu0 0.0
        %796 = vmatpush.msra.mxu0 0.0
        %797 = vmatpush.msra.mxu0 0.0
        %798 = vmatpush.msra.mxu0 0.0
        %799 = vmatpush.msra.mxu0 0.0
        %800 = vmatpush.msra.mxu0 0.0
        %801 = vmatpush.msra.mxu0 0.0
        %802 = vmatpush.msra.mxu0 0.0
        %803 = vmatpush.msra.mxu0 0.0
        %804 = vmatpush.msra.mxu0 %v411
        %805 = vmatpush.msra.mxu0 %v410
        %806 = vmatpush.msra.mxu0 %v409
        %807 = vmatmul.f32.gmra.mxu0 %v786
        %v808 = vpop.f32.mrf.mxu0
        %v809 = vadd.f32 0.0, %v808
        %810 = vmatmul.f32.gmra.mxu0 %v789
        %v811 = vpop.f32.mrf.mxu0
        %v812 = vadd.f32 0.0, %v811
        %813 = vdwg.mxu0
        %814 = vmatpush.msra.mxu0 0.0
        %815 = vmatpush.msra.mxu0 0.0
        %816 = vmatpush.msra.mxu0 0.0
        %817 = vmatpush.msra.mxu0 0.0
        %818 = vmatpush.msra.mxu0 0.0
        %819 = vmatpush.msra.mxu0 0.0
        %820 = vmatpush.msra.mxu0 0.0
        %821 = vmatpush.msra.mxu0 0.0
        %822 = vmatpush.msra.mxu0 0.0
        %823 = vmatpush.msra.mxu0 0.0
        %824 = vmatpush.msra.mxu0 0.0
        %825 = vmatpush.msra.mxu0 0.0
        %826 = vmatpush.msra.mxu0 0.0
        %827 = vmatpush.msra.mxu0 %v421
        %828 = vmatpush.msra.mxu0 %v420
        %829 = vmatpush.msra.mxu0 %v419
        %830 = vmatmul.f32.gmra.mxu0 %v786
        %v831 = vpop.f32.mrf.mxu0
        %v832 = vadd.f32 0.0, %v831
        %833 = vmatmul.f32.gmra.mxu0 %v789
        %v834 = vpop.f32.mrf.mxu0
        %v835 = vadd.f32 0.0, %v834
        %836 = vdwg.mxu0
        %v838 = vsel %vm314, %v780, 0
        %v841 = vsel %vm314, %v783, 0
        %843 = vmatpush.msra.mxu0 0.0
        %844 = vmatpush.msra.mxu0 0.0
        %845 = vmatpush.msra.mxu0 0.0
        %846 = vmatpush.msra.mxu0 0.0
        %847 = vmatpush.msra.mxu0 0.0
        %848 = vmatpush.msra.mxu0 0.0
        %849 = vmatpush.msra.mxu0 0.0
        %850 = vmatpush.msra.mxu0 0.0
        %851 = vmatpush.msra.mxu0 0.0
        %852 = vmatpush.msra.mxu0 0.0
        %853 = vmatpush.msra.mxu0 0.0
        %854 = vmatpush.msra.mxu0 0.0
        %855 = vmatpush.msra.mxu0 0.0
        %856 = vmatpush.msra.mxu0 %v411
        %857 = vmatpush.msra.mxu0 %v410
        %858 = vmatpush.msra.mxu0 %v409
        %859 = vmatmul.f32.gmra.mxu0 %v838
        %v860 = vpop.f32.mrf.mxu0
        %v861 = vadd.f32 0.0, %v860
        %862 = vmatmul.f32.gmra.mxu0 %v841
        %v863 = vpop.f32.mrf.mxu0
        %864 = vdwg.mxu0
        %865 = vmatpush.msra.mxu0 0.0
        %866 = vmatpush.msra.mxu0 0.0
        %867 = vmatpush.msra.mxu0 0.0
        %868 = vmatpush.msra.mxu0 0.0
        %869 = vmatpush.msra.mxu0 0.0
        %870 = vmatpush.msra.mxu0 0.0
        %871 = vmatpush.msra.mxu0 0.0
        %872 = vmatpush.msra.mxu0 0.0
        %873 = vmatpush.msra.mxu0 0.0
        %874 = vmatpush.msra.mxu0 0.0
        %875 = vmatpush.msra.mxu0 0.0
        %876 = vmatpush.msra.mxu0 0.0
        %877 = vmatpush.msra.mxu0 0.0
        %878 = vmatpush.msra.mxu0 %v421
        %879 = vmatpush.msra.mxu0 %v420
        %880 = vmatpush.msra.mxu0 %v419
        %881 = vmatmul.f32.gmra.mxu0 %v838
        %v882 = vpop.f32.mrf.mxu0
        %v883 = vadd.f32 0.0, %v882
        %884 = vmatmul.f32.gmra.mxu0 %v841
        %v885 = vpop.f32.mrf.mxu0
        %886 = vdwg.mxu0
        %s887 = sld [smem:[#allocation5]]
        %v888 = vstv %s887
        %v889 = vmul.f32 %v888, %v507
        %v890 = vadd.f32 %v889, 0.0
        %s891 = sld [smem:[#allocation5 + $0x1]]
        %v892 = vstv %s891
        %v893 = vmul.f32 %v892, %v530
        %v894 = vadd.f32 %v890, %v893
        %s895 = sld [smem:[#allocation5 + $0x2]]
        %v896 = vstv %s895
        %v897 = vmul.f32 %v896, %v507
        %899 = vrot.lane.b32.xlu0 %v897, 127
        %v900 = vpop.permute.xlu0 %899
        %v902 = vadd.f32 %v894, %v900
        %s903 = sld [smem:[#allocation5 + $0x3]]
        %v904 = vstv %s903
        %v905 = vmul.f32 %v904, %v559
        %v906 = vadd.f32 %v902, %v905
        %s907 = sld [smem:[#allocation5 + $0x4]]
        %v908 = vstv %s907
        %v909 = vmul.f32 %v908, %v581
        %v910 = vadd.f32 %v906, %v909
        %s911 = sld [smem:[#allocation5 + $0x5]]
        %v912 = vstv %s911
        %v913 = vmul.f32 %v912, %v559
        %915 = vrot.lane.b32.xlu0 %v913, 127
        %v916 = vpop.permute.xlu0 %915
        %v918 = vadd.f32 %v910, %v916
        %s919 = sld [smem:[#allocation5 + $0x6]]
        %v920 = vstv %s919
        %v921 = vmul.f32 %v920, %v507
        %v922 = vmul.f32 %v920, %v510
        %vm925 = vcmask 1046528
        %v926 = vrot.slane %v921, 1
        %v927 = vrot.slane %v922, 1
        %v928 = vsel %vm925, %v926, %v927
        %v930 = vadd.f32 %v918, %v928
        %s931 = sld [smem:[#allocation5 + $0x7]]
        %v932 = vstv %s931
        %v933 = vmul.f32 %v932, %v530
        %v934 = vmul.f32 %v932, %v533
        %v937 = vrot.slane %v933, 1
        %v938 = vrot.slane %v934, 1
        %v939 = vsel %vm925, %v937, %v938
        %v941 = vadd.f32 %v930, %v939
        %s942 = sld [smem:[#allocation5 + $0x8]]
        %v943 = vstv %s942
        %v944 = vmul.f32 %v943, %v507
        %v945 = vmul.f32 %v943, %v510
        %v948 = vrot.slane %v944, 1
        %v949 = vrot.slane %v945, 1
        %v950 = vsel %vm925, %v948, %v949
        %951 = vrot.lane.b32.xlu0 %v950, 127
        %v952 = vpop.permute.xlu0 %951
        %v954 = vadd.f32 %v941, %v952
        %s955 = sld [smem:[#allocation5 + $0x9]]
        %v956 = vstv %s955
        %v957 = vmul.f32 %v956, %v658
        %v958 = vadd.f32 %v954, %v957
        %s959 = sld [smem:[#allocation5 + $0xa]]
        %v960 = vstv %s959
        %v961 = vmul.f32 %v960, %v681
        %v962 = vadd.f32 %v958, %v961
        %s963 = sld [smem:[#allocation5 + $0xb]]
        %v964 = vstv %s963
        %v965 = vmul.f32 %v964, %v658
        %967 = vrot.lane.b32.xlu0 %v965, 127
        %v968 = vpop.permute.xlu0 %967
        %v970 = vadd.f32 %v962, %v968
        %s971 = sld [smem:[#allocation5 + $0xc]]
        %v972 = vstv %s971
        %v973 = vmul.f32 %v972, %v710
        %v974 = vadd.f32 %v970, %v973
        %s975 = sld [smem:[#allocation5 + $0xd]]
        %v976 = vstv %s975
        %v977 = vmul.f32 %v976, %v732
        %v978 = vadd.f32 %v974, %v977
        %s979 = sld [smem:[#allocation5 + $0xe]]
        %v980 = vstv %s979
        %v981 = vmul.f32 %v980, %v710
        %983 = vrot.lane.b32.xlu0 %v981, 127
        %v984 = vpop.permute.xlu0 %983
        %v986 = vadd.f32 %v978, %v984
        %s987 = sld [smem:[#allocation5 + $0xf]]
        %v988 = vstv %s987
        %v989 = vmul.f32 %v988, %v658
        %v990 = vmul.f32 %v988, %v661
        %v993 = vrot.slane %v989, 1
        %v994 = vrot.slane %v990, 1
        %v995 = vsel %vm925, %v993, %v994
        %v997 = vadd.f32 %v986, %v995
        %s998 = sld [smem:[#allocation5 + $0x10]]
        %v999 = vstv %s998
        %v1000 = vmul.f32 %v999, %v681
        %v1001 = vmul.f32 %v999, %v684
        %v1004 = vrot.slane %v1000, 1
        %v1005 = vrot.slane %v1001, 1
        %v1006 = vsel %vm925, %v1004, %v1005
        %v1008 = vadd.f32 %v997, %v1006
        %s1009 = sld [smem:[#allocation5 + $0x11]]
        %v1010 = vstv %s1009
        %v1011 = vmul.f32 %v1010, %v658
        %v1012 = vmul.f32 %v1010, %v661
        %v1015 = vrot.slane %v1011, 1
        %v1016 = vrot.slane %v1012, 1
        %v1017 = vsel %vm925, %v1015, %v1016
        %1018 = vrot.lane.b32.xlu0 %v1017, 127
        %v1019 = vpop.permute.xlu0 %1018
        %v1021 = vadd.f32 %v1008, %v1019
        %s1022 = sld [smem:[#allocation5 + $0x12]]
        %v1023 = vstv %s1022
        %v1024 = vmul.f32 %v1023, %v809
        %v1025 = vadd.f32 %v1021, %v1024
        %s1026 = sld [smem:[#allocation5 + $0x13]]
        %v1027 = vstv %s1026
        %v1028 = vmul.f32 %v1027, %v832
        %v1029 = vadd.f32 %v1025, %v1028
        %s1030 = sld [smem:[#allocation5 + $0x14]]
        %v1031 = vstv %s1030
        %v1032 = vmul.f32 %v1031, %v809
        %1034 = vrot.lane.b32.xlu0 %v1032, 127
        %v1035 = vpop.permute.xlu0 %1034
        %v1037 = vadd.f32 %v1029, %v1035
        %s1038 = sld [smem:[#allocation5 + $0x15]]
        %v1039 = vstv %s1038
        %v1040 = vmul.f32 %v1039, %v861
        %v1041 = vadd.f32 %v1037, %v1040
        %s1042 = sld [smem:[#allocation5 + $0x16]]
        %v1043 = vstv %s1042
        %v1044 = vmul.f32 %v1043, %v883
        %v1045 = vadd.f32 %v1041, %v1044
        %s1046 = sld [smem:[#allocation5 + $0x17]]
        %v1047 = vstv %s1046
        %v1048 = vmul.f32 %v1047, %v861
        %1050 = vrot.lane.b32.xlu0 %v1048, 127
        %v1051 = vpop.permute.xlu0 %1050
        %v1053 = vadd.f32 %v1045, %v1051
        %s1054 = sld [smem:[#allocation5 + $0x18]]
        %v1055 = vstv %s1054
        %v1056 = vmul.f32 %v1055, %v809
        %v1057 = vmul.f32 %v1055, %v812
        %v1060 = vrot.slane %v1056, 1
        %v1061 = vrot.slane %v1057, 1
        %v1062 = vsel %vm925, %v1060, %v1061
        %v1064 = vadd.f32 %v1053, %v1062
        %s1065 = sld [smem:[#allocation5 + $0x19]]
        %v1066 = vstv %s1065
        %v1067 = vmul.f32 %v1066, %v832
        %v1068 = vmul.f32 %v1066, %v835
        %v1071 = vrot.slane %v1067, 1
        %v1072 = vrot.slane %v1068, 1
        %v1073 = vsel %vm925, %v1071, %v1072
        %v1075 = vadd.f32 %v1064, %v1073
        %s1076 = sld [smem:[#allocation5 + $0x1a]]
        %v1077 = vstv %s1076
        %v1078 = vmul.f32 %v1077, %v809
        %v1079 = vmul.f32 %v1077, %v812
        %v1082 = vrot.slane %v1078, 1
        %v1083 = vrot.slane %v1079, 1
        %v1084 = vsel %vm925, %v1082, %v1083
        %1085 = vrot.lane.b32.xlu0 %v1084, 127
        %v1086 = vpop.permute.xlu0 %1085
        %v1088 = vadd.f32 %v1075, %v1086
        %vm1089 = vcmask 64512
        %v1090 = vsel %vm1089, %v1088, 0.0
        %1091 = vadd.xlane.f32.xlu0 %v1090
        %v1092 = vpop.xlane.xlu0 %1091
        %v1093 = vrot.slane %v1092, 4
        %v1094 = vadd.f32 %v1092, %v1093
        %v1095 = vrot.slane %v1094, 2
        %v1096 = vadd.f32 %v1094, %v1095
        %v1097 = vrot.slane %v1096, 1
        %v1098 = vadd.f32 %v1096, %v1097
        %s1099 = vtos %v1098
        %v1100 = vrcp.pop 64.0
        %v1101 = vmul.f32 64.0, %v1100
        %v1102 = vsub.f32 1.0, %v1101
        %v1103 = vmul.f32 %v1100, %v1102
        %v1104 = vadd.f32 %v1100, %v1103
        %vm1105 = vweird.f32 %v1100
        %v1106 = vsel %vm1105, %v1100, %v1104
        %s1107 = vtos %v1106
        %s1108 = smul.f32 %s1099, %s1107
        %v1109 = vstv %s1108
        %v1110 = vsub.f32 %v1088, %v1109
        %v1111 = vmul.f32 %v1110, %v1110
        %v1112 = vsel %vm1089, %v1111, 0.0
        %1113 = vadd.xlane.f32.xlu0 %v1112
        %v1114 = vpop.xlane.xlu0 %1113
        %v1115 = vrot.slane %v1114, 4
        %v1116 = vadd.f32 %v1114, %v1115
        %v1117 = vrot.slane %v1116, 2
        %v1118 = vadd.f32 %v1116, %v1117
        %v1119 = vrot.slane %v1118, 1
        %v1120 = vadd.f32 %v1118, %v1119
        %s1121 = vtos %v1120
        %v1122 = vrcp.pop 64.0
        %v1123 = vmul.f32 64.0, %v1122
        %v1124 = vsub.f32 1.0, %v1123
        %v1125 = vmul.f32 %v1122, %v1124
        %v1126 = vadd.f32 %v1122, %v1125
        %vm1127 = vweird.f32 %v1122
        %v1128 = vsel %vm1127, %v1122, %v1126
        %s1129 = vtos %v1128
        %s1130 = smul.f32 %s1121, %s1129
        %s1131 = sadd.f32 %s1130, 1e-05
        %v1132 = vstv %s1131
        %v1133 = vrsqrt.pop %v1132
        %v1134 = vmul.f32 %v1133, %v1132
        %v1135 = vmul.f32 %v1134, %v1133
        %v1136 = vmul.f32 0.5, %v1135
        %v1137 = vsub.f32 1.5, %v1136
        %v1138 = vmul.f32 %v1133, %v1137
        %vm1139 = vweird.f32 %v1132
        %vm1140 = vweird.f32 %v1133
        %vm1141 = vmor %vm1139, %vm1140
        %v1142 = vsel %vm1141, %v1133, %v1138
        %s1143 = vtos %v1142
        %v1144 = vstv %s1143
        %v1145 = vmul.f32 %v1110, %v1144
        %s1146 = sld [smem:[#allocation11]]
        %v1147 = vstv %s1146
        %v1148 = vmul.f32 %v1145, %v1147
        %s1149 = sld [smem:[#allocation13]]
        %v1150 = vstv %s1149
        %v1151 = vadd.f32 %v1148, %v1150
        %v1152 = vmax.f32 %v1151, 0.0
        %1154 = vrot.lane.b32.xlu0 %v1152, 1
        %v1155 = vpop.permute.xlu0 %1154
        %vm1157 = vcmask 72712
        %1158 = vst.msk [vmem:[#allocation3 + $0x1] sm:$0xff] %vm1157, %v1155
        %s1159 = sld [smem:[#allocation5 + $0x1b]]
        %v1160 = vstv %s1159
        %v1161 = vmul.f32 %v1160, %v507
        %v1162 = vadd.f32 %v1161, 0.0
        %s1163 = sld [smem:[#allocation5 + $0x1c]]
        %v1164 = vstv %s1163
        %v1165 = vmul.f32 %v1164, %v530
        %v1166 = vadd.f32 %v1162, %v1165
        %s1167 = sld [smem:[#allocation5 + $0x1d]]
        %v1168 = vstv %s1167
        %v1169 = vmul.f32 %v1168, %v507
        %1171 = vrot.lane.b32.xlu0 %v1169, 127
        %v1172 = vpop.permute.xlu0 %1171
        %v1174 = vadd.f32 %v1166, %v1172
        %s1175 = sld [smem:[#allocation5 + $0x1e]]
        %v1176 = vstv %s1175
        %v1177 = vmul.f32 %v1176, %v559
        %v1178 = vadd.f32 %v1174, %v1177
        %s1179 = sld [smem:[#allocation5 + $0x1f]]
        %v1180 = vstv %s1179
        %v1181 = vmul.f32 %v1180, %v581
        %v1182 = vadd.f32 %v1178, %v1181
        %s1183 = sld [smem:[#allocation5 + $0x20]]
        %v1184 = vstv %s1183
        %v1185 = vmul.f32 %v1184, %v559
        %1187 = vrot.lane.b32.xlu0 %v1185, 127
        %v1188 = vpop.permute.xlu0 %1187
        %v1190 = vadd.f32 %v1182, %v1188
        %s1191 = sld [smem:[#allocation5 + $0x21]]
        %v1192 = vstv %s1191
        %v1193 = vmul.f32 %v1192, %v507
        %v1194 = vmul.f32 %v1192, %v510
        %v1197 = vrot.slane %v1193, 1
        %v1198 = vrot.slane %v1194, 1
        %v1199 = vsel %vm925, %v1197, %v1198
        %v1201 = vadd.f32 %v1190, %v1199
        %s1202 = sld [smem:[#allocation5 + $0x22]]
        %v1203 = vstv %s1202
        %v1204 = vmul.f32 %v1203, %v530
        %v1205 = vmul.f32 %v1203, %v533
        %v1208 = vrot.slane %v1204, 1
        %v1209 = vrot.slane %v1205, 1
        %v1210 = vsel %vm925, %v1208, %v1209
        %v1212 = vadd.f32 %v1201, %v1210
        %s1213 = sld [smem:[#allocation5 + $0x23]]
        %v1214 = vstv %s1213
        %v1215 = vmul.f32 %v1214, %v507
        %v1216 = vmul.f32 %v1214, %v510
        %v1219 = vrot.slane %v1215, 1
        %v1220 = vrot.slane %v1216, 1
        %v1221 = vsel %vm925, %v1219, %v1220
        %1222 = vrot.lane.b32.xlu0 %v1221, 127
        %v1223 = vpop.permute.xlu0 %1222
        %v1225 = vadd.f32 %v1212, %v1223
        %s1226 = sld [smem:[#allocation5 + $0x24]]
        %v1227 = vstv %s1226
        %v1228 = vmul.f32 %v1227, %v658
        %v1229 = vadd.f32 %v1225, %v1228
        %s1230 = sld [smem:[#allocation5 + $0x25]]
        %v1231 = vstv %s1230
        %v1232 = vmul.f32 %v1231, %v681
        %v1233 = vadd.f32 %v1229, %v1232
        %s1234 = sld [smem:[#allocation5 + $0x26]]
        %v1235 = vstv %s1234
        %v1236 = vmul.f32 %v1235, %v658
        %1238 = vrot.lane.b32.xlu0 %v1236, 127
        %v1239 = vpop.permute.xlu0 %1238
        %v1241 = vadd.f32 %v1233, %v1239
        %s1242 = sld [smem:[#allocation5 + $0x27]]
        %v1243 = vstv %s1242
        %v1244 = vmul.f32 %v1243, %v710
        %v1245 = vadd.f32 %v1241, %v1244
        %s1246 = sld [smem:[#allocation5 + $0x28]]
        %v1247 = vstv %s1246
        %v1248 = vmul.f32 %v1247, %v732
        %v1249 = vadd.f32 %v1245, %v1248
        %s1250 = sld [smem:[#allocation5 + $0x29]]
        %v1251 = vstv %s1250
        %v1252 = vmul.f32 %v1251, %v710
        %1254 = vrot.lane.b32.xlu0 %v1252, 127
        %v1255 = vpop.permute.xlu0 %1254
        %v1257 = vadd.f32 %v1249, %v1255
        %s1258 = sld [smem:[#allocation5 + $0x2a]]
        %v1259 = vstv %s1258
        %v1260 = vmul.f32 %v1259, %v658
        %v1261 = vmul.f32 %v1259, %v661
        %v1264 = vrot.slane %v1260, 1
        %v1265 = vrot.slane %v1261, 1
        %v1266 = vsel %vm925, %v1264, %v1265
        %v1268 = vadd.f32 %v1257, %v1266
        %s1269 = sld [smem:[#allocation5 + $0x2b]]
        %v1270 = vstv %s1269
        %v1271 = vmul.f32 %v1270, %v681
        %v1272 = vmul.f32 %v1270, %v684
        %v1275 = vrot.slane %v1271, 1
        %v1276 = vrot.slane %v1272, 1
        %v1277 = vsel %vm925, %v1275, %v1276
        %v1279 = vadd.f32 %v1268, %v1277
        %s1280 = sld [smem:[#allocation5 + $0x2c]]
        %v1281 = vstv %s1280
        %v1282 = vmul.f32 %v1281, %v658
        %v1283 = vmul.f32 %v1281, %v661
        %v1286 = vrot.slane %v1282, 1
        %v1287 = vrot.slane %v1283, 1
        %v1288 = vsel %vm925, %v1286, %v1287
        %1289 = vrot.lane.b32.xlu0 %v1288, 127
        %v1290 = vpop.permute.xlu0 %1289
        %v1292 = vadd.f32 %v1279, %v1290
        %s1293 = sld [smem:[#allocation5 + $0x2d]]
        %v1294 = vstv %s1293
        %v1295 = vmul.f32 %v1294, %v809
        %v1296 = vadd.f32 %v1292, %v1295
        %s1297 = sld [smem:[#allocation5 + $0x2e]]
        %v1298 = vstv %s1297
        %v1299 = vmul.f32 %v1298, %v832
        %v1300 = vadd.f32 %v1296, %v1299
        %s1301 = sld [smem:[#allocation5 + $0x2f]]
        %v1302 = vstv %s1301
        %v1303 = vmul.f32 %v1302, %v809
        %1305 = vrot.lane.b32.xlu0 %v1303, 127
        %v1306 = vpop.permute.xlu0 %1305
        %v1308 = vadd.f32 %v1300, %v1306
        %s1309 = sld [smem:[#allocation5 + $0x30]]
        %v1310 = vstv %s1309
        %v1311 = vmul.f32 %v1310, %v861
        %v1312 = vadd.f32 %v1308, %v1311
        %s1313 = sld [smem:[#allocation5 + $0x31]]
        %v1314 = vstv %s1313
        %v1315 = vmul.f32 %v1314, %v883
        %v1316 = vadd.f32 %v1312, %v1315
        %s1317 = sld [smem:[#allocation5 + $0x32]]
        %v1318 = vstv %s1317
        %v1319 = vmul.f32 %v1318, %v861
        %1321 = vrot.lane.b32.xlu0 %v1319, 127
        %v1322 = vpop.permute.xlu0 %1321
        %v1324 = vadd.f32 %v1316, %v1322
        %s1325 = sld [smem:[#allocation5 + $0x33]]
        %v1326 = vstv %s1325
        %v1327 = vmul.f32 %v1326, %v809
        %v1328 = vmul.f32 %v1326, %v812
        %v1331 = vrot.slane %v1327, 1
        %v1332 = vrot.slane %v1328, 1
        %v1333 = vsel %vm925, %v1331, %v1332
        %v1335 = vadd.f32 %v1324, %v1333
        %s1336 = sld [smem:[#allocation5 + $0x34]]
        %v1337 = vstv %s1336
        %v1338 = vmul.f32 %v1337, %v832
        %v1339 = vmul.f32 %v1337, %v835
        %v1342 = vrot.slane %v1338, 1
        %v1343 = vrot.slane %v1339, 1
        %v1344 = vsel %vm925, %v1342, %v1343
        %v1346 = vadd.f32 %v1335, %v1344
        %s1347 = sld [smem:[#allocation5 + $0x35]]
        %v1348 = vstv %s1347
        %v1349 = vmul.f32 %v1348, %v809
        %v1350 = vmul.f32 %v1348, %v812
        %v1353 = vrot.slane %v1349, 1
        %v1354 = vrot.slane %v1350, 1
        %v1355 = vsel %vm925, %v1353, %v1354
        %1356 = vrot.lane.b32.xlu0 %v1355, 127
        %v1357 = vpop.permute.xlu0 %1356
        %v1359 = vadd.f32 %v1346, %v1357
        %v1360 = vsel %vm1089, %v1359, 0.0
        %1361 = vadd.xlane.f32.xlu0 %v1360
        %v1362 = vpop.xlane.xlu0 %1361
        %v1363 = vrot.slane %v1362, 4
        %v1364 = vadd.f32 %v1362, %v1363
        %v1365 = vrot.slane %v1364, 2
        %v1366 = vadd.f32 %v1364, %v1365
        %v1367 = vrot.slane %v1366, 1
        %v1368 = vadd.f32 %v1366, %v1367
        %s1369 = vtos %v1368
        %v1370 = vrcp.pop 64.0
        %v1371 = vmul.f32 64.0, %v1370
        %v1372 = vsub.f32 1.0, %v1371
        %v1373 = vmul.f32 %v1370, %v1372
        %v1374 = vadd.f32 %v1370, %v1373
        %vm1375 = vweird.f32 %v1370
        %v1376 = vsel %vm1375, %v1370, %v1374
        %s1377 = vtos %v1376
        %s1378 = smul.f32 %s1369, %s1377
        %v1379 = vstv %s1378
        %v1380 = vsub.f32 %v1359, %v1379
        %v1381 = vmul.f32 %v1380, %v1380
        %v1382 = vsel %vm1089, %v1381, 0.0
        %1383 = vadd.xlane.f32.xlu0 %v1382
        %v1384 = vpop.xlane.xlu0 %1383
        %v1385 = vrot.slane %v1384, 4
        %v1386 = vadd.f32 %v1384, %v1385
        %v1387 = vrot.slane %v1386, 2
        %v1388 = vadd.f32 %v1386, %v1387
        %v1389 = vrot.slane %v1388, 1
        %v1390 = vadd.f32 %v1388, %v1389
        %s1391 = vtos %v1390
        %v1392 = vrcp.pop 64.0
        %v1393 = vmul.f32 64.0, %v1392
        %v1394 = vsub.f32 1.0, %v1393
        %v1395 = vmul.f32 %v1392, %v1394
        %v1396 = vadd.f32 %v1392, %v1395
        %vm1397 = vweird.f32 %v1392
        %v1398 = vsel %vm1397, %v1392, %v1396
        %s1399 = vtos %v1398
        %s1400 = smul.f32 %s1391, %s1399
        %s1401 = sadd.f32 %s1400, 1e-05
        %v1402 = vstv %s1401
        %v1403 = vrsqrt.pop %v1402
        %v1404 = vmul.f32 %v1403, %v1402
        %v1405 = vmul.f32 %v1404, %v1403
        %v1406 = vmul.f32 0.5, %v1405
        %v1407 = vsub.f32 1.5, %v1406
        %v1408 = vmul.f32 %v1403, %v1407
        %vm1409 = vweird.f32 %v1402
        %vm1410 = vweird.f32 %v1403
        %vm1411 = vmor %vm1409, %vm1410
        %v1412 = vsel %vm1411, %v1403, %v1408
        %s1413 = vtos %v1412
        %v1414 = vstv %s1413
        %v1415 = vmul.f32 %v1380, %v1414
        %s1416 = sld [smem:[#allocation11 + $0x1]]
        %v1417 = vstv %s1416
        %v1418 = vmul.f32 %v1415, %v1417
        %s1419 = sld [smem:[#allocation13 + $0x1]]
        %v1420 = vstv %s1419
        %v1421 = vadd.f32 %v1418, %v1420
        %v1422 = vmax.f32 %v1421, 0.0
        %1424 = vrot.lane.b32.xlu0 %v1422, 1
        %v1425 = vpop.permute.xlu0 %1424
        %s1427 = scalar_lea.vmem [#allocation3], 16
        %1428 = vst.msk [vmem:[%s1427 + $0x1] sm:$0xff] %vm1157, %v1425
        %s1429 = sld [smem:[#allocation5 + $0x36]]
        %v1430 = vstv %s1429
        %v1431 = vmul.f32 %v1430, %v507
        %v1432 = vadd.f32 %v1431, 0.0
        %s1433 = sld [smem:[#allocation5 + $0x37]]
        %v1434 = vstv %s1433
        %v1435 = vmul.f32 %v1434, %v530
        %v1436 = vadd.f32 %v1432, %v1435
        %s1437 = sld [smem:[#allocation5 + $0x38]]
        %v1438 = vstv %s1437
        %v1439 = vmul.f32 %v1438, %v507
        %1441 = vrot.lane.b32.xlu0 %v1439, 127
        %v1442 = vpop.permute.xlu0 %1441
        %v1444 = vadd.f32 %v1436, %v1442
        %s1445 = sld [smem:[#allocation5 + $0x39]]
        %v1446 = vstv %s1445
        %v1447 = vmul.f32 %v1446, %v559
        %v1448 = vadd.f32 %v1444, %v1447
        %s1449 = sld [smem:[#allocation5 + $0x3a]]
        %v1450 = vstv %s1449
        %v1451 = vmul.f32 %v1450, %v581
        %v1452 = vadd.f32 %v1448, %v1451
        %s1453 = sld [smem:[#allocation5 + $0x3b]]
        %v1454 = vstv %s1453
        %v1455 = vmul.f32 %v1454, %v559
        %1457 = vrot.lane.b32.xlu0 %v1455, 127
        %v1458 = vpop.permute.xlu0 %1457
        %v1460 = vadd.f32 %v1452, %v1458
        %s1461 = sld [smem:[#allocation5 + $0x3c]]
        %v1462 = vstv %s1461
        %v1463 = vmul.f32 %v1462, %v507
        %v1464 = vmul.f32 %v1462, %v510
        %v1467 = vrot.slane %v1463, 1
        %v1468 = vrot.slane %v1464, 1
        %v1469 = vsel %vm925, %v1467, %v1468
        %v1471 = vadd.f32 %v1460, %v1469
        %s1472 = sld [smem:[#allocation5 + $0x3d]]
        %v1473 = vstv %s1472
        %v1474 = vmul.f32 %v1473, %v530
        %v1475 = vmul.f32 %v1473, %v533
        %v1478 = vrot.slane %v1474, 1
        %v1479 = vrot.slane %v1475, 1
        %v1480 = vsel %vm925, %v1478, %v1479
        %v1482 = vadd.f32 %v1471, %v1480
        %s1483 = sld [smem:[#allocation5 + $0x3e]]
        %v1484 = vstv %s1483
        %v1485 = vmul.f32 %v1484, %v507
        %v1486 = vmul.f32 %v1484, %v510
        %v1489 = vrot.slane %v1485, 1
        %v1490 = vrot.slane %v1486, 1
        %v1491 = vsel %vm925, %v1489, %v1490
        %1492 = vrot.lane.b32.xlu0 %v1491, 127
        %v1493 = vpop.permute.xlu0 %1492
        %v1495 = vadd.f32 %v1482, %v1493
        %s1496 = sld [smem:[#allocation5 + $0x3f]]
        %v1497 = vstv %s1496
        %v1498 = vmul.f32 %v1497, %v658
        %v1499 = vadd.f32 %v1495, %v1498
        %s1500 = sld [smem:[#allocation5 + $0x40]]
        %v1501 = vstv %s1500
        %v1502 = vmul.f32 %v1501, %v681
        %v1503 = vadd.f32 %v1499, %v1502
        %s1504 = sld [smem:[#allocation5 + $0x41]]
        %v1505 = vstv %s1504
        %v1506 = vmul.f32 %v1505, %v658
        %1508 = vrot.lane.b32.xlu0 %v1506, 127
        %v1509 = vpop.permute.xlu0 %1508
        %v1511 = vadd.f32 %v1503, %v1509
        %s1512 = sld [smem:[#allocation5 + $0x42]]
        %v1513 = vstv %s1512
        %v1514 = vmul.f32 %v1513, %v710
        %v1515 = vadd.f32 %v1511, %v1514
        %s1516 = sld [smem:[#allocation5 + $0x43]]
        %v1517 = vstv %s1516
        %v1518 = vmul.f32 %v1517, %v732
        %v1519 = vadd.f32 %v1515, %v1518
        %s1520 = sld [smem:[#allocation5 + $0x44]]
        %v1521 = vstv %s1520
        %v1522 = vmul.f32 %v1521, %v710
        %1524 = vrot.lane.b32.xlu0 %v1522, 127
        %v1525 = vpop.permute.xlu0 %1524
        %v1527 = vadd.f32 %v1519, %v1525
        %s1528 = sld [smem:[#allocation5 + $0x45]]
        %v1529 = vstv %s1528
        %v1530 = vmul.f32 %v1529, %v658
        %v1531 = vmul.f32 %v1529, %v661
        %v1534 = vrot.slane %v1530, 1
        %v1535 = vrot.slane %v1531, 1
        %v1536 = vsel %vm925, %v1534, %v1535
        %v1538 = vadd.f32 %v1527, %v1536
        %s1539 = sld [smem:[#allocation5 + $0x46]]
        %v1540 = vstv %s1539
        %v1541 = vmul.f32 %v1540, %v681
        %v1542 = vmul.f32 %v1540, %v684
        %v1545 = vrot.slane %v1541, 1
        %v1546 = vrot.slane %v1542, 1
        %v1547 = vsel %vm925, %v1545, %v1546
        %v1549 = vadd.f32 %v1538, %v1547
        %s1550 = sld [smem:[#allocation5 + $0x47]]
        %v1551 = vstv %s1550
        %v1552 = vmul.f32 %v1551, %v658
        %v1553 = vmul.f32 %v1551, %v661
        %v1556 = vrot.slane %v1552, 1
        %v1557 = vrot.slane %v1553, 1
        %v1558 = vsel %vm925, %v1556, %v1557
        %1559 = vrot.lane.b32.xlu0 %v1558, 127
        %v1560 = vpop.permute.xlu0 %1559
        %v1562 = vadd.f32 %v1549, %v1560
        %s1563 = sld [smem:[#allocation5 + $0x48]]
        %v1564 = vstv %s1563
        %v1565 = vmul.f32 %v1564, %v809
        %v1566 = vadd.f32 %v1562, %v1565
        %s1567 = sld [smem:[#allocation5 + $0x49]]
        %v1568 = vstv %s1567
        %v1569 = vmul.f32 %v1568, %v832
        %v1570 = vadd.f32 %v1566, %v1569
        %s1571 = sld [smem:[#allocation5 + $0x4a]]
        %v1572 = vstv %s1571
        %v1573 = vmul.f32 %v1572, %v809
        %1575 = vrot.lane.b32.xlu0 %v1573, 127
        %v1576 = vpop.permute.xlu0 %1575
        %v1578 = vadd.f32 %v1570, %v1576
        %s1579 = sld [smem:[#allocation5 + $0x4b]]
        %v1580 = vstv %s1579
        %v1581 = vmul.f32 %v1580, %v861
        %v1582 = vadd.f32 %v1578, %v1581
        %s1583 = sld [smem:[#allocation5 + $0x4c]]
        %v1584 = vstv %s1583
        %v1585 = vmul.f32 %v1584, %v883
        %v1586 = vadd.f32 %v1582, %v1585
        %s1587 = sld [smem:[#allocation5 + $0x4d]]
        %v1588 = vstv %s1587
        %v1589 = vmul.f32 %v1588, %v861
        %1591 = vrot.lane.b32.xlu0 %v1589, 127
        %v1592 = vpop.permute.xlu0 %1591
        %v1594 = vadd.f32 %v1586, %v1592
        %s1595 = sld [smem:[#allocation5 + $0x4e]]
        %v1596 = vstv %s1595
        %v1597 = vmul.f32 %v1596, %v809
        %v1598 = vmul.f32 %v1596, %v812
        %v1601 = vrot.slane %v1597, 1
        %v1602 = vrot.slane %v1598, 1
        %v1603 = vsel %vm925, %v1601, %v1602
        %v1605 = vadd.f32 %v1594, %v1603
        %s1606 = sld [smem:[#allocation5 + $0x4f]]
        %v1607 = vstv %s1606
        %v1608 = vmul.f32 %v1607, %v832
        %v1609 = vmul.f32 %v1607, %v835
        %v1612 = vrot.slane %v1608, 1
        %v1613 = vrot.slane %v1609, 1
        %v1614 = vsel %vm925, %v1612, %v1613
        %v1616 = vadd.f32 %v1605, %v1614
        %s1617 = sld [smem:[#allocation5 + $0x50]]
        %v1618 = vstv %s1617
        %v1619 = vmul.f32 %v1618, %v809
        %v1620 = vmul.f32 %v1618, %v812
        %v1623 = vrot.slane %v1619, 1
        %v1624 = vrot.slane %v1620, 1
        %v1625 = vsel %vm925, %v1623, %v1624
        %1626 = vrot.lane.b32.xlu0 %v1625, 127
        %v1627 = vpop.permute.xlu0 %1626
        %v1629 = vadd.f32 %v1616, %v1627
        %v1630 = vsel %vm1089, %v1629, 0.0
        %1631 = vadd.xlane.f32.xlu0 %v1630
        %v1632 = vpop.xlane.xlu0 %1631
        %v1633 = vrot.slane %v1632, 4
        %v1634 = vadd.f32 %v1632, %v1633
        %v1635 = vrot.slane %v1634, 2
        %v1636 = vadd.f32 %v1634, %v1635
        %v1637 = vrot.slane %v1636, 1
        %v1638 = vadd.f32 %v1636, %v1637
        %s1639 = vtos %v1638
        %v1640 = vrcp.pop 64.0
        %v1641 = vmul.f32 64.0, %v1640
        %v1642 = vsub.f32 1.0, %v1641
        %v1643 = vmul.f32 %v1640, %v1642
        %v1644 = vadd.f32 %v1640, %v1643
        %vm1645 = vweird.f32 %v1640
        %v1646 = vsel %vm1645, %v1640, %v1644
        %s1647 = vtos %v1646
        %s1648 = smul.f32 %s1639, %s1647
        %v1649 = vstv %s1648
        %v1650 = vsub.f32 %v1629, %v1649
        %v1651 = vmul.f32 %v1650, %v1650
        %v1652 = vsel %vm1089, %v1651, 0.0
        %1653 = vadd.xlane.f32.xlu0 %v1652
        %v1654 = vpop.xlane.xlu0 %1653
        %v1655 = vrot.slane %v1654, 4
        %v1656 = vadd.f32 %v1654, %v1655
        %v1657 = vrot.slane %v1656, 2
        %v1658 = vadd.f32 %v1656, %v1657
        %v1659 = vrot.slane %v1658, 1
        %v1660 = vadd.f32 %v1658, %v1659
        %s1661 = vtos %v1660
        %v1662 = vrcp.pop 64.0
        %v1663 = vmul.f32 64.0, %v1662
        %v1664 = vsub.f32 1.0, %v1663
        %v1665 = vmul.f32 %v1662, %v1664
        %v1666 = vadd.f32 %v1662, %v1665
        %vm1667 = vweird.f32 %v1662
        %v1668 = vsel %vm1667, %v1662, %v1666
        %s1669 = vtos %v1668
        %s1670 = smul.f32 %s1661, %s1669
        %s1671 = sadd.f32 %s1670, 1e-05
        %v1672 = vstv %s1671
        %v1673 = vrsqrt.pop %v1672
        %v1674 = vmul.f32 %v1673, %v1672
        %v1675 = vmul.f32 %v1674, %v1673
        %v1676 = vmul.f32 0.5, %v1675
        %v1677 = vsub.f32 1.5, %v1676
        %v1678 = vmul.f32 %v1673, %v1677
        %vm1679 = vweird.f32 %v1672
        %vm1680 = vweird.f32 %v1673
        %vm1681 = vmor %vm1679, %vm1680
        %v1682 = vsel %vm1681, %v1673, %v1678
        %s1683 = vtos %v1682
        %v1684 = vstv %s1683
        %v1685 = vmul.f32 %v1650, %v1684
        %s1686 = sld [smem:[#allocation11 + $0x2]]
        %v1687 = vstv %s1686
        %v1688 = vmul.f32 %v1685, %v1687
        %s1689 = sld [smem:[#allocation13 + $0x2]]
        %v1690 = vstv %s1689
        %v1691 = vadd.f32 %v1688, %v1690
        %v1692 = vmax.f32 %v1691, 0.0
        %1694 = vrot.lane.b32.xlu0 %v1692, 1
        %v1695 = vpop.permute.xlu0 %1694
        %s1697 = scalar_lea.vmem [#allocation3], 32
        %1698 = vst.msk [vmem:[%s1697 + $0x1] sm:$0xff] %vm1157, %v1695
        %v1699 = vld [vmem:[#allocation3] sm:$0xff]
        %v1700 = vld [vmem:[#allocation3 + $0x1] sm:$0xff]
        %v1701 = vld [vmem:[#allocation3 + $0x2] sm:$0xff]
        %v1702 = vld [vmem:[%s1427] sm:$0xff]
        %v1703 = vld [vmem:[%s1427 + $0x1] sm:$0xff]
        %v1704 = vld [vmem:[%s1427 + $0x2] sm:$0xff]
        %v1705 = vld [vmem:[%s1697] sm:$0xff]
        %v1706 = vld [vmem:[%s1697 + $0x1] sm:$0xff]
        %v1707 = vld [vmem:[%s1697 + $0x2] sm:$0xff]
        %s1708 = sld [smem:[#allocation8]]
        %v1709 = vstv %s1708
        %v1710 = vmul.f32 %v1709, %v1699
        %v1711 = vadd.f32 %v1710, 0.0
        %s1712 = sld [smem:[#allocation8 + $0x1]]
        %v1713 = vstv %s1712
        %v1714 = vmul.f32 %v1713, %v1699
        %1716 = vrot.lane.b32.xlu0 %v1714, 127
        %v1717 = vpop.permute.xlu0 %1716
        %v1719 = vadd.f32 %v1711, %v1717
        %s1720 = sld [smem:[#allocation8 + $0x2]]
        %v1721 = vstv %s1720
        %v1722 = vmul.f32 %v1721, %v1699
        %1724 = vrot.lane.b32.xlu0 %v1722, 126
        %v1725 = vpop.permute.xlu0 %1724
        %v1727 = vadd.f32 %v1719, %v1725
        %s1728 = sld [smem:[#allocation8 + $0x3]]
        %v1729 = vstv %s1728
        %v1730 = vmul.f32 %v1729, %v1700
        %v1731 = vadd.f32 %v1727, %v1730
        %s1732 = sld [smem:[#allocation8 + $0x4]]
        %v1733 = vstv %s1732
        %v1734 = vmul.f32 %v1733, %v1700
        %1736 = vrot.lane.b32.xlu0 %v1734, 127
        %v1737 = vpop.permute.xlu0 %1736
        %v1739 = vadd.f32 %v1731, %v1737
        %s1740 = sld [smem:[#allocation8 + $0x5]]
        %v1741 = vstv %s1740
        %v1742 = vmul.f32 %v1741, %v1700
        %1744 = vrot.lane.b32.xlu0 %v1742, 126
        %v1745 = vpop.permute.xlu0 %1744
        %v1747 = vadd.f32 %v1739, %v1745
        %s1748 = sld [smem:[#allocation8 + $0x6]]
        %v1749 = vstv %s1748
        %v1750 = vmul.f32 %v1749, %v1701
        %v1751 = vadd.f32 %v1747, %v1750
        %s1752 = sld [smem:[#allocation8 + $0x7]]
        %v1753 = vstv %s1752
        %v1754 = vmul.f32 %v1753, %v1701
        %1756 = vrot.lane.b32.xlu0 %v1754, 127
        %v1757 = vpop.permute.xlu0 %1756
        %v1759 = vadd.f32 %v1751, %v1757
        %s1760 = sld [smem:[#allocation8 + $0x8]]
        %v1761 = vstv %s1760
        %v1762 = vmul.f32 %v1761, %v1701
        %1764 = vrot.lane.b32.xlu0 %v1762, 126
        %v1765 = vpop.permute.xlu0 %1764
        %v1767 = vadd.f32 %v1759, %v1765
        %s1768 = sld [smem:[#allocation8 + $0x9]]
        %v1769 = vstv %s1768
        %v1770 = vmul.f32 %v1769, %v1702
        %v1771 = vadd.f32 %v1767, %v1770
        %s1772 = sld [smem:[#allocation8 + $0xa]]
        %v1773 = vstv %s1772
        %v1774 = vmul.f32 %v1773, %v1702
        %1776 = vrot.lane.b32.xlu0 %v1774, 127
        %v1777 = vpop.permute.xlu0 %1776
        %v1779 = vadd.f32 %v1771, %v1777
        %s1780 = sld [smem:[#allocation8 + $0xb]]
        %v1781 = vstv %s1780
        %v1782 = vmul.f32 %v1781, %v1702
        %1784 = vrot.lane.b32.xlu0 %v1782, 126
        %v1785 = vpop.permute.xlu0 %1784
        %v1787 = vadd.f32 %v1779, %v1785
        %s1788 = sld [smem:[#allocation8 + $0xc]]
        %v1789 = vstv %s1788
        %v1790 = vmul.f32 %v1789, %v1703
        %v1791 = vadd.f32 %v1787, %v1790
        %s1792 = sld [smem:[#allocation8 + $0xd]]
        %v1793 = vstv %s1792
        %v1794 = vmul.f32 %v1793, %v1703
        %1796 = vrot.lane.b32.xlu0 %v1794, 127
        %v1797 = vpop.permute.xlu0 %1796
        %v1799 = vadd.f32 %v1791, %v1797
        %s1800 = sld [smem:[#allocation8 + $0xe]]
        %v1801 = vstv %s1800
        %v1802 = vmul.f32 %v1801, %v1703
        %1804 = vrot.lane.b32.xlu0 %v1802, 126
        %v1805 = vpop.permute.xlu0 %1804
        %v1807 = vadd.f32 %v1799, %v1805
        %s1808 = sld [smem:[#allocation8 + $0xf]]
        %v1809 = vstv %s1808
        %v1810 = vmul.f32 %v1809, %v1704
        %v1811 = vadd.f32 %v1807, %v1810
        %s1812 = sld [smem:[#allocation8 + $0x10]]
        %v1813 = vstv %s1812
        %v1814 = vmul.f32 %v1813, %v1704
        %1816 = vrot.lane.b32.xlu0 %v1814, 127
        %v1817 = vpop.permute.xlu0 %1816
        %v1819 = vadd.f32 %v1811, %v1817
        %s1820 = sld [smem:[#allocation8 + $0x11]]
        %v1821 = vstv %s1820
        %v1822 = vmul.f32 %v1821, %v1704
        %1824 = vrot.lane.b32.xlu0 %v1822, 126
        %v1825 = vpop.permute.xlu0 %1824
        %v1827 = vadd.f32 %v1819, %v1825
        %s1828 = sld [smem:[#allocation8 + $0x12]]
        %v1829 = vstv %s1828
        %v1830 = vmul.f32 %v1829, %v1705
        %v1831 = vadd.f32 %v1827, %v1830
        %s1832 = sld [smem:[#allocation8 + $0x13]]
        %v1833 = vstv %s1832
        %v1834 = vmul.f32 %v1833, %v1705
        %1836 = vrot.lane.b32.xlu0 %v1834, 127
        %v1837 = vpop.permute.xlu0 %1836
        %v1839 = vadd.f32 %v1831, %v1837
        %s1840 = sld [smem:[#allocation8 + $0x14]]
        %v1841 = vstv %s1840
        %v1842 = vmul.f32 %v1841, %v1705
        %1844 = vrot.lane.b32.xlu0 %v1842, 126
        %v1845 = vpop.permute.xlu0 %1844
        %v1847 = vadd.f32 %v1839, %v1845
        %s1848 = sld [smem:[#allocation8 + $0x15]]
        %v1849 = vstv %s1848
        %v1850 = vmul.f32 %v1849, %v1706
        %v1851 = vadd.f32 %v1847, %v1850
        %s1852 = sld [smem:[#allocation8 + $0x16]]
        %v1853 = vstv %s1852
        %v1854 = vmul.f32 %v1853, %v1706
        %1856 = vrot.lane.b32.xlu0 %v1854, 127
        %v1857 = vpop.permute.xlu0 %1856
        %v1859 = vadd.f32 %v1851, %v1857
        %s1860 = sld [smem:[#allocation8 + $0x17]]
        %v1861 = vstv %s1860
        %v1862 = vmul.f32 %v1861, %v1706
        %1864 = vrot.lane.b32.xlu0 %v1862, 126
        %v1865 = vpop.permute.xlu0 %1864
        %v1867 = vadd.f32 %v1859, %v1865
        %s1868 = sld [smem:[#allocation8 + $0x18]]
        %v1869 = vstv %s1868
        %v1870 = vmul.f32 %v1869, %v1707
        %v1871 = vadd.f32 %v1867, %v1870
        %s1872 = sld [smem:[#allocation8 + $0x19]]
        %v1873 = vstv %s1872
        %v1874 = vmul.f32 %v1873, %v1707
        %1876 = vrot.lane.b32.xlu0 %v1874, 127
        %v1877 = vpop.permute.xlu0 %1876
        %v1879 = vadd.f32 %v1871, %v1877
        %s1880 = sld [smem:[#allocation8 + $0x1a]]
        %v1881 = vstv %s1880
        %v1882 = vmul.f32 %v1881, %v1707
        %1884 = vrot.lane.b32.xlu0 %v1882, 126
        %v1885 = vpop.permute.xlu0 %1884
        %v1887 = vadd.f32 %v1879, %v1885
        %1889 = vrot.lane.b32.xlu0 %v1887, 1
        %v1890 = vpop.permute.xlu0 %1889
        %1892 = vst.msk [vmem:[#allocation4 + $0x1] sm:$0xff] %vm1157, %v1890
        %s1893 = sld [smem:[#allocation8 + $0x1b]]
        %v1894 = vstv %s1893
        %v1895 = vmul.f32 %v1894, %v1699
        %v1896 = vadd.f32 %v1895, 0.0
        %s1897 = sld [smem:[#allocation8 + $0x1c]]
        %v1898 = vstv %s1897
        %v1899 = vmul.f32 %v1898, %v1699
        %1901 = vrot.lane.b32.xlu0 %v1899, 127
        %v1902 = vpop.permute.xlu0 %1901
        %v1904 = vadd.f32 %v1896, %v1902
        %s1905 = sld [smem:[#allocation8 + $0x1d]]
        %v1906 = vstv %s1905
        %v1907 = vmul.f32 %v1906, %v1699
        %1909 = vrot.lane.b32.xlu0 %v1907, 126
        %v1910 = vpop.permute.xlu0 %1909
        %v1912 = vadd.f32 %v1904, %v1910
        %s1913 = sld [smem:[#allocation8 + $0x1e]]
        %v1914 = vstv %s1913
        %v1915 = vmul.f32 %v1914, %v1700
        %v1916 = vadd.f32 %v1912, %v1915
        %s1917 = sld [smem:[#allocation8 + $0x1f]]
        %v1918 = vstv %s1917
        %v1919 = vmul.f32 %v1918, %v1700
        %1921 = vrot.lane.b32.xlu0 %v1919, 127
        %v1922 = vpop.permute.xlu0 %1921
        %v1924 = vadd.f32 %v1916, %v1922
        %s1925 = sld [smem:[#allocation8 + $0x20]]
        %v1926 = vstv %s1925
        %v1927 = vmul.f32 %v1926, %v1700
        %1929 = vrot.lane.b32.xlu0 %v1927, 126
        %v1930 = vpop.permute.xlu0 %1929
        %v1932 = vadd.f32 %v1924, %v1930
        %s1933 = sld [smem:[#allocation8 + $0x21]]
        %v1934 = vstv %s1933
        %v1935 = vmul.f32 %v1934, %v1701
        %v1936 = vadd.f32 %v1932, %v1935
        %s1937 = sld [smem:[#allocation8 + $0x22]]
        %v1938 = vstv %s1937
        %v1939 = vmul.f32 %v1938, %v1701
        %1941 = vrot.lane.b32.xlu0 %v1939, 127
        %v1942 = vpop.permute.xlu0 %1941
        %v1944 = vadd.f32 %v1936, %v1942
        %s1945 = sld [smem:[#allocation8 + $0x23]]
        %v1946 = vstv %s1945
        %v1947 = vmul.f32 %v1946, %v1701
        %1949 = vrot.lane.b32.xlu0 %v1947, 126
        %v1950 = vpop.permute.xlu0 %1949
        %v1952 = vadd.f32 %v1944, %v1950
        %s1953 = sld [smem:[#allocation8 + $0x24]]
        %v1954 = vstv %s1953
        %v1955 = vmul.f32 %v1954, %v1702
        %v1956 = vadd.f32 %v1952, %v1955
        %s1957 = sld [smem:[#allocation8 + $0x25]]
        %v1958 = vstv %s1957
        %v1959 = vmul.f32 %v1958, %v1702
        %1961 = vrot.lane.b32.xlu0 %v1959, 127
        %v1962 = vpop.permute.xlu0 %1961
        %v1964 = vadd.f32 %v1956, %v1962
        %s1965 = sld [smem:[#allocation8 + $0x26]]
        %v1966 = vstv %s1965
        %v1967 = vmul.f32 %v1966, %v1702
        %1969 = vrot.lane.b32.xlu0 %v1967, 126
        %v1970 = vpop.permute.xlu0 %1969
        %v1972 = vadd.f32 %v1964, %v1970
        %s1973 = sld [smem:[#allocation8 + $0x27]]
        %v1974 = vstv %s1973
        %v1975 = vmul.f32 %v1974, %v1703
        %v1976 = vadd.f32 %v1972, %v1975
        %s1977 = sld [smem:[#allocation8 + $0x28]]
        %v1978 = vstv %s1977
        %v1979 = vmul.f32 %v1978, %v1703
        %1981 = vrot.lane.b32.xlu0 %v1979, 127
        %v1982 = vpop.permute.xlu0 %1981
        %v1984 = vadd.f32 %v1976, %v1982
        %s1985 = sld [smem:[#allocation8 + $0x29]]
        %v1986 = vstv %s1985
        %v1987 = vmul.f32 %v1986, %v1703
        %1989 = vrot.lane.b32.xlu0 %v1987, 126
        %v1990 = vpop.permute.xlu0 %1989
        %v1992 = vadd.f32 %v1984, %v1990
        %s1993 = sld [smem:[#allocation8 + $0x2a]]
        %v1994 = vstv %s1993
        %v1995 = vmul.f32 %v1994, %v1704
        %v1996 = vadd.f32 %v1992, %v1995
        %s1997 = sld [smem:[#allocation8 + $0x2b]]
        %v1998 = vstv %s1997
        %v1999 = vmul.f32 %v1998, %v1704
        %2001 = vrot.lane.b32.xlu0 %v1999, 127
        %v2002 = vpop.permute.xlu0 %2001
        %v2004 = vadd.f32 %v1996, %v2002
        %s2005 = sld [smem:[#allocation8 + $0x2c]]
        %v2006 = vstv %s2005
        %v2007 = vmul.f32 %v2006, %v1704
        %2009 = vrot.lane.b32.xlu0 %v2007, 126
        %v2010 = vpop.permute.xlu0 %2009
        %v2012 = vadd.f32 %v2004, %v2010
        %s2013 = sld [smem:[#allocation8 + $0x2d]]
        %v2014 = vstv %s2013
        %v2015 = vmul.f32 %v2014, %v1705
        %v2016 = vadd.f32 %v2012, %v2015
        %s2017 = sld [smem:[#allocation8 + $0x2e]]
        %v2018 = vstv %s2017
        %v2019 = vmul.f32 %v2018, %v1705
        %2021 = vrot.lane.b32.xlu0 %v2019, 127
        %v2022 = vpop.permute.xlu0 %2021
        %v2024 = vadd.f32 %v2016, %v2022
        %s2025 = sld [smem:[#allocation8 + $0x2f]]
        %v2026 = vstv %s2025
        %v2027 = vmul.f32 %v2026, %v1705
        %2029 = vrot.lane.b32.xlu0 %v2027, 126
        %v2030 = vpop.permute.xlu0 %2029
        %v2032 = vadd.f32 %v2024, %v2030
        %s2033 = sld [smem:[#allocation8 + $0x30]]
        %v2034 = vstv %s2033
        %v2035 = vmul.f32 %v2034, %v1706
        %v2036 = vadd.f32 %v2032, %v2035
        %s2037 = sld [smem:[#allocation8 + $0x31]]
        %v2038 = vstv %s2037
        %v2039 = vmul.f32 %v2038, %v1706
        %2041 = vrot.lane.b32.xlu0 %v2039, 127
        %v2042 = vpop.permute.xlu0 %2041
        %v2044 = vadd.f32 %v2036, %v2042
        %s2045 = sld [smem:[#allocation8 + $0x32]]
        %v2046 = vstv %s2045
        %v2047 = vmul.f32 %v2046, %v1706
        %2049 = vrot.lane.b32.xlu0 %v2047, 126
        %v2050 = vpop.permute.xlu0 %2049
        %v2052 = vadd.f32 %v2044, %v2050
        %s2053 = sld [smem:[#allocation8 + $0x33]]
        %v2054 = vstv %s2053
        %v2055 = vmul.f32 %v2054, %v1707
        %v2056 = vadd.f32 %v2052, %v2055
        %s2057 = sld [smem:[#allocation8 + $0x34]]
        %v2058 = vstv %s2057
        %v2059 = vmul.f32 %v2058, %v1707
        %2061 = vrot.lane.b32.xlu0 %v2059, 127
        %v2062 = vpop.permute.xlu0 %2061
        %v2064 = vadd.f32 %v2056, %v2062
        %s2065 = sld [smem:[#allocation8 + $0x35]]
        %v2066 = vstv %s2065
        %v2067 = vmul.f32 %v2066, %v1707
        %2069 = vrot.lane.b32.xlu0 %v2067, 126
        %v2070 = vpop.permute.xlu0 %2069
        %v2072 = vadd.f32 %v2064, %v2070
        %2074 = vrot.lane.b32.xlu0 %v2072, 1
        %v2075 = vpop.permute.xlu0 %2074
        %s2077 = scalar_lea.vmem [#allocation4], 16
        %2078 = vst.msk [vmem:[%s2077 + $0x1] sm:$0xff] %vm1157, %v2075
        %s2079 = sld [smem:[#allocation8 + $0x36]]
        %v2080 = vstv %s2079
        %v2081 = vmul.f32 %v2080, %v1699
        %v2082 = vadd.f32 %v2081, 0.0
        %s2083 = sld [smem:[#allocation8 + $0x37]]
        %v2084 = vstv %s2083
        %v2085 = vmul.f32 %v2084, %v1699
        %2087 = vrot.lane.b32.xlu0 %v2085, 127
        %v2088 = vpop.permute.xlu0 %2087
        %v2090 = vadd.f32 %v2082, %v2088
        %s2091 = sld [smem:[#allocation8 + $0x38]]
        %v2092 = vstv %s2091
        %v2093 = vmul.f32 %v2092, %v1699
        %2095 = vrot.lane.b32.xlu0 %v2093, 126
        %v2096 = vpop.permute.xlu0 %2095
        %v2098 = vadd.f32 %v2090, %v2096
        %s2099 = sld [smem:[#allocation8 + $0x39]]
        %v2100 = vstv %s2099
        %v2101 = vmul.f32 %v2100, %v1700
        %v2102 = vadd.f32 %v2098, %v2101
        %s2103 = sld [smem:[#allocation8 + $0x3a]]
        %v2104 = vstv %s2103
        %v2105 = vmul.f32 %v2104, %v1700
        %2107 = vrot.lane.b32.xlu0 %v2105, 127
        %v2108 = vpop.permute.xlu0 %2107
        %v2110 = vadd.f32 %v2102, %v2108
        %s2111 = sld [smem:[#allocation8 + $0x3b]]
        %v2112 = vstv %s2111
        %v2113 = vmul.f32 %v2112, %v1700
        %2115 = vrot.lane.b32.xlu0 %v2113, 126
        %v2116 = vpop.permute.xlu0 %2115
        %v2118 = vadd.f32 %v2110, %v2116
        %s2119 = sld [smem:[#allocation8 + $0x3c]]
        %v2120 = vstv %s2119
        %v2121 = vmul.f32 %v2120, %v1701
        %v2122 = vadd.f32 %v2118, %v2121
        %s2123 = sld [smem:[#allocation8 + $0x3d]]
        %v2124 = vstv %s2123
        %v2125 = vmul.f32 %v2124, %v1701
        %2127 = vrot.lane.b32.xlu0 %v2125, 127
        %v2128 = vpop.permute.xlu0 %2127
        %v2130 = vadd.f32 %v2122, %v2128
        %s2131 = sld [smem:[#allocation8 + $0x3e]]
        %v2132 = vstv %s2131
        %v2133 = vmul.f32 %v2132, %v1701
        %2135 = vrot.lane.b32.xlu0 %v2133, 126
        %v2136 = vpop.permute.xlu0 %2135
        %v2138 = vadd.f32 %v2130, %v2136
        %s2139 = sld [smem:[#allocation8 + $0x3f]]
        %v2140 = vstv %s2139
        %v2141 = vmul.f32 %v2140, %v1702
        %v2142 = vadd.f32 %v2138, %v2141
        %s2143 = sld [smem:[#allocation8 + $0x40]]
        %v2144 = vstv %s2143
        %v2145 = vmul.f32 %v2144, %v1702
        %2147 = vrot.lane.b32.xlu0 %v2145, 127
        %v2148 = vpop.permute.xlu0 %2147
        %v2150 = vadd.f32 %v2142, %v2148
        %s2151 = sld [smem:[#allocation8 + $0x41]]
        %v2152 = vstv %s2151
        %v2153 = vmul.f32 %v2152, %v1702
        %2155 = vrot.lane.b32.xlu0 %v2153, 126
        %v2156 = vpop.permute.xlu0 %2155
        %v2158 = vadd.f32 %v2150, %v2156
        %s2159 = sld [smem:[#allocation8 + $0x42]]
        %v2160 = vstv %s2159
        %v2161 = vmul.f32 %v2160, %v1703
        %v2162 = vadd.f32 %v2158, %v2161
        %s2163 = sld [smem:[#allocation8 + $0x43]]
        %v2164 = vstv %s2163
        %v2165 = vmul.f32 %v2164, %v1703
        %2167 = vrot.lane.b32.xlu0 %v2165, 127
        %v2168 = vpop.permute.xlu0 %2167
        %v2170 = vadd.f32 %v2162, %v2168
        %s2171 = sld [smem:[#allocation8 + $0x44]]
        %v2172 = vstv %s2171
        %v2173 = vmul.f32 %v2172, %v1703
        %2175 = vrot.lane.b32.xlu0 %v2173, 126
        %v2176 = vpop.permute.xlu0 %2175
        %v2178 = vadd.f32 %v2170, %v2176
        %s2179 = sld [smem:[#allocation8 + $0x45]]
        %v2180 = vstv %s2179
        %v2181 = vmul.f32 %v2180, %v1704
        %v2182 = vadd.f32 %v2178, %v2181
        %s2183 = sld [smem:[#allocation8 + $0x46]]
        %v2184 = vstv %s2183
        %v2185 = vmul.f32 %v2184, %v1704
        %2187 = vrot.lane.b32.xlu0 %v2185, 127
        %v2188 = vpop.permute.xlu0 %2187
        %v2190 = vadd.f32 %v2182, %v2188
        %s2191 = sld [smem:[#allocation8 + $0x47]]
        %v2192 = vstv %s2191
        %v2193 = vmul.f32 %v2192, %v1704
        %2195 = vrot.lane.b32.xlu0 %v2193, 126
        %v2196 = vpop.permute.xlu0 %2195
        %v2198 = vadd.f32 %v2190, %v2196
        %s2199 = sld [smem:[#allocation8 + $0x48]]
        %v2200 = vstv %s2199
        %v2201 = vmul.f32 %v2200, %v1705
        %v2202 = vadd.f32 %v2198, %v2201
        %s2203 = sld [smem:[#allocation8 + $0x49]]
        %v2204 = vstv %s2203
        %v2205 = vmul.f32 %v2204, %v1705
        %2207 = vrot.lane.b32.xlu0 %v2205, 127
        %v2208 = vpop.permute.xlu0 %2207
        %v2210 = vadd.f32 %v2202, %v2208
        %s2211 = sld [smem:[#allocation8 + $0x4a]]
        %v2212 = vstv %s2211
        %v2213 = vmul.f32 %v2212, %v1705
        %2215 = vrot.lane.b32.xlu0 %v2213, 126
        %v2216 = vpop.permute.xlu0 %2215
        %v2218 = vadd.f32 %v2210, %v2216
        %s2219 = sld [smem:[#allocation8 + $0x4b]]
        %v2220 = vstv %s2219
        %v2221 = vmul.f32 %v2220, %v1706
        %v2222 = vadd.f32 %v2218, %v2221
        %s2223 = sld [smem:[#allocation8 + $0x4c]]
        %v2224 = vstv %s2223
        %v2225 = vmul.f32 %v2224, %v1706
        %2227 = vrot.lane.b32.xlu0 %v2225, 127
        %v2228 = vpop.permute.xlu0 %2227
        %v2230 = vadd.f32 %v2222, %v2228
        %s2231 = sld [smem:[#allocation8 + $0x4d]]
        %v2232 = vstv %s2231
        %v2233 = vmul.f32 %v2232, %v1706
        %2235 = vrot.lane.b32.xlu0 %v2233, 126
        %v2236 = vpop.permute.xlu0 %2235
        %v2238 = vadd.f32 %v2230, %v2236
        %s2239 = sld [smem:[#allocation8 + $0x4e]]
        %v2240 = vstv %s2239
        %v2241 = vmul.f32 %v2240, %v1707
        %v2242 = vadd.f32 %v2238, %v2241
        %s2243 = sld [smem:[#allocation8 + $0x4f]]
        %v2244 = vstv %s2243
        %v2245 = vmul.f32 %v2244, %v1707
        %2247 = vrot.lane.b32.xlu0 %v2245, 127
        %v2248 = vpop.permute.xlu0 %2247
        %v2250 = vadd.f32 %v2242, %v2248
        %s2251 = sld [smem:[#allocation8 + $0x50]]
        %v2252 = vstv %s2251
        %v2253 = vmul.f32 %v2252, %v1707
        %2255 = vrot.lane.b32.xlu0 %v2253, 126
        %v2256 = vpop.permute.xlu0 %2255
        %v2258 = vadd.f32 %v2250, %v2256
        %2260 = vrot.lane.b32.xlu0 %v2258, 1
        %v2261 = vpop.permute.xlu0 %2260
        %s2263 = scalar_lea.vmem [#allocation4], 32
        %2264 = vst.msk [vmem:[%s2263 + $0x1] sm:$0xff] %vm1157, %v2261
        %s2265 = sld [smem:[#allocation8 + $0x51]]
        %v2266 = vstv %s2265
        %v2267 = vmul.f32 %v2266, %v1699
        %v2268 = vadd.f32 %v2267, 0.0
        %s2269 = sld [smem:[#allocation8 + $0x52]]
        %v2270 = vstv %s2269
        %v2271 = vmul.f32 %v2270, %v1699
        %2273 = vrot.lane.b32.xlu0 %v2271, 127
        %v2274 = vpop.permute.xlu0 %2273
        %v2276 = vadd.f32 %v2268, %v2274
        %s2277 = sld [smem:[#allocation8 + $0x53]]
        %v2278 = vstv %s2277
        %v2279 = vmul.f32 %v2278, %v1699
        %2281 = vrot.lane.b32.xlu0 %v2279, 126
        %v2282 = vpop.permute.xlu0 %2281
        %v2284 = vadd.f32 %v2276, %v2282
        %s2285 = sld [smem:[#allocation8 + $0x54]]
        %v2286 = vstv %s2285
        %v2287 = vmul.f32 %v2286, %v1700
        %v2288 = vadd.f32 %v2284, %v2287
        %s2289 = sld [smem:[#allocation8 + $0x55]]
        %v2290 = vstv %s2289
        %v2291 = vmul.f32 %v2290, %v1700
        %2293 = vrot.lane.b32.xlu0 %v2291, 127
        %v2294 = vpop.permute.xlu0 %2293
        %v2296 = vadd.f32 %v2288, %v2294
        %s2297 = sld [smem:[#allocation8 + $0x56]]
        %v2298 = vstv %s2297
        %v2299 = vmul.f32 %v2298, %v1700
        %2301 = vrot.lane.b32.xlu0 %v2299, 126
        %v2302 = vpop.permute.xlu0 %2301
        %v2304 = vadd.f32 %v2296, %v2302
        %s2305 = sld [smem:[#allocation8 + $0x57]]
        %v2306 = vstv %s2305
        %v2307 = vmul.f32 %v2306, %v1701
        %v2308 = vadd.f32 %v2304, %v2307
        %s2309 = sld [smem:[#allocation8 + $0x58]]
        %v2310 = vstv %s2309
        %v2311 = vmul.f32 %v2310, %v1701
        %2313 = vrot.lane.b32.xlu0 %v2311, 127
        %v2314 = vpop.permute.xlu0 %2313
        %v2316 = vadd.f32 %v2308, %v2314
        %s2317 = sld [smem:[#allocation8 + $0x59]]
        %v2318 = vstv %s2317
        %v2319 = vmul.f32 %v2318, %v1701
        %2321 = vrot.lane.b32.xlu0 %v2319, 126
        %v2322 = vpop.permute.xlu0 %2321
        %v2324 = vadd.f32 %v2316, %v2322
        %s2325 = sld [smem:[#allocation8 + $0x5a]]
        %v2326 = vstv %s2325
        %v2327 = vmul.f32 %v2326, %v1702
        %v2328 = vadd.f32 %v2324, %v2327
        %s2329 = sld [smem:[#allocation8 + $0x5b]]
        %v2330 = vstv %s2329
        %v2331 = vmul.f32 %v2330, %v1702
        %2333 = vrot.lane.b32.xlu0 %v2331, 127
        %v2334 = vpop.permute.xlu0 %2333
        %v2336 = vadd.f32 %v2328, %v2334
        %s2337 = sld [smem:[#allocation8 + $0x5c]]
        %v2338 = vstv %s2337
        %v2339 = vmul.f32 %v2338, %v1702
        %2341 = vrot.lane.b32.xlu0 %v2339, 126
        %v2342 = vpop.permute.xlu0 %2341
        %v2344 = vadd.f32 %v2336, %v2342
        %s2345 = sld [smem:[#allocation8 + $0x5d]]
        %v2346 = vstv %s2345
        %v2347 = vmul.f32 %v2346, %v1703
        %v2348 = vadd.f32 %v2344, %v2347
        %s2349 = sld [smem:[#allocation8 + $0x5e]]
        %v2350 = vstv %s2349
        %v2351 = vmul.f32 %v2350, %v1703
        %2353 = vrot.lane.b32.xlu0 %v2351, 127
        %v2354 = vpop.permute.xlu0 %2353
        %v2356 = vadd.f32 %v2348, %v2354
        %s2357 = sld [smem:[#allocation8 + $0x5f]]
        %v2358 = vstv %s2357
        %v2359 = vmul.f32 %v2358, %v1703
        %2361 = vrot.lane.b32.xlu0 %v2359, 126
        %v2362 = vpop.permute.xlu0 %2361
        %v2364 = vadd.f32 %v2356, %v2362
        %s2365 = sld [smem:[#allocation8 + $0x60]]
        %v2366 = vstv %s2365
        %v2367 = vmul.f32 %v2366, %v1704
        %v2368 = vadd.f32 %v2364, %v2367
        %s2369 = sld [smem:[#allocation8 + $0x61]]
        %v2370 = vstv %s2369
        %v2371 = vmul.f32 %v2370, %v1704
        %2373 = vrot.lane.b32.xlu0 %v2371, 127
        %v2374 = vpop.permute.xlu0 %2373
        %v2376 = vadd.f32 %v2368, %v2374
        %s2377 = sld [smem:[#allocation8 + $0x62]]
        %v2378 = vstv %s2377
        %v2379 = vmul.f32 %v2378, %v1704
        %2381 = vrot.lane.b32.xlu0 %v2379, 126
        %v2382 = vpop.permute.xlu0 %2381
        %v2384 = vadd.f32 %v2376, %v2382
        %s2385 = sld [smem:[#allocation8 + $0x63]]
        %v2386 = vstv %s2385
        %v2387 = vmul.f32 %v2386, %v1705
        %v2388 = vadd.f32 %v2384, %v2387
        %s2389 = sld [smem:[#allocation8 + $0x64]]
        %v2390 = vstv %s2389
        %v2391 = vmul.f32 %v2390, %v1705
        %2393 = vrot.lane.b32.xlu0 %v2391, 127
        %v2394 = vpop.permute.xlu0 %2393
        %v2396 = vadd.f32 %v2388, %v2394
        %s2397 = sld [smem:[#allocation8 + $0x65]]
        %v2398 = vstv %s2397
        %v2399 = vmul.f32 %v2398, %v1705
        %2401 = vrot.lane.b32.xlu0 %v2399, 126
        %v2402 = vpop.permute.xlu0 %2401
        %v2404 = vadd.f32 %v2396, %v2402
        %s2405 = sld [smem:[#allocation8 + $0x66]]
        %v2406 = vstv %s2405
        %v2407 = vmul.f32 %v2406, %v1706
        %v2408 = vadd.f32 %v2404, %v2407
        %s2409 = sld [smem:[#allocation8 + $0x67]]
        %v2410 = vstv %s2409
        %v2411 = vmul.f32 %v2410, %v1706
        %2413 = vrot.lane.b32.xlu0 %v2411, 127
        %v2414 = vpop.permute.xlu0 %2413
        %v2416 = vadd.f32 %v2408, %v2414
        %s2417 = sld [smem:[#allocation8 + $0x68]]
        %v2418 = vstv %s2417
        %v2419 = vmul.f32 %v2418, %v1706
        %2421 = vrot.lane.b32.xlu0 %v2419, 126
        %v2422 = vpop.permute.xlu0 %2421
        %v2424 = vadd.f32 %v2416, %v2422
        %s2425 = sld [smem:[#allocation8 + $0x69]]
        %v2426 = vstv %s2425
        %v2427 = vmul.f32 %v2426, %v1707
        %v2428 = vadd.f32 %v2424, %v2427
        %s2429 = sld [smem:[#allocation8 + $0x6a]]
        %v2430 = vstv %s2429
        %v2431 = vmul.f32 %v2430, %v1707
        %2433 = vrot.lane.b32.xlu0 %v2431, 127
        %v2434 = vpop.permute.xlu0 %2433
        %v2436 = vadd.f32 %v2428, %v2434
        %s2437 = sld [smem:[#allocation8 + $0x6b]]
        %v2438 = vstv %s2437
        %v2439 = vmul.f32 %v2438, %v1707
        %2441 = vrot.lane.b32.xlu0 %v2439, 126
        %v2442 = vpop.permute.xlu0 %2441
        %v2444 = vadd.f32 %v2436, %v2442
        %2446 = vrot.lane.b32.xlu0 %v2444, 1
        %v2447 = vpop.permute.xlu0 %2446
        %s2449 = scalar_lea.vmem [#allocation4], 48
        %2450 = vst.msk [vmem:[%s2449 + $0x1] sm:$0xff] %vm1157, %v2447
        %v2451 = vld [vmem:[#allocation4] sm:$0xff]
        %v2452 = vld [vmem:[#allocation4 + $0x1] sm:$0xff]
        %v2453 = vld [vmem:[#allocation4 + $0x2] sm:$0xff]
        %v2454 = vld [vmem:[%s2077] sm:$0xff]
        %v2455 = vld [vmem:[%s2077 + $0x1] sm:$0xff]
        %v2456 = vld [vmem:[%s2077 + $0x2] sm:$0xff]
        %v2457 = vld [vmem:[%s2263] sm:$0xff]
        %v2458 = vld [vmem:[%s2263 + $0x1] sm:$0xff]
        %v2459 = vld [vmem:[%s2263 + $0x2] sm:$0xff]
        %v2460 = vld [vmem:[%s2449] sm:$0xff]
        %v2461 = vld [vmem:[%s2449 + $0x1] sm:$0xff]
        %v2462 = vld [vmem:[%s2449 + $0x2] sm:$0xff]
        %s2463 = sld [smem:[#allocation10]]
        %v2464 = vstv %s2463
        %v2465 = vmul.f32 %v2464, %v2451
        %v2466 = vadd.f32 %v2465, 0.0
        %s2467 = sld [smem:[#allocation10 + $0x1]]
        %v2468 = vstv %s2467
        %v2469 = vmul.f32 %v2468, %v2451
        %2471 = vrot.lane.b32.xlu0 %v2469, 127
        %v2472 = vpop.permute.xlu0 %2471
        %v2474 = vadd.f32 %v2466, %v2472
        %s2475 = sld [smem:[#allocation10 + $0x2]]
        %v2476 = vstv %s2475
        %v2477 = vmul.f32 %v2476, %v2451
        %2479 = vrot.lane.b32.xlu0 %v2477, 126
        %v2480 = vpop.permute.xlu0 %2479
        %v2482 = vadd.f32 %v2474, %v2480
        %s2483 = sld [smem:[#allocation10 + $0x3]]
        %v2484 = vstv %s2483
        %v2485 = vmul.f32 %v2484, %v2452
        %v2486 = vadd.f32 %v2482, %v2485
        %s2487 = sld [smem:[#allocation10 + $0x4]]
        %v2488 = vstv %s2487
        %v2489 = vmul.f32 %v2488, %v2452
        %2491 = vrot.lane.b32.xlu0 %v2489, 127
        %v2492 = vpop.permute.xlu0 %2491
        %v2494 = vadd.f32 %v2486, %v2492
        %s2495 = sld [smem:[#allocation10 + $0x5]]
        %v2496 = vstv %s2495
        %v2497 = vmul.f32 %v2496, %v2452
        %2499 = vrot.lane.b32.xlu0 %v2497, 126
        %v2500 = vpop.permute.xlu0 %2499
        %v2502 = vadd.f32 %v2494, %v2500
        %s2503 = sld [smem:[#allocation10 + $0x6]]
        %v2504 = vstv %s2503
        %v2505 = vmul.f32 %v2504, %v2453
        %v2506 = vadd.f32 %v2502, %v2505
        %s2507 = sld [smem:[#allocation10 + $0x7]]
        %v2508 = vstv %s2507
        %v2509 = vmul.f32 %v2508, %v2453
        %2511 = vrot.lane.b32.xlu0 %v2509, 127
        %v2512 = vpop.permute.xlu0 %2511
        %v2514 = vadd.f32 %v2506, %v2512
        %s2515 = sld [smem:[#allocation10 + $0x8]]
        %v2516 = vstv %s2515
        %v2517 = vmul.f32 %v2516, %v2453
        %2519 = vrot.lane.b32.xlu0 %v2517, 126
        %v2520 = vpop.permute.xlu0 %2519
        %v2522 = vadd.f32 %v2514, %v2520
        %s2523 = sld [smem:[#allocation10 + $0x9]]
        %v2524 = vstv %s2523
        %v2525 = vmul.f32 %v2524, %v2454
        %v2526 = vadd.f32 %v2522, %v2525
        %s2527 = sld [smem:[#allocation10 + $0xa]]
        %v2528 = vstv %s2527
        %v2529 = vmul.f32 %v2528, %v2454
        %2531 = vrot.lane.b32.xlu0 %v2529, 127
        %v2532 = vpop.permute.xlu0 %2531
        %v2534 = vadd.f32 %v2526, %v2532
        %s2535 = sld [smem:[#allocation10 + $0xb]]
        %v2536 = vstv %s2535
        %v2537 = vmul.f32 %v2536, %v2454
        %2539 = vrot.lane.b32.xlu0 %v2537, 126
        %v2540 = vpop.permute.xlu0 %2539
        %v2542 = vadd.f32 %v2534, %v2540
        %s2543 = sld [smem:[#allocation10 + $0xc]]
        %v2544 = vstv %s2543
        %v2545 = vmul.f32 %v2544, %v2455
        %v2546 = vadd.f32 %v2542, %v2545
        %s2547 = sld [smem:[#allocation10 + $0xd]]
        %v2548 = vstv %s2547
        %v2549 = vmul.f32 %v2548, %v2455
        %2551 = vrot.lane.b32.xlu0 %v2549, 127
        %v2552 = vpop.permute.xlu0 %2551
        %v2554 = vadd.f32 %v2546, %v2552
        %s2555 = sld [smem:[#allocation10 + $0xe]]
        %v2556 = vstv %s2555
        %v2557 = vmul.f32 %v2556, %v2455
        %2559 = vrot.lane.b32.xlu0 %v2557, 126
        %v2560 = vpop.permute.xlu0 %2559
        %v2562 = vadd.f32 %v2554, %v2560
        %s2563 = sld [smem:[#allocation10 + $0xf]]
        %v2564 = vstv %s2563
        %v2565 = vmul.f32 %v2564, %v2456
        %v2566 = vadd.f32 %v2562, %v2565
        %s2567 = sld [smem:[#allocation10 + $0x10]]
        %v2568 = vstv %s2567
        %v2569 = vmul.f32 %v2568, %v2456
        %2571 = vrot.lane.b32.xlu0 %v2569, 127
        %v2572 = vpop.permute.xlu0 %2571
        %v2574 = vadd.f32 %v2566, %v2572
        %s2575 = sld [smem:[#allocation10 + $0x11]]
        %v2576 = vstv %s2575
        %v2577 = vmul.f32 %v2576, %v2456
        %2579 = vrot.lane.b32.xlu0 %v2577, 126
        %v2580 = vpop.permute.xlu0 %2579
        %v2582 = vadd.f32 %v2574, %v2580
        %s2583 = sld [smem:[#allocation10 + $0x12]]
        %v2584 = vstv %s2583
        %v2585 = vmul.f32 %v2584, %v2457
        %v2586 = vadd.f32 %v2582, %v2585
        %s2587 = sld [smem:[#allocation10 + $0x13]]
        %v2588 = vstv %s2587
        %v2589 = vmul.f32 %v2588, %v2457
        %2591 = vrot.lane.b32.xlu0 %v2589, 127
        %v2592 = vpop.permute.xlu0 %2591
        %v2594 = vadd.f32 %v2586, %v2592
        %s2595 = sld [smem:[#allocation10 + $0x14]]
        %v2596 = vstv %s2595
        %v2597 = vmul.f32 %v2596, %v2457
        %2599 = vrot.lane.b32.xlu0 %v2597, 126
        %v2600 = vpop.permute.xlu0 %2599
        %v2602 = vadd.f32 %v2594, %v2600
        %s2603 = sld [smem:[#allocation10 + $0x15]]
        %v2604 = vstv %s2603
        %v2605 = vmul.f32 %v2604, %v2458
        %v2606 = vadd.f32 %v2602, %v2605
        %s2607 = sld [smem:[#allocation10 + $0x16]]
        %v2608 = vstv %s2607
        %v2609 = vmul.f32 %v2608, %v2458
        %2611 = vrot.lane.b32.xlu0 %v2609, 127
        %v2612 = vpop.permute.xlu0 %2611
        %v2614 = vadd.f32 %v2606, %v2612
        %s2615 = sld [smem:[#allocation10 + $0x17]]
        %v2616 = vstv %s2615
        %v2617 = vmul.f32 %v2616, %v2458
        %2619 = vrot.lane.b32.xlu0 %v2617, 126
        %v2620 = vpop.permute.xlu0 %2619
        %v2622 = vadd.f32 %v2614, %v2620
        %s2623 = sld [smem:[#allocation10 + $0x18]]
        %v2624 = vstv %s2623
        %v2625 = vmul.f32 %v2624, %v2459
        %v2626 = vadd.f32 %v2622, %v2625
        %s2627 = sld [smem:[#allocation10 + $0x19]]
        %v2628 = vstv %s2627
        %v2629 = vmul.f32 %v2628, %v2459
        %2631 = vrot.lane.b32.xlu0 %v2629, 127
        %v2632 = vpop.permute.xlu0 %2631
        %v2634 = vadd.f32 %v2626, %v2632
        %s2635 = sld [smem:[#allocation10 + $0x1a]]
        %v2636 = vstv %s2635
        %v2637 = vmul.f32 %v2636, %v2459
        %2639 = vrot.lane.b32.xlu0 %v2637, 126
        %v2640 = vpop.permute.xlu0 %2639
        %v2642 = vadd.f32 %v2634, %v2640
        %s2643 = sld [smem:[#allocation10 + $0x1b]]
        %v2644 = vstv %s2643
        %v2645 = vmul.f32 %v2644, %v2460
        %v2646 = vadd.f32 %v2642, %v2645
        %s2647 = sld [smem:[#allocation10 + $0x1c]]
        %v2648 = vstv %s2647
        %v2649 = vmul.f32 %v2648, %v2460
        %2651 = vrot.lane.b32.xlu0 %v2649, 127
        %v2652 = vpop.permute.xlu0 %2651
        %v2654 = vadd.f32 %v2646, %v2652
        %s2655 = sld [smem:[#allocation10 + $0x1d]]
        %v2656 = vstv %s2655
        %v2657 = vmul.f32 %v2656, %v2460
        %2659 = vrot.lane.b32.xlu0 %v2657, 126
        %v2660 = vpop.permute.xlu0 %2659
        %v2662 = vadd.f32 %v2654, %v2660
        %s2663 = sld [smem:[#allocation10 + $0x1e]]
        %v2664 = vstv %s2663
        %v2665 = vmul.f32 %v2664, %v2461
        %v2666 = vadd.f32 %v2662, %v2665
        %s2667 = sld [smem:[#allocation10 + $0x1f]]
        %v2668 = vstv %s2667
        %v2669 = vmul.f32 %v2668, %v2461
        %2671 = vrot.lane.b32.xlu0 %v2669, 127
        %v2672 = vpop.permute.xlu0 %2671
        %v2674 = vadd.f32 %v2666, %v2672
        %s2675 = sld [smem:[#allocation10 + $0x20]]
        %v2676 = vstv %s2675
        %v2677 = vmul.f32 %v2676, %v2461
        %2679 = vrot.lane.b32.xlu0 %v2677, 126
        %v2680 = vpop.permute.xlu0 %2679
        %v2682 = vadd.f32 %v2674, %v2680
        %s2683 = sld [smem:[#allocation10 + $0x21]]
        %v2684 = vstv %s2683
        %v2685 = vmul.f32 %v2684, %v2462
        %v2686 = vadd.f32 %v2682, %v2685
        %s2687 = sld [smem:[#allocation10 + $0x22]]
        %v2688 = vstv %s2687
        %v2689 = vmul.f32 %v2688, %v2462
        %2691 = vrot.lane.b32.xlu0 %v2689, 127
        %v2692 = vpop.permute.xlu0 %2691
        %v2694 = vadd.f32 %v2686, %v2692
        %s2695 = sld [smem:[#allocation10 + $0x23]]
        %v2696 = vstv %s2695
        %v2697 = vmul.f32 %v2696, %v2462
        %2699 = vrot.lane.b32.xlu0 %v2697, 126
        %v2700 = vpop.permute.xlu0 %2699
        %v2702 = vadd.f32 %v2694, %v2700
        %2703 = vst.msk [vmem:[%s308] sm:$0xff] %vm1089, %v2702
        %s2704 = sld [smem:[#allocation10 + $0x24]]
        %v2705 = vstv %s2704
        %v2706 = vmul.f32 %v2705, %v2451
        %v2707 = vadd.f32 %v2706, 0.0
        %s2708 = sld [smem:[#allocation10 + $0x25]]
        %v2709 = vstv %s2708
        %v2710 = vmul.f32 %v2709, %v2451
        %2712 = vrot.lane.b32.xlu0 %v2710, 127
        %v2713 = vpop.permute.xlu0 %2712
        %v2715 = vadd.f32 %v2707, %v2713
        %s2716 = sld [smem:[#allocation10 + $0x26]]
        %v2717 = vstv %s2716
        %v2718 = vmul.f32 %v2717, %v2451
        %2720 = vrot.lane.b32.xlu0 %v2718, 126
        %v2721 = vpop.permute.xlu0 %2720
        %v2723 = vadd.f32 %v2715, %v2721
        %s2724 = sld [smem:[#allocation10 + $0x27]]
        %v2725 = vstv %s2724
        %v2726 = vmul.f32 %v2725, %v2452
        %v2727 = vadd.f32 %v2723, %v2726
        %s2728 = sld [smem:[#allocation10 + $0x28]]
        %v2729 = vstv %s2728
        %v2730 = vmul.f32 %v2729, %v2452
        %2732 = vrot.lane.b32.xlu0 %v2730, 127
        %v2733 = vpop.permute.xlu0 %2732
        %v2735 = vadd.f32 %v2727, %v2733
        %s2736 = sld [smem:[#allocation10 + $0x29]]
        %v2737 = vstv %s2736
        %v2738 = vmul.f32 %v2737, %v2452
        %2740 = vrot.lane.b32.xlu0 %v2738, 126
        %v2741 = vpop.permute.xlu0 %2740
        %v2743 = vadd.f32 %v2735, %v2741
        %s2744 = sld [smem:[#allocation10 + $0x2a]]
        %v2745 = vstv %s2744
        %v2746 = vmul.f32 %v2745, %v2453
        %v2747 = vadd.f32 %v2743, %v2746
        %s2748 = sld [smem:[#allocation10 + $0x2b]]
        %v2749 = vstv %s2748
        %v2750 = vmul.f32 %v2749, %v2453
        %2752 = vrot.lane.b32.xlu0 %v2750, 127
        %v2753 = vpop.permute.xlu0 %2752
        %v2755 = vadd.f32 %v2747, %v2753
        %s2756 = sld [smem:[#allocation10 + $0x2c]]
        %v2757 = vstv %s2756
        %v2758 = vmul.f32 %v2757, %v2453
        %2760 = vrot.lane.b32.xlu0 %v2758, 126
        %v2761 = vpop.permute.xlu0 %2760
        %v2763 = vadd.f32 %v2755, %v2761
        %s2764 = sld [smem:[#allocation10 + $0x2d]]
        %v2765 = vstv %s2764
        %v2766 = vmul.f32 %v2765, %v2454
        %v2767 = vadd.f32 %v2763, %v2766
        %s2768 = sld [smem:[#allocation10 + $0x2e]]
        %v2769 = vstv %s2768
        %v2770 = vmul.f32 %v2769, %v2454
        %2772 = vrot.lane.b32.xlu0 %v2770, 127
        %v2773 = vpop.permute.xlu0 %2772
        %v2775 = vadd.f32 %v2767, %v2773
        %s2776 = sld [smem:[#allocation10 + $0x2f]]
        %v2777 = vstv %s2776
        %v2778 = vmul.f32 %v2777, %v2454
        %2780 = vrot.lane.b32.xlu0 %v2778, 126
        %v2781 = vpop.permute.xlu0 %2780
        %v2783 = vadd.f32 %v2775, %v2781
        %s2784 = sld [smem:[#allocation10 + $0x30]]
        %v2785 = vstv %s2784
        %v2786 = vmul.f32 %v2785, %v2455
        %v2787 = vadd.f32 %v2783, %v2786
        %s2788 = sld [smem:[#allocation10 + $0x31]]
        %v2789 = vstv %s2788
        %v2790 = vmul.f32 %v2789, %v2455
        %2792 = vrot.lane.b32.xlu0 %v2790, 127
        %v2793 = vpop.permute.xlu0 %2792
        %v2795 = vadd.f32 %v2787, %v2793
        %s2796 = sld [smem:[#allocation10 + $0x32]]
        %v2797 = vstv %s2796
        %v2798 = vmul.f32 %v2797, %v2455
        %2800 = vrot.lane.b32.xlu0 %v2798, 126
        %v2801 = vpop.permute.xlu0 %2800
        %v2803 = vadd.f32 %v2795, %v2801
        %s2804 = sld [smem:[#allocation10 + $0x33]]
        %v2805 = vstv %s2804
        %v2806 = vmul.f32 %v2805, %v2456
        %v2807 = vadd.f32 %v2803, %v2806
        %s2808 = sld [smem:[#allocation10 + $0x34]]
        %v2809 = vstv %s2808
        %v2810 = vmul.f32 %v2809, %v2456
        %2812 = vrot.lane.b32.xlu0 %v2810, 127
        %v2813 = vpop.permute.xlu0 %2812
        %v2815 = vadd.f32 %v2807, %v2813
        %s2816 = sld [smem:[#allocation10 + $0x35]]
        %v2817 = vstv %s2816
        %v2818 = vmul.f32 %v2817, %v2456
        %2820 = vrot.lane.b32.xlu0 %v2818, 126
        %v2821 = vpop.permute.xlu0 %2820
        %v2823 = vadd.f32 %v2815, %v2821
        %s2824 = sld [smem:[#allocation10 + $0x36]]
        %v2825 = vstv %s2824
        %v2826 = vmul.f32 %v2825, %v2457
        %v2827 = vadd.f32 %v2823, %v2826
        %s2828 = sld [smem:[#allocation10 + $0x37]]
        %v2829 = vstv %s2828
        %v2830 = vmul.f32 %v2829, %v2457
        %2832 = vrot.lane.b32.xlu0 %v2830, 127
        %v2833 = vpop.permute.xlu0 %2832
        %v2835 = vadd.f32 %v2827, %v2833
        %s2836 = sld [smem:[#allocation10 + $0x38]]
        %v2837 = vstv %s2836
        %v2838 = vmul.f32 %v2837, %v2457
        %2840 = vrot.lane.b32.xlu0 %v2838, 126
        %v2841 = vpop.permute.xlu0 %2840
        %v2843 = vadd.f32 %v2835, %v2841
        %s2844 = sld [smem:[#allocation10 + $0x39]]
        %v2845 = vstv %s2844
        %v2846 = vmul.f32 %v2845, %v2458
        %v2847 = vadd.f32 %v2843, %v2846
        %s2848 = sld [smem:[#allocation10 + $0x3a]]
        %v2849 = vstv %s2848
        %v2850 = vmul.f32 %v2849, %v2458
        %2852 = vrot.lane.b32.xlu0 %v2850, 127
        %v2853 = vpop.permute.xlu0 %2852
        %v2855 = vadd.f32 %v2847, %v2853
        %s2856 = sld [smem:[#allocation10 + $0x3b]]
        %v2857 = vstv %s2856
        %v2858 = vmul.f32 %v2857, %v2458
        %2860 = vrot.lane.b32.xlu0 %v2858, 126
        %v2861 = vpop.permute.xlu0 %2860
        %v2863 = vadd.f32 %v2855, %v2861
        %s2864 = sld [smem:[#allocation10 + $0x3c]]
        %v2865 = vstv %s2864
        %v2866 = vmul.f32 %v2865, %v2459
        %v2867 = vadd.f32 %v2863, %v2866
        %s2868 = sld [smem:[#allocation10 + $0x3d]]
        %v2869 = vstv %s2868
        %v2870 = vmul.f32 %v2869, %v2459
        %2872 = vrot.lane.b32.xlu0 %v2870, 127
        %v2873 = vpop.permute.xlu0 %2872
        %v2875 = vadd.f32 %v2867, %v2873
        %s2876 = sld [smem:[#allocation10 + $0x3e]]
        %v2877 = vstv %s2876
        %v2878 = vmul.f32 %v2877, %v2459
        %2880 = vrot.lane.b32.xlu0 %v2878, 126
        %v2881 = vpop.permute.xlu0 %2880
        %v2883 = vadd.f32 %v2875, %v2881
        %s2884 = sld [smem:[#allocation10 + $0x3f]]
        %v2885 = vstv %s2884
        %v2886 = vmul.f32 %v2885, %v2460
        %v2887 = vadd.f32 %v2883, %v2886
        %s2888 = sld [smem:[#allocation10 + $0x40]]
        %v2889 = vstv %s2888
        %v2890 = vmul.f32 %v2889, %v2460
        %2892 = vrot.lane.b32.xlu0 %v2890, 127
        %v2893 = vpop.permute.xlu0 %2892
        %v2895 = vadd.f32 %v2887, %v2893
        %s2896 = sld [smem:[#allocation10 + $0x41]]
        %v2897 = vstv %s2896
        %v2898 = vmul.f32 %v2897, %v2460
        %2900 = vrot.lane.b32.xlu0 %v2898, 126
        %v2901 = vpop.permute.xlu0 %2900
        %v2903 = vadd.f32 %v2895, %v2901
        %s2904 = sld [smem:[#allocation10 + $0x42]]
        %v2905 = vstv %s2904
        %v2906 = vmul.f32 %v2905, %v2461
        %v2907 = vadd.f32 %v2903, %v2906
        %s2908 = sld [smem:[#allocation10 + $0x43]]
        %v2909 = vstv %s2908
        %v2910 = vmul.f32 %v2909, %v2461
        %2912 = vrot.lane.b32.xlu0 %v2910, 127
        %v2913 = vpop.permute.xlu0 %2912
        %v2915 = vadd.f32 %v2907, %v2913
        %s2916 = sld [smem:[#allocation10 + $0x44]]
        %v2917 = vstv %s2916
        %v2918 = vmul.f32 %v2917, %v2461
        %2920 = vrot.lane.b32.xlu0 %v2918, 126
        %v2921 = vpop.permute.xlu0 %2920
        %v2923 = vadd.f32 %v2915, %v2921
        %s2924 = sld [smem:[#allocation10 + $0x45]]
        %v2925 = vstv %s2924
        %v2926 = vmul.f32 %v2925, %v2462
        %v2927 = vadd.f32 %v2923, %v2926
        %s2928 = sld [smem:[#allocation10 + $0x46]]
        %v2929 = vstv %s2928
        %v2930 = vmul.f32 %v2929, %v2462
        %2932 = vrot.lane.b32.xlu0 %v2930, 127
        %v2933 = vpop.permute.xlu0 %2932
        %v2935 = vadd.f32 %v2927, %v2933
        %s2936 = sld [smem:[#allocation10 + $0x47]]
        %v2937 = vstv %s2936
        %v2938 = vmul.f32 %v2937, %v2462
        %2940 = vrot.lane.b32.xlu0 %v2938, 126
        %v2941 = vpop.permute.xlu0 %2940
        %v2943 = vadd.f32 %v2935, %v2941
        %s2944 = scalar_lea.vmem %s308, 8 [#allocation14]
        %2945 = vst.msk [vmem:[%s2944] sm:$0xff] %vm1089, %v2943
        %s2946 = sld [smem:[#allocation10 + $0x48]]
        %v2947 = vstv %s2946
        %v2948 = vmul.f32 %v2947, %v2451
        %v2949 = vadd.f32 %v2948, 0.0
        %s2950 = sld [smem:[#allocation10 + $0x49]]
        %v2951 = vstv %s2950
        %v2952 = vmul.f32 %v2951, %v2451
        %2954 = vrot.lane.b32.xlu0 %v2952, 127
        %v2955 = vpop.permute.xlu0 %2954
        %v2957 = vadd.f32 %v2949, %v2955
        %s2958 = sld [smem:[#allocation10 + $0x4a]]
        %v2959 = vstv %s2958
        %v2960 = vmul.f32 %v2959, %v2451
        %2962 = vrot.lane.b32.xlu0 %v2960, 126
        %v2963 = vpop.permute.xlu0 %2962
        %v2965 = vadd.f32 %v2957, %v2963
        %s2966 = sld [smem:[#allocation10 + $0x4b]]
        %v2967 = vstv %s2966
        %v2968 = vmul.f32 %v2967, %v2452
        %v2969 = vadd.f32 %v2965, %v2968
        %s2970 = sld [smem:[#allocation10 + $0x4c]]
        %v2971 = vstv %s2970
        %v2972 = vmul.f32 %v2971, %v2452
        %2974 = vrot.lane.b32.xlu0 %v2972, 127
        %v2975 = vpop.permute.xlu0 %2974
        %v2977 = vadd.f32 %v2969, %v2975
        %s2978 = sld [smem:[#allocation10 + $0x4d]]
        %v2979 = vstv %s2978
        %v2980 = vmul.f32 %v2979, %v2452
        %2982 = vrot.lane.b32.xlu0 %v2980, 126
        %v2983 = vpop.permute.xlu0 %2982
        %v2985 = vadd.f32 %v2977, %v2983
        %s2986 = sld [smem:[#allocation10 + $0x4e]]
        %v2987 = vstv %s2986
        %v2988 = vmul.f32 %v2987, %v2453
        %v2989 = vadd.f32 %v2985, %v2988
        %s2990 = sld [smem:[#allocation10 + $0x4f]]
        %v2991 = vstv %s2990
        %v2992 = vmul.f32 %v2991, %v2453
        %2994 = vrot.lane.b32.xlu0 %v2992, 127
        %v2995 = vpop.permute.xlu0 %2994
        %v2997 = vadd.f32 %v2989, %v2995
        %s2998 = sld [smem:[#allocation10 + $0x50]]
        %v2999 = vstv %s2998
        %v3000 = vmul.f32 %v2999, %v2453
        %3002 = vrot.lane.b32.xlu0 %v3000, 126
        %v3003 = vpop.permute.xlu0 %3002
        %v3005 = vadd.f32 %v2997, %v3003
        %s3006 = sld [smem:[#allocation10 + $0x51]]
        %v3007 = vstv %s3006
        %v3008 = vmul.f32 %v3007, %v2454
        %v3009 = vadd.f32 %v3005, %v3008
        %s3010 = sld [smem:[#allocation10 + $0x52]]
        %v3011 = vstv %s3010
        %v3012 = vmul.f32 %v3011, %v2454
        %3014 = vrot.lane.b32.xlu0 %v3012, 127
        %v3015 = vpop.permute.xlu0 %3014
        %v3017 = vadd.f32 %v3009, %v3015
        %s3018 = sld [smem:[#allocation10 + $0x53]]
        %v3019 = vstv %s3018
        %v3020 = vmul.f32 %v3019, %v2454
        %3022 = vrot.lane.b32.xlu0 %v3020, 126
        %v3023 = vpop.permute.xlu0 %3022
        %v3025 = vadd.f32 %v3017, %v3023
        %s3026 = sld [smem:[#allocation10 + $0x54]]
        %v3027 = vstv %s3026
        %v3028 = vmul.f32 %v3027, %v2455
        %v3029 = vadd.f32 %v3025, %v3028
        %s3030 = sld [smem:[#allocation10 + $0x55]]
        %v3031 = vstv %s3030
        %v3032 = vmul.f32 %v3031, %v2455
        %3034 = vrot.lane.b32.xlu0 %v3032, 127
        %v3035 = vpop.permute.xlu0 %3034
        %v3037 = vadd.f32 %v3029, %v3035
        %s3038 = sld [smem:[#allocation10 + $0x56]]
        %v3039 = vstv %s3038
        %v3040 = vmul.f32 %v3039, %v2455
        %3042 = vrot.lane.b32.xlu0 %v3040, 126
        %v3043 = vpop.permute.xlu0 %3042
        %v3045 = vadd.f32 %v3037, %v3043
        %s3046 = sld [smem:[#allocation10 + $0x57]]
        %v3047 = vstv %s3046
        %v3048 = vmul.f32 %v3047, %v2456
        %v3049 = vadd.f32 %v3045, %v3048
        %s3050 = sld [smem:[#allocation10 + $0x58]]
        %v3051 = vstv %s3050
        %v3052 = vmul.f32 %v3051, %v2456
        %3054 = vrot.lane.b32.xlu0 %v3052, 127
        %v3055 = vpop.permute.xlu0 %3054
        %v3057 = vadd.f32 %v3049, %v3055
        %s3058 = sld [smem:[#allocation10 + $0x59]]
        %v3059 = vstv %s3058
        %v3060 = vmul.f32 %v3059, %v2456
        %3062 = vrot.lane.b32.xlu0 %v3060, 126
        %v3063 = vpop.permute.xlu0 %3062
        %v3065 = vadd.f32 %v3057, %v3063
        %s3066 = sld [smem:[#allocation10 + $0x5a]]
        %v3067 = vstv %s3066
        %v3068 = vmul.f32 %v3067, %v2457
        %v3069 = vadd.f32 %v3065, %v3068
        %s3070 = sld [smem:[#allocation10 + $0x5b]]
        %v3071 = vstv %s3070
        %v3072 = vmul.f32 %v3071, %v2457
        %3074 = vrot.lane.b32.xlu0 %v3072, 127
        %v3075 = vpop.permute.xlu0 %3074
        %v3077 = vadd.f32 %v3069, %v3075
        %s3078 = sld [smem:[#allocation10 + $0x5c]]
        %v3079 = vstv %s3078
        %v3080 = vmul.f32 %v3079, %v2457
        %3082 = vrot.lane.b32.xlu0 %v3080, 126
        %v3083 = vpop.permute.xlu0 %3082
        %v3085 = vadd.f32 %v3077, %v3083
        %s3086 = sld [smem:[#allocation10 + $0x5d]]
        %v3087 = vstv %s3086
        %v3088 = vmul.f32 %v3087, %v2458
        %v3089 = vadd.f32 %v3085, %v3088
        %s3090 = sld [smem:[#allocation10 + $0x5e]]
        %v3091 = vstv %s3090
        %v3092 = vmul.f32 %v3091, %v2458
        %3094 = vrot.lane.b32.xlu0 %v3092, 127
        %v3095 = vpop.permute.xlu0 %3094
        %v3097 = vadd.f32 %v3089, %v3095
        %s3098 = sld [smem:[#allocation10 + $0x5f]]
        %v3099 = vstv %s3098
        %v3100 = vmul.f32 %v3099, %v2458
        %3102 = vrot.lane.b32.xlu0 %v3100, 126
        %v3103 = vpop.permute.xlu0 %3102
        %v3105 = vadd.f32 %v3097, %v3103
        %s3106 = sld [smem:[#allocation10 + $0x60]]
        %v3107 = vstv %s3106
        %v3108 = vmul.f32 %v3107, %v2459
        %v3109 = vadd.f32 %v3105, %v3108
        %s3110 = sld [smem:[#allocation10 + $0x61]]
        %v3111 = vstv %s3110
        %v3112 = vmul.f32 %v3111, %v2459
        %3114 = vrot.lane.b32.xlu0 %v3112, 127
        %v3115 = vpop.permute.xlu0 %3114
        %v3117 = vadd.f32 %v3109, %v3115
        %s3118 = sld [smem:[#allocation10 + $0x62]]
        %v3119 = vstv %s3118
        %v3120 = vmul.f32 %v3119, %v2459
        %3122 = vrot.lane.b32.xlu0 %v3120, 126
        %v3123 = vpop.permute.xlu0 %3122
        %v3125 = vadd.f32 %v3117, %v3123
        %s3126 = sld [smem:[#allocation10 + $0x63]]
        %v3127 = vstv %s3126
        %v3128 = vmul.f32 %v3127, %v2460
        %v3129 = vadd.f32 %v3125, %v3128
        %s3130 = sld [smem:[#allocation10 + $0x64]]
        %v3131 = vstv %s3130
        %v3132 = vmul.f32 %v3131, %v2460
        %3134 = vrot.lane.b32.xlu0 %v3132, 127
        %v3135 = vpop.permute.xlu0 %3134
        %v3137 = vadd.f32 %v3129, %v3135
        %s3138 = sld [smem:[#allocation10 + $0x65]]
        %v3139 = vstv %s3138
        %v3140 = vmul.f32 %v3139, %v2460
        %3142 = vrot.lane.b32.xlu0 %v3140, 126
        %v3143 = vpop.permute.xlu0 %3142
        %v3145 = vadd.f32 %v3137, %v3143
        %s3146 = sld [smem:[#allocation10 + $0x66]]
        %v3147 = vstv %s3146
        %v3148 = vmul.f32 %v3147, %v2461
        %v3149 = vadd.f32 %v3145, %v3148
        %s3150 = sld [smem:[#allocation10 + $0x67]]
        %v3151 = vstv %s3150
        %v3152 = vmul.f32 %v3151, %v2461
        %3154 = vrot.lane.b32.xlu0 %v3152, 127
        %v3155 = vpop.permute.xlu0 %3154
        %v3157 = vadd.f32 %v3149, %v3155
        %s3158 = sld [smem:[#allocation10 + $0x68]]
        %v3159 = vstv %s3158
        %v3160 = vmul.f32 %v3159, %v2461
        %3162 = vrot.lane.b32.xlu0 %v3160, 126
        %v3163 = vpop.permute.xlu0 %3162
        %v3165 = vadd.f32 %v3157, %v3163
        %s3166 = sld [smem:[#allocation10 + $0x69]]
        %v3167 = vstv %s3166
        %v3168 = vmul.f32 %v3167, %v2462
        %v3169 = vadd.f32 %v3165, %v3168
        %s3170 = sld [smem:[#allocation10 + $0x6a]]
        %v3171 = vstv %s3170
        %v3172 = vmul.f32 %v3171, %v2462
        %3174 = vrot.lane.b32.xlu0 %v3172, 127
        %v3175 = vpop.permute.xlu0 %3174
        %v3177 = vadd.f32 %v3169, %v3175
        %s3178 = sld [smem:[#allocation10 + $0x6b]]
        %v3179 = vstv %s3178
        %v3180 = vmul.f32 %v3179, %v2462
        %3182 = vrot.lane.b32.xlu0 %v3180, 126
        %v3183 = vpop.permute.xlu0 %3182
        %v3185 = vadd.f32 %v3177, %v3183
        %s3186 = scalar_lea.vmem %s308, 16 [#allocation14]
        %3187 = vst.msk [vmem:[%s3186] sm:$0xff] %vm1089, %v3185
        %s3188 = sld [smem:[#allocation10 + $0x6c]]
        %v3189 = vstv %s3188
        %v3190 = vmul.f32 %v3189, %v2451
        %v3191 = vadd.f32 %v3190, 0.0
        %s3192 = sld [smem:[#allocation10 + $0x6d]]
        %v3193 = vstv %s3192
        %v3194 = vmul.f32 %v3193, %v2451
        %3196 = vrot.lane.b32.xlu0 %v3194, 127
        %v3197 = vpop.permute.xlu0 %3196
        %v3199 = vadd.f32 %v3191, %v3197
        %s3200 = sld [smem:[#allocation10 + $0x6e]]
        %v3201 = vstv %s3200
        %v3202 = vmul.f32 %v3201, %v2451
        %3204 = vrot.lane.b32.xlu0 %v3202, 126
        %v3205 = vpop.permute.xlu0 %3204
        %v3207 = vadd.f32 %v3199, %v3205
        %s3208 = sld [smem:[#allocation10 + $0x6f]]
        %v3209 = vstv %s3208
        %v3210 = vmul.f32 %v3209, %v2452
        %v3211 = vadd.f32 %v3207, %v3210
        %s3212 = sld [smem:[#allocation10 + $0x70]]
        %v3213 = vstv %s3212
        %v3214 = vmul.f32 %v3213, %v2452
        %3216 = vrot.lane.b32.xlu0 %v3214, 127
        %v3217 = vpop.permute.xlu0 %3216
        %v3219 = vadd.f32 %v3211, %v3217
        %s3220 = sld [smem:[#allocation10 + $0x71]]
        %v3221 = vstv %s3220
        %v3222 = vmul.f32 %v3221, %v2452
        %3224 = vrot.lane.b32.xlu0 %v3222, 126
        %v3225 = vpop.permute.xlu0 %3224
        %v3227 = vadd.f32 %v3219, %v3225
        %s3228 = sld [smem:[#allocation10 + $0x72]]
        %v3229 = vstv %s3228
        %v3230 = vmul.f32 %v3229, %v2453
        %v3231 = vadd.f32 %v3227, %v3230
        %s3232 = sld [smem:[#allocation10 + $0x73]]
        %v3233 = vstv %s3232
        %v3234 = vmul.f32 %v3233, %v2453
        %3236 = vrot.lane.b32.xlu0 %v3234, 127
        %v3237 = vpop.permute.xlu0 %3236
        %v3239 = vadd.f32 %v3231, %v3237
        %s3240 = sld [smem:[#allocation10 + $0x74]]
        %v3241 = vstv %s3240
        %v3242 = vmul.f32 %v3241, %v2453
        %3244 = vrot.lane.b32.xlu0 %v3242, 126
        %v3245 = vpop.permute.xlu0 %3244
        %v3247 = vadd.f32 %v3239, %v3245
        %s3248 = sld [smem:[#allocation10 + $0x75]]
        %v3249 = vstv %s3248
        %v3250 = vmul.f32 %v3249, %v2454
        %v3251 = vadd.f32 %v3247, %v3250
        %s3252 = sld [smem:[#allocation10 + $0x76]]
        %v3253 = vstv %s3252
        %v3254 = vmul.f32 %v3253, %v2454
        %3256 = vrot.lane.b32.xlu0 %v3254, 127
        %v3257 = vpop.permute.xlu0 %3256
        %v3259 = vadd.f32 %v3251, %v3257
        %s3260 = sld [smem:[#allocation10 + $0x77]]
        %v3261 = vstv %s3260
        %v3262 = vmul.f32 %v3261, %v2454
        %3264 = vrot.lane.b32.xlu0 %v3262, 126
        %v3265 = vpop.permute.xlu0 %3264
        %v3267 = vadd.f32 %v3259, %v3265
        %s3268 = sld [smem:[#allocation10 + $0x78]]
        %v3269 = vstv %s3268
        %v3270 = vmul.f32 %v3269, %v2455
        %v3271 = vadd.f32 %v3267, %v3270
        %s3272 = sld [smem:[#allocation10 + $0x79]]
        %v3273 = vstv %s3272
        %v3274 = vmul.f32 %v3273, %v2455
        %3276 = vrot.lane.b32.xlu0 %v3274, 127
        %v3277 = vpop.permute.xlu0 %3276
        %v3279 = vadd.f32 %v3271, %v3277
        %s3280 = sld [smem:[#allocation10 + $0x7a]]
        %v3281 = vstv %s3280
        %v3282 = vmul.f32 %v3281, %v2455
        %3284 = vrot.lane.b32.xlu0 %v3282, 126
        %v3285 = vpop.permute.xlu0 %3284
        %v3287 = vadd.f32 %v3279, %v3285
        %s3288 = sld [smem:[#allocation10 + $0x7b]]
        %v3289 = vstv %s3288
        %v3290 = vmul.f32 %v3289, %v2456
        %v3291 = vadd.f32 %v3287, %v3290
        %s3292 = sld [smem:[#allocation10 + $0x7c]]
        %v3293 = vstv %s3292
        %v3294 = vmul.f32 %v3293, %v2456
        %3296 = vrot.lane.b32.xlu0 %v3294, 127
        %v3297 = vpop.permute.xlu0 %3296
        %v3299 = vadd.f32 %v3291, %v3297
        %s3300 = sld [smem:[#allocation10 + $0x7d]]
        %v3301 = vstv %s3300
        %v3302 = vmul.f32 %v3301, %v2456
        %3304 = vrot.lane.b32.xlu0 %v3302, 126
        %v3305 = vpop.permute.xlu0 %3304
        %v3307 = vadd.f32 %v3299, %v3305
        %s3308 = sld [smem:[#allocation10 + $0x7e]]
        %v3309 = vstv %s3308
        %v3310 = vmul.f32 %v3309, %v2457
        %v3311 = vadd.f32 %v3307, %v3310
        %s3312 = sld [smem:[#allocation10 + $0x7f]]
        %v3313 = vstv %s3312
        %v3314 = vmul.f32 %v3313, %v2457
        %3316 = vrot.lane.b32.xlu0 %v3314, 127
        %v3317 = vpop.permute.xlu0 %3316
        %v3319 = vadd.f32 %v3311, %v3317
        %s3320 = sld [smem:[#allocation10 + $0x80]]
        %v3321 = vstv %s3320
        %v3322 = vmul.f32 %v3321, %v2457
        %3324 = vrot.lane.b32.xlu0 %v3322, 126
        %v3325 = vpop.permute.xlu0 %3324
        %v3327 = vadd.f32 %v3319, %v3325
        %s3328 = sld [smem:[#allocation10 + $0x81]]
        %v3329 = vstv %s3328
        %v3330 = vmul.f32 %v3329, %v2458
        %v3331 = vadd.f32 %v3327, %v3330
        %s3332 = sld [smem:[#allocation10 + $0x82]]
        %v3333 = vstv %s3332
        %v3334 = vmul.f32 %v3333, %v2458
        %3336 = vrot.lane.b32.xlu0 %v3334, 127
        %v3337 = vpop.permute.xlu0 %3336
        %v3339 = vadd.f32 %v3331, %v3337
        %s3340 = sld [smem:[#allocation10 + $0x83]]
        %v3341 = vstv %s3340
        %v3342 = vmul.f32 %v3341, %v2458
        %3344 = vrot.lane.b32.xlu0 %v3342, 126
        %v3345 = vpop.permute.xlu0 %3344
        %v3347 = vadd.f32 %v3339, %v3345
        %s3348 = sld [smem:[#allocation10 + $0x84]]
        %v3349 = vstv %s3348
        %v3350 = vmul.f32 %v3349, %v2459
        %v3351 = vadd.f32 %v3347, %v3350
        %s3352 = sld [smem:[#allocation10 + $0x85]]
        %v3353 = vstv %s3352
        %v3354 = vmul.f32 %v3353, %v2459
        %3356 = vrot.lane.b32.xlu0 %v3354, 127
        %v3357 = vpop.permute.xlu0 %3356
        %v3359 = vadd.f32 %v3351, %v3357
        %s3360 = sld [smem:[#allocation10 + $0x86]]
        %v3361 = vstv %s3360
        %v3362 = vmul.f32 %v3361, %v2459
        %3364 = vrot.lane.b32.xlu0 %v3362, 126
        %v3365 = vpop.permute.xlu0 %3364
        %v3367 = vadd.f32 %v3359, %v3365
        %s3368 = sld [smem:[#allocation10 + $0x87]]
        %v3369 = vstv %s3368
        %v3370 = vmul.f32 %v3369, %v2460
        %v3371 = vadd.f32 %v3367, %v3370
        %s3372 = sld [smem:[#allocation10 + $0x88]]
        %v3373 = vstv %s3372
        %v3374 = vmul.f32 %v3373, %v2460
        %3376 = vrot.lane.b32.xlu0 %v3374, 127
        %v3377 = vpop.permute.xlu0 %3376
        %v3379 = vadd.f32 %v3371, %v3377
        %s3380 = sld [smem:[#allocation10 + $0x89]]
        %v3381 = vstv %s3380
        %v3382 = vmul.f32 %v3381, %v2460
        %3384 = vrot.lane.b32.xlu0 %v3382, 126
        %v3385 = vpop.permute.xlu0 %3384
        %v3387 = vadd.f32 %v3379, %v3385
        %s3388 = sld [smem:[#allocation10 + $0x8a]]
        %v3389 = vstv %s3388
        %v3390 = vmul.f32 %v3389, %v2461
        %v3391 = vadd.f32 %v3387, %v3390
        %s3392 = sld [smem:[#allocation10 + $0x8b]]
        %v3393 = vstv %s3392
        %v3394 = vmul.f32 %v3393, %v2461
        %3396 = vrot.lane.b32.xlu0 %v3394, 127
        %v3397 = vpop.permute.xlu0 %3396
        %v3399 = vadd.f32 %v3391, %v3397
        %s3400 = sld [smem:[#allocation10 + $0x8c]]
        %v3401 = vstv %s3400
        %v3402 = vmul.f32 %v3401, %v2461
        %3404 = vrot.lane.b32.xlu0 %v3402, 126
        %v3405 = vpop.permute.xlu0 %3404
        %v3407 = vadd.f32 %v3399, %v3405
        %s3408 = sld [smem:[#allocation10 + $0x8d]]
        %v3409 = vstv %s3408
        %v3410 = vmul.f32 %v3409, %v2462
        %v3411 = vadd.f32 %v3407, %v3410
        %s3412 = sld [smem:[#allocation10 + $0x8e]]
        %v3413 = vstv %s3412
        %v3414 = vmul.f32 %v3413, %v2462
        %3416 = vrot.lane.b32.xlu0 %v3414, 127
        %v3417 = vpop.permute.xlu0 %3416
        %v3419 = vadd.f32 %v3411, %v3417
        %s3420 = sld [smem:[#allocation10 + $0x8f]]
        %v3421 = vstv %s3420
        %v3422 = vmul.f32 %v3421, %v2462
        %3424 = vrot.lane.b32.xlu0 %v3422, 126
        %v3425 = vpop.permute.xlu0 %3424
        %v3427 = vadd.f32 %v3419, %v3425
        %s3428 = scalar_lea.vmem %s308, 24 [#allocation14]
        %3429 = vst.msk [vmem:[%s3428] sm:$0xff] %vm1089, %v3427
        %s3430 = sand.u32 %s162, 1
        %s3431 = scalar_lea.sflag [#allocation6], %s3430
        %s3432 = sand.u32 %s162, 1
        %s3433 = smul.addr %s3432, 32
        %s3434 = scalar_lea.vmem [#allocation14], %s3433
        // Predicated region
        $region65: #{ddnet_forward.1} parent=43 // pred_check
          %p3435 = pneg %p172
        $region66: #{ddnet_forward.1} parent=43 // pred_check_branch
          %3437 = sbr.rel (%p3435) target = $region68
        $region67: #{ddnet_forward.1} parent=43 // pred_region
          %3439 = vsyncadd %s3431, 0
          %s3440 = smul.addr %s23, 4
          %s3441 = smul.addr %s3440, 8
          %s3442 = scalar_lea.hbm %s6, %s3441
          %s3443 = sshll.u32 %s3434, 4
          %s3444 = int_to_ptr.vmem [resolvable:$true] %s3443
          %s3445 = sshll.u32 %s3442, 4
          %s3446 = int_to_ptr.hbm [resolvable:$true] %s3445
          %3451 = dma.vmem_to_hbm [thread:$0]  %s3444, 512, %s3446, %s3431, 128, 128, 8
        $region68: #{ddnet_forward.1} parent=43 // pred_fallthru
          _
      $region44: #{ddnet_forward.1} parent=5 // pred_fallthru
        _
      %p3452 = scmp.le.s32.totalorder 2, %s18
      // Predicated region
      $region69: #{ddnet_forward.1} parent=5 // pred_check
        %p3453 = pneg %p3452
      $region70: #{ddnet_forward.1} parent=5 // pred_check_branch
        %3455 = sbr.rel (%p3453) target = $region72
      $region71: #{ddnet_forward.1} parent=5 // pred_region
        %s3456 = ssub.s32 %s18, 2
        // Predicated region
        $region73: #{ddnet_forward.1} parent=71 // pred_check
          %p3457 = pneg %p178
        $region74: #{ddnet_forward.1} parent=71 // pred_check_branch
          %3459 = sbr.rel (%p3457) target = $region76
        $region75: #{ddnet_forward.1} parent=71 // pred_region
          %s3460 = sand.u32 %s163, 1
          %s3461 = scalar_lea.sflag [#allocation6], %s3460
          %s3462 = sand.u32 %s163, 1
          %s3463 = smul.addr %s3462, 32
          %s3464 = scalar_lea.vmem [#allocation14], %s3463
          %3466 = dma.done %s3461, 512
        $region76: #{ddnet_forward.1} parent=71 // pred_fallthru
          _
      $region72: #{ddnet_forward.1} parent=5 // pred_fallthru
        _
    $region6: #{ddnet_forward.1} parent=1 // loop_footer
      %s22 = sadd.s32 1, %s18
    $region7: #{ddnet_forward.1} parent=1 // loop_footer_branch
      %17 = sbr.rel target = $region3
    $region8: #{ddnet_forward.1} parent=1 // loop_exit
      _
    %3467 = vsyncpa [#allocation6], 1
    %s3468 = scalar_lea.sflag [#allocation6], 1
    %3469 = vsyncpa %s3468, 1
    %3470 = vsyncpa [#allocation7], 1
    %s3471 = scalar_lea.sflag [#allocation7], 1
    %3472 = vsyncpa %s3471, 1
    %3473 = vsyncpa [#allocation9], 1
    %3474 = vsyncpa [#allocation12], 1

</llo_original>
